<compile_context>
chip_gen: v6e
topology: v6e:2x2x1
jax: 0.10.0
libtpu: 0.0.40
codegen_flags: <defaults>
</compile_context>

<pallas_src>
import functools

import jax
import jax.numpy as jnp
from jax.experimental import pallas as pl
from jax.experimental.pallas import tpu as pltpu


# TODO(synk): nn.GELU() defaults to the exact erf form; the tanh approximation
# is used here (and in the plain-JAX reference) since erf lowering in Mosaic is
# not guaranteed.
def _gelu_tanh(x):
    return 0.5 * x * (1.0 + jnp.tanh(0.7978845608028654 *
                                     (x + 0.044715 * x * x * x)))


def _ln_branches(x, gamma, beta, *, n, C, eps):
    """Per-branch LayerNorm on the lane-concatenated layout.

    x: (tb, n*C) f32; gamma/beta: (1, n*C) f32 (branch i occupies lanes
    [i*C, (i+1)*C)).  Static slices / concat stay within 128-lane chunks when
    C is a multiple of 128."""
    outs = []
    for i in range(n):
        xi = x[:, i * C:(i + 1) * C]
        mu = jnp.mean(xi, axis=-1, keepdims=True)
        xc = xi - mu
        var = jnp.mean(xc * xc, axis=-1, keepdims=True)
        outs.append(xc * jax.lax.rsqrt(var + eps))
    y = jnp.concatenate(outs, axis=-1) if n > 1 else outs[0]
    return y * gamma + beta


# ---------------------------------------------------------------------------
# Kernel 1: one fused AttentionBlock (LN1 -> fusion matmul -> +res ->
#           LN2 -> per-branch MLP -> +res) per batch tile.
# ---------------------------------------------------------------------------
def _block_kernel(x_ref, g1_ref, be1_ref, wbig_ref, bbig_ref,
                  g2_ref, be2_ref, w1_ref, b1_ref, w2_ref, b2_ref,
                  o_ref, *, n, C, eps, compute_dtype):
    x = x_ref[...].astype(jnp.float32)                           # (tb, n*C)

    # ---- norm1 (fused) -> MLPFusion as one big matmul -> +residual ----------
    xn = _ln_branches(x, g1_ref[...], be1_ref[...], n=n, C=C, eps=eps)
    xn = xn.astype(compute_dtype)
    fus = jnp.dot(xn, wbig_ref[...], preferred_element_type=jnp.float32)
    x = x + fus + bbig_ref[...]                                  # residual stays f32

    # ---- norm2 (fused) -> per-branch Linear -> GELU -> Linear -> +residual --
    xn2 = _ln_branches(x, g2_ref[...], be2_ref[...], n=n, C=C, eps=eps)
    xn2 = xn2.astype(compute_dtype)
    parts = []
    for i in range(n):                                           # static unroll
        h = jnp.dot(xn2[:, i * C:(i + 1) * C], w1_ref[i],
                    preferred_element_type=jnp.float32)
        h = _gelu_tanh(h + b1_ref[i])                            # (tb, H) f32
        h = h.astype(compute_dtype)
        parts.append(jnp.dot(h, w2_ref[i],
                             preferred_element_type=jnp.float32))
    y = jnp.concatenate(parts, axis=-1) if n > 1 else parts[0]   # (tb, n*C)

    o_ref[...] = (x + y + b2_ref[...]).astype(o_ref.dtype)


def attention_block(x, blk, *, n, C, tb, eps, compute_dtype,
                    vmem_limit_bytes=None):
    """x: (B, n*C) f32 residual stream (lane-concatenated branches)."""
    B, NC = x.shape
    assert NC == n * C
    assert B % tb == 0 and tb % 8 == 0
    H = blk["w1"].shape[2]

    ckw = dict(dimension_semantics=("parallel",))
    if vmem_limit_bytes is not None:
        ckw["vmem_limit_bytes"] = vmem_limit_bytes

    return pl.pallas_call(
        functools.partial(_block_kernel, n=n, C=C, eps=eps,
                          compute_dtype=compute_dtype),
        out_shape=jax.ShapeDtypeStruct((B, NC), x.dtype),
        grid=(B // tb,),
        in_specs=[
            pl.BlockSpec((tb, NC), lambda b: (b, 0)),      # x (residual)
            pl.BlockSpec((1, NC), lambda b: (0, 0)),       # ln1 gamma
            pl.BlockSpec((1, NC), lambda b: (0, 0)),       # ln1 beta
            pl.BlockSpec((NC, NC), lambda b: (0, 0)),      # folded fusion weight
            pl.BlockSpec((1, NC), lambda b: (0, 0)),       # folded fusion bias
            pl.BlockSpec((1, NC), lambda b: (0, 0)),       # ln2 gamma
            pl.BlockSpec((1, NC), lambda b: (0, 0)),       # ln2 beta
            pl.BlockSpec((n, C, H), lambda b: (0, 0, 0)),  # fc1 weights
            pl.BlockSpec((n, 1, H), lambda b: (0, 0, 0)),  # fc1 bias
            pl.BlockSpec((n, H, C), lambda b: (0, 0, 0)),  # fc2 weights
            pl.BlockSpec((1, NC), lambda b: (0, 0)),       # fc2 bias (concat)
        ],
        out_specs=pl.BlockSpec((tb, NC), lambda b: (b, 0)),
        compiler_params=pltpu.CompilerParams(**ckw),
    )(x, blk["n1_g"], blk["n1_b"], blk["Wbig"], blk["bbig"],
      blk["n2_g"], blk["n2_b"], blk["w1"], blk["b1"], blk["w2"], blk["b2"])


# ---------------------------------------------------------------------------
# Kernel 2: final per-branch LayerNorm on the concatenated layout
# ---------------------------------------------------------------------------
def _final_ln_kernel(x_ref, g_ref, b_ref, o_ref, *, n, C, eps):
    x = x_ref[...].astype(jnp.float32)
    y = _ln_branches(x, g_ref[...], b_ref[...], n=n, C=C, eps=eps)
    o_ref[...] = y.astype(o_ref.dtype)


def final_layernorm(x, gamma, beta, *, n, C, tb, eps):
    B, NC = x.shape
    assert B % tb == 0 and tb % 8 == 0
    return pl.pallas_call(
        functools.partial(_final_ln_kernel, n=n, C=C, eps=eps),
        out_shape=jax.ShapeDtypeStruct((B, NC), x.dtype),
        grid=(B // tb,),
        in_specs=[
            pl.BlockSpec((tb, NC), lambda b: (b, 0)),
            pl.BlockSpec((1, NC), lambda b: (0, 0)),
            pl.BlockSpec((1, NC), lambda b: (0, 0)),
        ],
        out_specs=pl.BlockSpec((tb, NC), lambda b: (b, 0)),
        compiler_params=pltpu.CompilerParams(
            dimension_semantics=("parallel",)),
    )(x, gamma, beta)


# ---------------------------------------------------------------------------
# Parameter preparation (hoisted out of the forward; runs once)
# ---------------------------------------------------------------------------
def fold_fusion_weights(mlp_w, mlp_b, proj_w, proj_b):
    """Fold the per-slot projection into the branch MLP weights (plain JAX).

    mlp_w : (N, N*C, C)  torch Linear layout (out_features, in_features)
    mlp_b : (N, N*C)
    proj_w: (N, C, C)    torch layout (out, in)
    proj_b: (N, C)
    Returns Wf: (N_j, N_i, C, C) in (in, out) layout so
            out[i] = sum_j x_j @ Wf[j, i] + bf[i],  bf: (N_i, C).
    """
    n, _, C = mlp_w.shape
    mlp_w = mlp_w.astype(jnp.float32)
    proj_w = proj_w.astype(jnp.float32)
    # A[j, i] = mlp_w[j][i*C:(i+1)*C, :].T  -> (j, i, in, chunk_out)
    A = jnp.transpose(mlp_w.reshape(n, n, C, C), (0, 1, 3, 2))
    PT = jnp.transpose(proj_w, (0, 2, 1))                      # (i, in, out)
    Wf = jnp.einsum("jiab,ibc->jiac", A, PT)                   # (j, i, in, out)
    bsum = mlp_b.astype(jnp.float32).reshape(n, n, C).sum(axis=0)   # (i, C)
    bf = jnp.einsum("ia,iab->ib", bsum, PT) + proj_b.astype(jnp.float32)
    return Wf, bf


def prepare_params(params, *, compute_dtype=jnp.float32):
    """Fold / transpose / reshape / cast every weight once, outside the forward."""
    n, C = params["n_g"].shape
    NC = n * C
    blocks = []
    for blk in params["blocks"]:
        Wf, bf = fold_fusion_weights(blk["mlp_w"], blk["mlp_b"],
                                     blk["proj_w"], blk["proj_b"])
        # Big fusion weight: out_cat = x_cat @ Wbig + bbig,
        # Wbig[j*C:(j+1)*C, i*C:(i+1)*C] = Wf[j, i].
        Wbig = jnp.transpose(Wf, (0, 2, 1, 3)).reshape(NC, NC).astype(compute_dtype)
        bbig = bf.reshape(1, NC).astype(jnp.float32)
        H = blk["fc1_w"].shape[1]
        blocks.append(dict(
            n1_g=blk["n1_g"].reshape(1, NC).astype(jnp.float32),
            n1_b=blk["n1_b"].reshape(1, NC).astype(jnp.float32),
            Wbig=Wbig, bbig=bbig,
            n2_g=blk["n2_g"].reshape(1, NC).astype(jnp.float32),
            n2_b=blk["n2_b"].reshape(1, NC).astype(jnp.float32),
            w1=jnp.transpose(blk["fc1_w"], (0, 2, 1)).astype(compute_dtype),  # (n,C,H)
            b1=blk["fc1_b"].reshape(n, 1, H).astype(jnp.float32),
            w2=jnp.transpose(blk["fc2_w"], (0, 2, 1)).astype(compute_dtype),  # (n,H,C)
            b2=blk["fc2_b"].reshape(1, NC).astype(jnp.float32),
        ))
    return dict(
        n=n, C=C, blocks=blocks,
        n_g=params["n_g"].reshape(1, NC).astype(jnp.float32),
        n_b=params["n_b"].reshape(1, NC).astype(jnp.float32),
    )


# ---------------------------------------------------------------------------
# Full encoder forward (pos_drop / proj_drop / drop_path are identity at 0.0)
# ---------------------------------------------------------------------------
def general_attention_encoder(xs, prepared, *, eps=1e-6, tb=None,
                              compute_dtype=jnp.float32,
                              vmem_limit_bytes=None):
    """xs: (cross_num, B, C) stacked branch inputs (the *x args of the torch
    module).  Returns the stacked (cross_num, B, C) output (the x_list).

    The residual stream is carried HBM<->VMEM as a single (B, n*C) f32 slab,
    read/written exactly once per block; matmul operands use compute_dtype
    with f32 accumulation.
    TODO(synk): the real embed_dim=300 is not lane-dense; pad C to a multiple
    of 128 at parameter-prep time for best store/layout behaviour."""
    n, B, C = xs.shape
    assert prepared["n"] == n and prepared["C"] == C
    if tb is None:
        tb = next(t for t in (512, 256, 128, 64, 32, 16, 8) if B % t == 0)
    # Lane-concatenated layout: branch i occupies lanes [i*C, (i+1)*C).
    x = jnp.transpose(xs, (1, 0, 2)).reshape(B, n * C).astype(jnp.float32)
    for blk in prepared["blocks"]:
        x = attention_block(x, blk, n=n, C=C, tb=tb, eps=eps,
                            compute_dtype=compute_dtype,
                            vmem_limit_bytes=vmem_limit_bytes)
    x = final_layernorm(x, prepared["n_g"], prepared["n_b"],
                        n=n, C=C, tb=tb, eps=eps)
    return jnp.transpose(x.reshape(B, n, C), (1, 0, 2)).astype(xs.dtype)


# ---------------------------------------------------------------------------
# Plain-JAX reference mirroring the PyTorch forward exactly (unfolded weights)
# ---------------------------------------------------------------------------
def encoder_ref(xs, params, *, eps=1e-6):
    n, B, C = xs.shape
    x = [xs[i].astype(jnp.float32) for i in range(n)]

    def ln(v, g, b):
        m = v.mean(-1, keepdims=True)
        var = ((v - m) ** 2).mean(-1, keepdims=True)
        return (v - m) / jnp.sqrt(var + eps) * g + b

    for blk in params["blocks"]:
        norm_xs = [ln(x[i], blk["n1_g"][i], blk["n1_b"][i]) for i in range(n)]
        xs_ = []
        for i in range(n):
            y = norm_xs[i] @ blk["mlp_w"][i].T + blk["mlp_b"][i]
            xs_.append(jnp.transpose(y.reshape(B, n, C), (1, 0, 2)))
        for i in range(n):
            s = sum(xs_[j][i] for j in range(n))
            x[i] = x[i] + (s @ blk["proj_w"][i].T + blk["proj_b"][i])
        for i in range(n):
            h = ln(x[i], blk["n2_g"][i], blk["n2_b"][i])
            h = _gelu_tanh(h @ blk["fc1_w"][i].T + blk["fc1_b"][i])
            h = h @ blk["fc2_w"][i].T + blk["fc2_b"][i]
            x[i] = x[i] + h
    x = [ln(x[i], params["n_g"][i], params["n_b"][i]) for i in range(n)]
    return jnp.stack(x, 0)


if __name__ == "__main__":
    cross_num, dim, depth, B = 3, 128, 2, 16   # lane-dense C (multiple of 128)
    hidden = 4 * dim
    tb = 16

    key = jax.random.PRNGKey(0)

    def nrm(k, shape, s=0.05):
        return s * jax.random.normal(k, shape, jnp.float32)

    keys = jax.random.split(key, 1 + depth)
    k_in, blk_keys = keys[0], keys[1:]

    xs = jax.random.normal(k_in, (cross_num, B, dim), jnp.float32)

    blocks = []
    for d in range(depth):
        ks = jax.random.split(blk_keys[d], 12)
        blocks.append(dict(
            n1_g=1.0 + 0.1 * jax.random.normal(ks[0], (cross_num, dim), jnp.float32),
            n1_b=nrm(ks[1], (cross_num, dim)),
            mlp_w=nrm(ks[2], (cross_num, cross_num * dim, dim)),
            mlp_b=nrm(ks[3], (cross_num, cross_num * dim), 0.02),   # qkv_bias=True
            proj_w=nrm(ks[4], (cross_num, dim, dim)),
            proj_b=nrm(ks[5], (cross_num, dim), 0.02),
            n2_g=1.0 + 0.1 * jax.random.normal(ks[6], (cross_num, dim), jnp.float32),
            n2_b=nrm(ks[7], (cross_num, dim)),
            fc1_w=nrm(ks[8], (cross_num, hidden, dim)),
            fc1_b=nrm(ks[9], (cross_num, hidden), 0.02),
            fc2_w=nrm(ks[10], (cross_num, dim, hidden)),
            fc2_b=nrm(ks[11], (cross_num, dim), 0.02),
        ))
    k_ng, k_nb = jax.random.split(jax.random.fold_in(key, 123), 2)
    params = dict(
        blocks=blocks,
        n_g=1.0 + 0.1 * jax.random.normal(k_ng, (cross_num, dim), jnp.float32),
        n_b=nrm(k_nb, (cross_num, dim)),
    )

    ref = encoder_ref(xs, params)

    # f32 path vs plain-JAX reference (tight tolerance; fold is exact algebra)
    prep_f32 = prepare_params(params, compute_dtype=jnp.float32)
    out = general_attention_encoder(xs, prep_f32, tb=tb)
    out = jax.block_until_ready(out)
    assert out.shape == (cross_num, B, dim)
    assert jnp.allclose(out, ref, atol=2e-3, rtol=2e-3), \
        float(jnp.max(jnp.abs(out - ref)))

    # bf16 matmul operands (f32 accumulation / f32 residual stream)
    prep_bf16 = prepare_params(params, compute_dtype=jnp.bfloat16)
    out_bf16 = general_attention_encoder(xs, prep_bf16, tb=tb,
                                         compute_dtype=jnp.bfloat16)
    out_bf16 = jax.block_until_ready(out_bf16)
    assert bool(jnp.all(jnp.isfinite(out_bf16)))
    assert float(jnp.max(jnp.abs(out_bf16.astype(jnp.float32) - ref))) < 0.5

    # x_list equivalent of the torch module:
    x_list = [out[i] for i in range(cross_num)]
    assert len(x_list) == cross_num and x_list[0].shape == (B, dim)

    print("KERNEL_OK")
</pallas_src>

<mosaic_0001>
module attributes {stable_mosaic.version = 11 : i64} {
  func.func @_block_kernel(%arg0: i32, %arg1: memref<16x384xf32, #tpu.memory_space<vmem>>, %arg2: memref<1x384xf32, #tpu.memory_space<vmem>>, %arg3: memref<1x384xf32, #tpu.memory_space<vmem>>, %arg4: memref<384x384xf32, #tpu.memory_space<vmem>>, %arg5: memref<1x384xf32, #tpu.memory_space<vmem>>, %arg6: memref<1x384xf32, #tpu.memory_space<vmem>>, %arg7: memref<1x384xf32, #tpu.memory_space<vmem>>, %arg8: memref<3x128x512xf32, #tpu.memory_space<vmem>>, %arg9: memref<3x1x512xf32, #tpu.memory_space<vmem>>, %arg10: memref<3x512x128xf32, #tpu.memory_space<vmem>>, %arg11: memref<1x384xf32, #tpu.memory_space<vmem>>, %arg12: memref<16x384xf32, #tpu.memory_space<vmem>>) attributes {dimension_semantics = [#tpu.dimension_semantics<parallel>], iteration_bounds = array<i64: 1>, scalar_prefetch = 0 : i64, scratch_operands = 0 : i64, tpu.core_type = #tpu.core_type<tc>, window_params = [{transform_indices = @transform_0, window_bounds = array<i64: 16, 384>}, {pipeline_mode = #tpu.pipeline_mode<synchronous>, transform_indices = @transform_1, window_bounds = array<i64: 1, 384>}, {pipeline_mode = #tpu.pipeline_mode<synchronous>, transform_indices = @transform_2, window_bounds = array<i64: 1, 384>}, {pipeline_mode = #tpu.pipeline_mode<synchronous>, transform_indices = @transform_3, window_bounds = array<i64: 384, 384>}, {pipeline_mode = #tpu.pipeline_mode<synchronous>, transform_indices = @transform_4, window_bounds = array<i64: 1, 384>}, {pipeline_mode = #tpu.pipeline_mode<synchronous>, transform_indices = @transform_5, window_bounds = array<i64: 1, 384>}, {pipeline_mode = #tpu.pipeline_mode<synchronous>, transform_indices = @transform_6, window_bounds = array<i64: 1, 384>}, {pipeline_mode = #tpu.pipeline_mode<synchronous>, transform_indices = @transform_7, window_bounds = array<i64: 3, 128, 512>}, {pipeline_mode = #tpu.pipeline_mode<synchronous>, transform_indices = @transform_8, window_bounds = array<i64: 3, 1, 512>}, {pipeline_mode = #tpu.pipeline_mode<synchronous>, transform_indices = @transform_9, window_bounds = array<i64: 3, 512, 128>}, {pipeline_mode = #tpu.pipeline_mode<synchronous>, transform_indices = @transform_10, window_bounds = array<i64: 1, 384>}, {transform_indices = @transform_11, window_bounds = array<i64: 16, 384>}]} {
    %c0 = arith.constant 0 : index
    %c0_0 = arith.constant 0 : index
    %0 = vector.load %arg1[%c0, %c0_0] : memref<16x384xf32, #tpu.memory_space<vmem>>, vector<16x384xf32>
    %c0_1 = arith.constant 0 : index
    %c0_2 = arith.constant 0 : index
    %1 = vector.load %arg2[%c0_1, %c0_2] : memref<1x384xf32, #tpu.memory_space<vmem>>, vector<1x384xf32>
    %c0_3 = arith.constant 0 : index
    %c0_4 = arith.constant 0 : index
    %2 = vector.load %arg3[%c0_3, %c0_4] : memref<1x384xf32, #tpu.memory_space<vmem>>, vector<1x384xf32>
    %3 = vector.extract_strided_slice %0 {offsets = [0, 0], sizes = [16, 128], strides = [1, 1]} : vector<16x384xf32> to vector<16x128xf32>
    %cst = arith.constant dense<0.000000e+00> : vector<16xf32>
    %4 = vector.multi_reduction <add>, %3, %cst [1] : vector<16x128xf32> to vector<16xf32>
    %5 = vector.shape_cast %4 : vector<16xf32> to vector<16x1xf32>
    %cst_5 = arith.constant 1.280000e+02 : f32
    %6 = vector.broadcast %cst_5 : f32 to vector<16x1xf32>
    %7 = arith.divf %5, %6 : vector<16x1xf32>
    %8 = vector.broadcast %7 : vector<16x1xf32> to vector<16x128xf32>
    %9 = arith.subf %3, %8 : vector<16x128xf32>
    %10 = arith.mulf %9, %9 : vector<16x128xf32>
    %cst_6 = arith.constant dense<0.000000e+00> : vector<16xf32>
    %11 = vector.multi_reduction <add>, %10, %cst_6 [1] : vector<16x128xf32> to vector<16xf32>
    %12 = vector.shape_cast %11 : vector<16xf32> to vector<16x1xf32>
    %cst_7 = arith.constant 1.280000e+02 : f32
    %13 = vector.broadcast %cst_7 : f32 to vector<16x1xf32>
    %14 = arith.divf %12, %13 : vector<16x1xf32>
    %cst_8 = arith.constant 9.99999997E-7 : f32
    %15 = vector.broadcast %cst_8 : f32 to vector<16x1xf32>
    %16 = arith.addf %14, %15 : vector<16x1xf32>
    %17 = math.rsqrt %16 : vector<16x1xf32>
    %18 = vector.broadcast %17 : vector<16x1xf32> to vector<16x128xf32>
    %19 = arith.mulf %9, %18 : vector<16x128xf32>
    %20 = vector.extract_strided_slice %0 {offsets = [0, 128], sizes = [16, 128], strides = [1, 1]} : vector<16x384xf32> to vector<16x128xf32>
    %cst_9 = arith.constant dense<0.000000e+00> : vector<16xf32>
    %21 = vector.multi_reduction <add>, %20, %cst_9 [1] : vector<16x128xf32> to vector<16xf32>
    %22 = vector.shape_cast %21 : vector<16xf32> to vector<16x1xf32>
    %cst_10 = arith.constant 1.280000e+02 : f32
    %23 = vector.broadcast %cst_10 : f32 to vector<16x1xf32>
    %24 = arith.divf %22, %23 : vector<16x1xf32>
    %25 = vector.broadcast %24 : vector<16x1xf32> to vector<16x128xf32>
    %26 = arith.subf %20, %25 : vector<16x128xf32>
    %27 = arith.mulf %26, %26 : vector<16x128xf32>
    %cst_11 = arith.constant dense<0.000000e+00> : vector<16xf32>
    %28 = vector.multi_reduction <add>, %27, %cst_11 [1] : vector<16x128xf32> to vector<16xf32>
    %29 = vector.shape_cast %28 : vector<16xf32> to vector<16x1xf32>
    %cst_12 = arith.constant 1.280000e+02 : f32
    %30 = vector.broadcast %cst_12 : f32 to vector<16x1xf32>
    %31 = arith.divf %29, %30 : vector<16x1xf32>
    %cst_13 = arith.constant 9.99999997E-7 : f32
    %32 = vector.broadcast %cst_13 : f32 to vector<16x1xf32>
    %33 = arith.addf %31, %32 : vector<16x1xf32>
    %34 = math.rsqrt %33 : vector<16x1xf32>
    %35 = vector.broadcast %34 : vector<16x1xf32> to vector<16x128xf32>
    %36 = arith.mulf %26, %35 : vector<16x128xf32>
    %37 = vector.extract_strided_slice %0 {offsets = [0, 256], sizes = [16, 128], strides = [1, 1]} : vector<16x384xf32> to vector<16x128xf32>
    %cst_14 = arith.constant dense<0.000000e+00> : vector<16xf32>
    %38 = vector.multi_reduction <add>, %37, %cst_14 [1] : vector<16x128xf32> to vector<16xf32>
    %39 = vector.shape_cast %38 : vector<16xf32> to vector<16x1xf32>
    %cst_15 = arith.constant 1.280000e+02 : f32
    %40 = vector.broadcast %cst_15 : f32 to vector<16x1xf32>
    %41 = arith.divf %39, %40 : vector<16x1xf32>
    %42 = vector.broadcast %41 : vector<16x1xf32> to vector<16x128xf32>
    %43 = arith.subf %37, %42 : vector<16x128xf32>
    %44 = arith.mulf %43, %43 : vector<16x128xf32>
    %cst_16 = arith.constant dense<0.000000e+00> : vector<16xf32>
    %45 = vector.multi_reduction <add>, %44, %cst_16 [1] : vector<16x128xf32> to vector<16xf32>
    %46 = vector.shape_cast %45 : vector<16xf32> to vector<16x1xf32>
    %cst_17 = arith.constant 1.280000e+02 : f32
    %47 = vector.broadcast %cst_17 : f32 to vector<16x1xf32>
    %48 = arith.divf %46, %47 : vector<16x1xf32>
    %cst_18 = arith.constant 9.99999997E-7 : f32
    %49 = vector.broadcast %cst_18 : f32 to vector<16x1xf32>
    %50 = arith.addf %48, %49 : vector<16x1xf32>
    %51 = math.rsqrt %50 : vector<16x1xf32>
    %52 = vector.broadcast %51 : vector<16x1xf32> to vector<16x128xf32>
    %53 = arith.mulf %43, %52 : vector<16x128xf32>
    %54 = tpu.concatenate %19, %36, %53 in 1 : vector<16x128xf32>, vector<16x128xf32>, vector<16x128xf32> -> vector<16x384xf32>
    %55 = vector.broadcast %1 : vector<1x384xf32> to vector<16x384xf32>
    %56 = arith.mulf %54, %55 : vector<16x384xf32>
    %57 = vector.broadcast %2 : vector<1x384xf32> to vector<16x384xf32>
    %58 = arith.addf %56, %57 : vector<16x384xf32>
    %c0_19 = arith.constant 0 : index
    %c0_20 = arith.constant 0 : index
    %59 = vector.load %arg4[%c0_19, %c0_20] : memref<384x384xf32, #tpu.memory_space<vmem>>, vector<384x384xf32>
    %cst_21 = arith.constant dense<0.000000e+00> : vector<16x384xf32>
    %60 = tpu.matmul %58, %59, %cst_21 {dimension_numbers = #tpu.dot_dimension_numbers<[1], [0], [0], [1], [0, 0, 1, 1], [], []>} : vector<16x384xf32>, vector<384x384xf32>, vector<16x384xf32> -> vector<16x384xf32>
    %61 = arith.addf %0, %60 : vector<16x384xf32>
    %c0_22 = arith.constant 0 : index
    %c0_23 = arith.constant 0 : index
    %62 = vector.load %arg5[%c0_22, %c0_23] : memref<1x384xf32, #tpu.memory_space<vmem>>, vector<1x384xf32>
    %63 = vector.broadcast %62 : vector<1x384xf32> to vector<16x384xf32>
    %64 = arith.addf %61, %63 : vector<16x384xf32>
    %c0_24 = arith.constant 0 : index
    %c0_25 = arith.constant 0 : index
    %65 = vector.load %arg6[%c0_24, %c0_25] : memref<1x384xf32, #tpu.memory_space<vmem>>, vector<1x384xf32>
    %c0_26 = arith.constant 0 : index
    %c0_27 = arith.constant 0 : index
    %66 = vector.load %arg7[%c0_26, %c0_27] : memref<1x384xf32, #tpu.memory_space<vmem>>, vector<1x384xf32>
    %67 = vector.extract_strided_slice %64 {offsets = [0, 0], sizes = [16, 128], strides = [1, 1]} : vector<16x384xf32> to vector<16x128xf32>
    %cst_28 = arith.constant dense<0.000000e+00> : vector<16xf32>
    %68 = vector.multi_reduction <add>, %67, %cst_28 [1] : vector<16x128xf32> to vector<16xf32>
    %69 = vector.shape_cast %68 : vector<16xf32> to vector<16x1xf32>
    %cst_29 = arith.constant 1.280000e+02 : f32
    %70 = vector.broadcast %cst_29 : f32 to vector<16x1xf32>
    %71 = arith.divf %69, %70 : vector<16x1xf32>
    %72 = vector.broadcast %71 : vector<16x1xf32> to vector<16x128xf32>
    %73 = arith.subf %67, %72 : vector<16x128xf32>
    %74 = arith.mulf %73, %73 : vector<16x128xf32>
    %cst_30 = arith.constant dense<0.000000e+00> : vector<16xf32>
    %75 = vector.multi_reduction <add>, %74, %cst_30 [1] : vector<16x128xf32> to vector<16xf32>
    %76 = vector.shape_cast %75 : vector<16xf32> to vector<16x1xf32>
    %cst_31 = arith.constant 1.280000e+02 : f32
    %77 = vector.broadcast %cst_31 : f32 to vector<16x1xf32>
    %78 = arith.divf %76, %77 : vector<16x1xf32>
    %cst_32 = arith.constant 9.99999997E-7 : f32
    %79 = vector.broadcast %cst_32 : f32 to vector<16x1xf32>
    %80 = arith.addf %78, %79 : vector<16x1xf32>
    %81 = math.rsqrt %80 : vector<16x1xf32>
    %82 = vector.broadcast %81 : vector<16x1xf32> to vector<16x128xf32>
    %83 = arith.mulf %73, %82 : vector<16x128xf32>
    %84 = vector.extract_strided_slice %64 {offsets = [0, 128], sizes = [16, 128], strides = [1, 1]} : vector<16x384xf32> to vector<16x128xf32>
    %cst_33 = arith.constant dense<0.000000e+00> : vector<16xf32>
    %85 = vector.multi_reduction <add>, %84, %cst_33 [1] : vector<16x128xf32> to vector<16xf32>
    %86 = vector.shape_cast %85 : vector<16xf32> to vector<16x1xf32>
    %cst_34 = arith.constant 1.280000e+02 : f32
    %87 = vector.broadcast %cst_34 : f32 to vector<16x1xf32>
    %88 = arith.divf %86, %87 : vector<16x1xf32>
    %89 = vector.broadcast %88 : vector<16x1xf32> to vector<16x128xf32>
    %90 = arith.subf %84, %89 : vector<16x128xf32>
    %91 = arith.mulf %90, %90 : vector<16x128xf32>
    %cst_35 = arith.constant dense<0.000000e+00> : vector<16xf32>
    %92 = vector.multi_reduction <add>, %91, %cst_35 [1] : vector<16x128xf32> to vector<16xf32>
    %93 = vector.shape_cast %92 : vector<16xf32> to vector<16x1xf32>
    %cst_36 = arith.constant 1.280000e+02 : f32
    %94 = vector.broadcast %cst_36 : f32 to vector<16x1xf32>
    %95 = arith.divf %93, %94 : vector<16x1xf32>
    %cst_37 = arith.constant 9.99999997E-7 : f32
    %96 = vector.broadcast %cst_37 : f32 to vector<16x1xf32>
    %97 = arith.addf %95, %96 : vector<16x1xf32>
    %98 = math.rsqrt %97 : vector<16x1xf32>
    %99 = vector.broadcast %98 : vector<16x1xf32> to vector<16x128xf32>
    %100 = arith.mulf %90, %99 : vector<16x128xf32>
    %101 = vector.extract_strided_slice %64 {offsets = [0, 256], sizes = [16, 128], strides = [1, 1]} : vector<16x384xf32> to vector<16x128xf32>
    %cst_38 = arith.constant dense<0.000000e+00> : vector<16xf32>
    %102 = vector.multi_reduction <add>, %101, %cst_38 [1] : vector<16x128xf32> to vector<16xf32>
    %103 = vector.shape_cast %102 : vector<16xf32> to vector<16x1xf32>
    %cst_39 = arith.constant 1.280000e+02 : f32
    %104 = vector.broadcast %cst_39 : f32 to vector<16x1xf32>
    %105 = arith.divf %103, %104 : vector<16x1xf32>
    %106 = vector.broadcast %105 : vector<16x1xf32> to vector<16x128xf32>
    %107 = arith.subf %101, %106 : vector<16x128xf32>
    %108 = arith.mulf %107, %107 : vector<16x128xf32>
    %cst_40 = arith.constant dense<0.000000e+00> : vector<16xf32>
    %109 = vector.multi_reduction <add>, %108, %cst_40 [1] : vector<16x128xf32> to vector<16xf32>
    %110 = vector.shape_cast %109 : vector<16xf32> to vector<16x1xf32>
    %cst_41 = arith.constant 1.280000e+02 : f32
    %111 = vector.broadcast %cst_41 : f32 to vector<16x1xf32>
    %112 = arith.divf %110, %111 : vector<16x1xf32>
    %cst_42 = arith.constant 9.99999997E-7 : f32
    %113 = vector.broadcast %cst_42 : f32 to vector<16x1xf32>
    %114 = arith.addf %112, %113 : vector<16x1xf32>
    %115 = math.rsqrt %114 : vector<16x1xf32>
    %116 = vector.broadcast %115 : vector<16x1xf32> to vector<16x128xf32>
    %117 = arith.mulf %107, %116 : vector<16x128xf32>
    %118 = tpu.concatenate %83, %100, %117 in 1 : vector<16x128xf32>, vector<16x128xf32>, vector<16x128xf32> -> vector<16x384xf32>
    %119 = vector.broadcast %65 : vector<1x384xf32> to vector<16x384xf32>
    %120 = arith.mulf %118, %119 : vector<16x384xf32>
    %121 = vector.broadcast %66 : vector<1x384xf32> to vector<16x384xf32>
    %122 = arith.addf %120, %121 : vector<16x384xf32>
    %123 = vector.extract_strided_slice %122 {offsets = [0, 0], sizes = [16, 128], strides = [1, 1]} : vector<16x384xf32> to vector<16x128xf32>
    %c0_43 = arith.constant 0 : index
    %c0_44 = arith.constant 0 : index
    %c0_45 = arith.constant 0 : index
    %124 = vector.load %arg8[%c0_43, %c0_44, %c0_45] : memref<3x128x512xf32, #tpu.memory_space<vmem>>, vector<1x128x512xf32>
    %125 = vector.shape_cast %124 : vector<1x128x512xf32> to vector<128x512xf32>
    %cst_46 = arith.constant dense<0.000000e+00> : vector<16x512xf32>
    %126 = tpu.matmul %123, %125, %cst_46 {dimension_numbers = #tpu.dot_dimension_numbers<[1], [0], [0], [1], [0, 0, 1, 1], [], []>} : vector<16x128xf32>, vector<128x512xf32>, vector<16x512xf32> -> vector<16x512xf32>
    %c0_47 = arith.constant 0 : index
    %c0_48 = arith.constant 0 : index
    %c0_49 = arith.constant 0 : index
    %127 = vector.load %arg9[%c0_47, %c0_48, %c0_49] : memref<3x1x512xf32, #tpu.memory_space<vmem>>, vector<1x1x512xf32>
    %128 = vector.shape_cast %127 : vector<1x1x512xf32> to vector<1x512xf32>
    %129 = vector.broadcast %128 : vector<1x512xf32> to vector<16x512xf32>
    %130 = arith.addf %126, %129 : vector<16x512xf32>
    %cst_50 = arith.constant 5.000000e-01 : f32
    %131 = vector.broadcast %cst_50 : f32 to vector<16x512xf32>
    %132 = arith.mulf %131, %130 : vector<16x512xf32>
    %cst_51 = arith.constant 4.471500e-02 : f32
    %133 = vector.broadcast %cst_51 : f32 to vector<16x512xf32>
    %134 = arith.mulf %133, %130 : vector<16x512xf32>
    %135 = arith.mulf %134, %130 : vector<16x512xf32>
    %136 = arith.mulf %135, %130 : vector<16x512xf32>
    %137 = arith.addf %130, %136 : vector<16x512xf32>
    %cst_52 = arith.constant 0.797884583 : f32
    %138 = vector.broadcast %cst_52 : f32 to vector<16x512xf32>
    %139 = arith.mulf %138, %137 : vector<16x512xf32>
    %140 = math.tanh %139 : vector<16x512xf32>
    %cst_53 = arith.constant 1.000000e+00 : f32
    %141 = vector.broadcast %cst_53 : f32 to vector<16x512xf32>
    %142 = arith.addf %141, %140 : vector<16x512xf32>
    %143 = arith.mulf %132, %142 : vector<16x512xf32>
    %c0_54 = arith.constant 0 : index
    %c0_55 = arith.constant 0 : index
    %c0_56 = arith.constant 0 : index
    %144 = vector.load %arg10[%c0_54, %c0_55, %c0_56] : memref<3x512x128xf32, #tpu.memory_space<vmem>>, vector<1x512x128xf32>
    %145 = vector.shape_cast %144 : vector<1x512x128xf32> to vector<512x128xf32>
    %cst_57 = arith.constant dense<0.000000e+00> : vector<16x128xf32>
    %146 = tpu.matmul %143, %145, %cst_57 {dimension_numbers = #tpu.dot_dimension_numbers<[1], [0], [0], [1], [0, 0, 1, 1], [], []>} : vector<16x512xf32>, vector<512x128xf32>, vector<16x128xf32> -> vector<16x128xf32>
    %147 = vector.extract_strided_slice %122 {offsets = [0, 128], sizes = [16, 128], strides = [1, 1]} : vector<16x384xf32> to vector<16x128xf32>
    %c1 = arith.constant 1 : index
    %c0_58 = arith.constant 0 : index
    %c0_59 = arith.constant 0 : index
    %148 = vector.load %arg8[%c1, %c0_58, %c0_59] : memref<3x128x512xf32, #tpu.memory_space<vmem>>, vector<1x128x512xf32>
    %149 = vector.shape_cast %148 : vector<1x128x512xf32> to vector<128x512xf32>
    %cst_60 = arith.constant dense<0.000000e+00> : vector<16x512xf32>
    %150 = tpu.matmul %147, %149, %cst_60 {dimension_numbers = #tpu.dot_dimension_numbers<[1], [0], [0], [1], [0, 0, 1, 1], [], []>} : vector<16x128xf32>, vector<128x512xf32>, vector<16x512xf32> -> vector<16x512xf32>
    %c1_61 = arith.constant 1 : index
    %c0_62 = arith.constant 0 : index
    %c0_63 = arith.constant 0 : index
    %151 = vector.load %arg9[%c1_61, %c0_62, %c0_63] : memref<3x1x512xf32, #tpu.memory_space<vmem>>, vector<1x1x512xf32>
    %152 = vector.shape_cast %151 : vector<1x1x512xf32> to vector<1x512xf32>
    %153 = vector.broadcast %152 : vector<1x512xf32> to vector<16x512xf32>
    %154 = arith.addf %150, %153 : vector<16x512xf32>
    %cst_64 = arith.constant 5.000000e-01 : f32
    %155 = vector.broadcast %cst_64 : f32 to vector<16x512xf32>
    %156 = arith.mulf %155, %154 : vector<16x512xf32>
    %cst_65 = arith.constant 4.471500e-02 : f32
    %157 = vector.broadcast %cst_65 : f32 to vector<16x512xf32>
    %158 = arith.mulf %157, %154 : vector<16x512xf32>
    %159 = arith.mulf %158, %154 : vector<16x512xf32>
    %160 = arith.mulf %159, %154 : vector<16x512xf32>
    %161 = arith.addf %154, %160 : vector<16x512xf32>
    %cst_66 = arith.constant 0.797884583 : f32
    %162 = vector.broadcast %cst_66 : f32 to vector<16x512xf32>
    %163 = arith.mulf %162, %161 : vector<16x512xf32>
    %164 = math.tanh %163 : vector<16x512xf32>
    %cst_67 = arith.constant 1.000000e+00 : f32
    %165 = vector.broadcast %cst_67 : f32 to vector<16x512xf32>
    %166 = arith.addf %165, %164 : vector<16x512xf32>
    %167 = arith.mulf %156, %166 : vector<16x512xf32>
    %c1_68 = arith.constant 1 : index
    %c0_69 = arith.constant 0 : index
    %c0_70 = arith.constant 0 : index
    %168 = vector.load %arg10[%c1_68, %c0_69, %c0_70] : memref<3x512x128xf32, #tpu.memory_space<vmem>>, vector<1x512x128xf32>
    %169 = vector.shape_cast %168 : vector<1x512x128xf32> to vector<512x128xf32>
    %cst_71 = arith.constant dense<0.000000e+00> : vector<16x128xf32>
    %170 = tpu.matmul %167, %169, %cst_71 {dimension_numbers = #tpu.dot_dimension_numbers<[1], [0], [0], [1], [0, 0, 1, 1], [], []>} : vector<16x512xf32>, vector<512x128xf32>, vector<16x128xf32> -> vector<16x128xf32>
    %171 = vector.extract_strided_slice %122 {offsets = [0, 256], sizes = [16, 128], strides = [1, 1]} : vector<16x384xf32> to vector<16x128xf32>
    %c2 = arith.constant 2 : index
    %c0_72 = arith.constant 0 : index
    %c0_73 = arith.constant 0 : index
    %172 = vector.load %arg8[%c2, %c0_72, %c0_73] : memref<3x128x512xf32, #tpu.memory_space<vmem>>, vector<1x128x512xf32>
    %173 = vector.shape_cast %172 : vector<1x128x512xf32> to vector<128x512xf32>
    %cst_74 = arith.constant dense<0.000000e+00> : vector<16x512xf32>
    %174 = tpu.matmul %171, %173, %cst_74 {dimension_numbers = #tpu.dot_dimension_numbers<[1], [0], [0], [1], [0, 0, 1, 1], [], []>} : vector<16x128xf32>, vector<128x512xf32>, vector<16x512xf32> -> vector<16x512xf32>
    %c2_75 = arith.constant 2 : index
    %c0_76 = arith.constant 0 : index
    %c0_77 = arith.constant 0 : index
    %175 = vector.load %arg9[%c2_75, %c0_76, %c0_77] : memref<3x1x512xf32, #tpu.memory_space<vmem>>, vector<1x1x512xf32>
    %176 = vector.shape_cast %175 : vector<1x1x512xf32> to vector<1x512xf32>
    %177 = vector.broadcast %176 : vector<1x512xf32> to vector<16x512xf32>
    %178 = arith.addf %174, %177 : vector<16x512xf32>
    %cst_78 = arith.constant 5.000000e-01 : f32
    %179 = vector.broadcast %cst_78 : f32 to vector<16x512xf32>
    %180 = arith.mulf %179, %178 : vector<16x512xf32>
    %cst_79 = arith.constant 4.471500e-02 : f32
    %181 = vector.broadcast %cst_79 : f32 to vector<16x512xf32>
    %182 = arith.mulf %181, %178 : vector<16x512xf32>
    %183 = arith.mulf %182, %178 : vector<16x512xf32>
    %184 = arith.mulf %183, %178 : vector<16x512xf32>
    %185 = arith.addf %178, %184 : vector<16x512xf32>
    %cst_80 = arith.constant 0.797884583 : f32
    %186 = vector.broadcast %cst_80 : f32 to vector<16x512xf32>
    %187 = arith.mulf %186, %185 : vector<16x512xf32>
    %188 = math.tanh %187 : vector<16x512xf32>
    %cst_81 = arith.constant 1.000000e+00 : f32
    %189 = vector.broadcast %cst_81 : f32 to vector<16x512xf32>
    %190 = arith.addf %189, %188 : vector<16x512xf32>
    %191 = arith.mulf %180, %190 : vector<16x512xf32>
    %c2_82 = arith.constant 2 : index
    %c0_83 = arith.constant 0 : index
    %c0_84 = arith.constant 0 : index
    %192 = vector.load %arg10[%c2_82, %c0_83, %c0_84] : memref<3x512x128xf32, #tpu.memory_space<vmem>>, vector<1x512x128xf32>
    %193 = vector.shape_cast %192 : vector<1x512x128xf32> to vector<512x128xf32>
    %cst_85 = arith.constant dense<0.000000e+00> : vector<16x128xf32>
    %194 = tpu.matmul %191, %193, %cst_85 {dimension_numbers = #tpu.dot_dimension_numbers<[1], [0], [0], [1], [0, 0, 1, 1], [], []>} : vector<16x512xf32>, vector<512x128xf32>, vector<16x128xf32> -> vector<16x128xf32>
    %195 = tpu.concatenate %146, %170, %194 in 1 : vector<16x128xf32>, vector<16x128xf32>, vector<16x128xf32> -> vector<16x384xf32>
    %196 = arith.addf %64, %195 : vector<16x384xf32>
    %c0_86 = arith.constant 0 : index
    %c0_87 = arith.constant 0 : index
    %197 = vector.load %arg11[%c0_86, %c0_87] : memref<1x384xf32, #tpu.memory_space<vmem>>, vector<1x384xf32>
    %198 = vector.broadcast %197 : vector<1x384xf32> to vector<16x384xf32>
    %199 = arith.addf %196, %198 : vector<16x384xf32>
    %c0_88 = arith.constant 0 : index
    %c0_89 = arith.constant 0 : index
    %200 = vector.load %arg12[%c0_88, %c0_89] : memref<16x384xf32, #tpu.memory_space<vmem>>, vector<16x384xf32>
    tpu.vector_store %arg12[%c0_88, %c0_89], %199 {strides = array<i32>} : memref<16x384xf32, #tpu.memory_space<vmem>>, vector<16x384xf32>,
    return
  }
  func.func @transform_0(%arg0: i32) -> (i32, i32) {
    %c0_i32 = arith.constant 0 : i32
    %c0_i32_0 = arith.constant 0 : i32
    return %arg0, %c0_i32 : i32, i32
  }
  func.func @transform_1(%arg0: i32) -> (i32, i32) {
    %c0_i32 = arith.constant 0 : i32
    %c0_i32_0 = arith.constant 0 : i32
    %c0_i32_1 = arith.constant 0 : i32
    return %c0_i32, %c0_i32_0 : i32, i32
  }
  func.func @transform_2(%arg0: i32) -> (i32, i32) {
    %c0_i32 = arith.constant 0 : i32
    %c0_i32_0 = arith.constant 0 : i32
    %c0_i32_1 = arith.constant 0 : i32
    return %c0_i32, %c0_i32_0 : i32, i32
  }
  func.func @transform_3(%arg0: i32) -> (i32, i32) {
    %c0_i32 = arith.constant 0 : i32
    %c0_i32_0 = arith.constant 0 : i32
    %c0_i32_1 = arith.constant 0 : i32
    return %c0_i32, %c0_i32_0 : i32, i32
  }
  func.func @transform_4(%arg0: i32) -> (i32, i32) {
    %c0_i32 = arith.constant 0 : i32
    %c0_i32_0 = arith.constant 0 : i32
    %c0_i32_1 = arith.constant 0 : i32
    return %c0_i32, %c0_i32_0 : i32, i32
  }
  func.func @transform_5(%arg0: i32) -> (i32, i32) {
    %c0_i32 = arith.constant 0 : i32
    %c0_i32_0 = arith.constant 0 : i32
    %c0_i32_1 = arith.constant 0 : i32
    return %c0_i32, %c0_i32_0 : i32, i32
  }
  func.func @transform_6(%arg0: i32) -> (i32, i32) {
    %c0_i32 = arith.constant 0 : i32
    %c0_i32_0 = arith.constant 0 : i32
    %c0_i32_1 = arith.constant 0 : i32
    return %c0_i32, %c0_i32_0 : i32, i32
  }
  func.func @transform_7(%arg0: i32) -> (i32, i32, i32) {
    %c0_i32 = arith.constant 0 : i32
    %c0_i32_0 = arith.constant 0 : i32
    %c0_i32_1 = arith.constant 0 : i32
    %c0_i32_2 = arith.constant 0 : i32
    return %c0_i32, %c0_i32_0, %c0_i32_1 : i32, i32, i32
  }
  func.func @transform_8(%arg0: i32) -> (i32, i32, i32) {
    %c0_i32 = arith.constant 0 : i32
    %c0_i32_0 = arith.constant 0 : i32
    %c0_i32_1 = arith.constant 0 : i32
    %c0_i32_2 = arith.constant 0 : i32
    return %c0_i32, %c0_i32_0, %c0_i32_1 : i32, i32, i32
  }
  func.func @transform_9(%arg0: i32) -> (i32, i32, i32) {
    %c0_i32 = arith.constant 0 : i32
    %c0_i32_0 = arith.constant 0 : i32
    %c0_i32_1 = arith.constant 0 : i32
    %c0_i32_2 = arith.constant 0 : i32
    return %c0_i32, %c0_i32_0, %c0_i32_1 : i32, i32, i32
  }
  func.func @transform_10(%arg0: i32) -> (i32, i32) {
    %c0_i32 = arith.constant 0 : i32
    %c0_i32_0 = arith.constant 0 : i32
    %c0_i32_1 = arith.constant 0 : i32
    return %c0_i32, %c0_i32_0 : i32, i32
  }
  func.func @transform_11(%arg0: i32) -> (i32, i32) {
    %c0_i32 = arith.constant 0 : i32
    %c0_i32_0 = arith.constant 0 : i32
    return %arg0, %c0_i32 : i32, i32
  }
}

</mosaic_0001>

<llo_original>
// kernel: tpu_custom_call.1
$region0: #{tpu_custom_call.1}
  #allocation0 [shape = 'u32[]', space=smem, size = 0x4, offset = 0x4, fixed_abs, tag = 'smem constant byte address 0x4 - core index']
  #allocation1 [shape = 'u32[144,128]{1,0:T(1,128)}', space=vmem, size = 0x12000, scoped, tag = 'internal scratch']
  %s0 = inlined_call_operand.hbm [shape: f32[16,384], index: 0, kind: input, shape index: {}]
  %s1 = inlined_call_operand.hbm [shape: f32[1,384], index: 1, kind: input, shape index: {}]
  %s2 = inlined_call_operand.hbm [shape: f32[1,384], index: 2, kind: input, shape index: {}]
  %s3 = inlined_call_operand.hbm [shape: f32[384,384], index: 3, kind: input, shape index: {}]
  %s4 = inlined_call_operand.hbm [shape: f32[1,384], index: 4, kind: input, shape index: {}]
  %s5 = inlined_call_operand.hbm [shape: f32[1,384], index: 5, kind: input, shape index: {}]
  %s6 = inlined_call_operand.hbm [shape: f32[1,384], index: 6, kind: input, shape index: {}]
  %s7 = inlined_call_operand.hbm [shape: f32[3,128,512], index: 7, kind: input, shape index: {}]
  %s8 = inlined_call_operand.vmem [shape: f32[3,1,512], index: 8, kind: input, shape index: {}]
  %s9 = inlined_call_operand.hbm [shape: f32[3,512,128], index: 9, kind: input, shape index: {}]
  %s10 = inlined_call_operand.vmem [shape: f32[1,384], index: 10, kind: input, shape index: {}]
  %s11 = inlined_call_operand.hbm [shape: f32[16,384], index: 11, kind: output, shape index: {}]
  %s12 = sld [smem:[#allocation0]]
  $region90: #{tpu_custom_call.1} parent=0
    _
  %s14 = ssub.s32 1, %s12
  %s15 = scalar_select 0, %s14, %s12
  $region1: #{tpu_custom_call.1} parent=0
    #allocation2 [shape = 'u8[24576]{0}', space=vmem, size = 0x6000, scoped, tag = 'input window, operand 0, single buffered']
    #allocation3 [shape = 's32[1]{0}', space=sflag, size = 0x4, scoped, tag = 'scoped memory for tpu_custom_call.1']
    #allocation4 [shape = 's32[1]{0}', space=sflag, size = 0x4, scoped, tag = 'scoped memory for tpu_custom_call.1']
    #allocation5 [shape = 'u8[1536]{0}', space=vmem, size = 0x800, scoped, tag = 'input window, operand 1, single buffered']
    #allocation6 [shape = 's32[1]{0}', space=sflag, size = 0x4, scoped, tag = 'scoped memory for tpu_custom_call.1']
    #allocation7 [shape = 'u8[1536]{0}', space=vmem, size = 0x800, scoped, tag = 'input window, operand 2, single buffered']
    #allocation8 [shape = 'u8[589824]{0}', space=vmem, size = 0x90000, scoped, tag = 'input window, operand 3, single buffered']
    #allocation9 [shape = 's32[1]{0}', space=sflag, size = 0x4, scoped, tag = 'scoped memory for tpu_custom_call.1']
    #allocation10 [shape = 'u8[1536]{0}', space=vmem, size = 0x800, scoped, tag = 'input window, operand 4, single buffered']
    #allocation11 [shape = 'u8[1536]{0}', space=vmem, size = 0x800, scoped, tag = 'input window, operand 5, single buffered']
    #allocation12 [shape = 's32[1]{0}', space=sflag, size = 0x4, scoped, tag = 'scoped memory for tpu_custom_call.1']
    #allocation13 [shape = 'u8[1536]{0}', space=vmem, size = 0x800, scoped, tag = 'input window, operand 6, single buffered']
    #allocation14 [shape = 'u8[786432]{0}', space=vmem, size = 0xc0000, scoped, tag = 'input window, operand 7, single buffered']
    #allocation15 [shape = 's32[1]{0}', space=sflag, size = 0x4, scoped, tag = 'scoped memory for tpu_custom_call.1']
    #allocation16 [shape = 'u8[786432]{0}', space=vmem, size = 0xc0000, scoped, tag = 'input window, operand 9, single buffered']
    #allocation17 [shape = 'u8[24576]{0}', space=vmem, size = 0x6000, scoped, tag = 'output window, operand 0, single buffered']
    %16 = vsyncpa [#allocation3], 0
    %17 = vsyncpa [#allocation6], 0
    %18 = vsyncpa [#allocation9], 0
    %19 = vsyncpa [#allocation12], 0
    %20 = vsyncpa [#allocation15], 0
    %21 = vsyncpa [#allocation4], 0
    // Predicated region
    $region2: #{tpu_custom_call.1} parent=1 // pred_check
      _
    $region3: #{tpu_custom_call.1} parent=1 // pred_check_branch
      %23 = sbr.rel (0) target = $region5
    $region4: #{tpu_custom_call.1} parent=1 // pred_region
      %s25 = ssub.s32 768, 768
      %26 = vsyncadd [#allocation3], %s25
      %s27 = sshll.u32 [#allocation2], 4
      %s28 = int_to_ptr.vmem [resolvable:$true] %s27
      %33 = dma.hbm_to_vmem [thread:$0]  %s0, 768, %s28, [#allocation3], 384, 384, 24
    $region5: #{tpu_custom_call.1} parent=1 // pred_fallthru
      _
    // Predicated region
    $region6: #{tpu_custom_call.1} parent=1 // pred_check
      _
    $region7: #{tpu_custom_call.1} parent=1 // pred_check_branch
      %35 = sbr.rel (0) target = $region9
    $region8: #{tpu_custom_call.1} parent=1 // pred_region
      %s37 = ssub.s32 48, 48
      %38 = vsyncadd [#allocation6], %s37
      %s40 = sshll.u32 [#allocation5], 4
      %s41 = int_to_ptr.vmem [resolvable:$true] %s40
      %43 = dma.hbm_to_vmem [thread:$0]  %s1, 48, %s41, [#allocation6]
    $region9: #{tpu_custom_call.1} parent=1 // pred_fallthru
      _
    // Predicated region
    $region10: #{tpu_custom_call.1} parent=1 // pred_check
      _
    $region11: #{tpu_custom_call.1} parent=1 // pred_check_branch
      %45 = sbr.rel (0) target = $region13
    $region12: #{tpu_custom_call.1} parent=1 // pred_region
      %s47 = ssub.s32 48, 48
      %48 = vsyncadd [#allocation6], %s47
      %s50 = sshll.u32 [#allocation7], 4
      %s51 = int_to_ptr.vmem [resolvable:$true] %s50
      %53 = dma.hbm_to_vmem [thread:$0]  %s2, 48, %s51, [#allocation6]
    $region13: #{tpu_custom_call.1} parent=1 // pred_fallthru
      _
    // Predicated region
    $region14: #{tpu_custom_call.1} parent=1 // pred_check
      _
    $region15: #{tpu_custom_call.1} parent=1 // pred_check_branch
      %55 = sbr.rel (0) target = $region17
    $region16: #{tpu_custom_call.1} parent=1 // pred_region
      %s57 = ssub.s32 18432, 18432
      %58 = vsyncadd [#allocation9], %s57
      %s59 = sshll.u32 [#allocation8], 4
      %s60 = int_to_ptr.vmem [resolvable:$true] %s59
      %65 = dma.hbm_to_vmem [thread:$0]  %s3, 18432, %s60, [#allocation9], 384, 384, 24
    $region17: #{tpu_custom_call.1} parent=1 // pred_fallthru
      _
    // Predicated region
    $region18: #{tpu_custom_call.1} parent=1 // pred_check
      _
    $region19: #{tpu_custom_call.1} parent=1 // pred_check_branch
      %67 = sbr.rel (0) target = $region21
    $region20: #{tpu_custom_call.1} parent=1 // pred_region
      %s69 = ssub.s32 48, 48
      %70 = vsyncadd [#allocation9], %s69
      %s72 = sshll.u32 [#allocation10], 4
      %s73 = int_to_ptr.vmem [resolvable:$true] %s72
      %75 = dma.hbm_to_vmem [thread:$0]  %s4, 48, %s73, [#allocation9]
    $region21: #{tpu_custom_call.1} parent=1 // pred_fallthru
      _
    // Predicated region
    $region22: #{tpu_custom_call.1} parent=1 // pred_check
      _
    $region23: #{tpu_custom_call.1} parent=1 // pred_check_branch
      %77 = sbr.rel (0) target = $region25
    $region24: #{tpu_custom_call.1} parent=1 // pred_region
      %s79 = ssub.s32 48, 48
      %80 = vsyncadd [#allocation12], %s79
      %s82 = sshll.u32 [#allocation11], 4
      %s83 = int_to_ptr.vmem [resolvable:$true] %s82
      %85 = dma.hbm_to_vmem [thread:$0]  %s5, 48, %s83, [#allocation12]
    $region25: #{tpu_custom_call.1} parent=1 // pred_fallthru
      _
    // Predicated region
    $region26: #{tpu_custom_call.1} parent=1 // pred_check
      _
    $region27: #{tpu_custom_call.1} parent=1 // pred_check_branch
      %87 = sbr.rel (0) target = $region29
    $region28: #{tpu_custom_call.1} parent=1 // pred_region
      %s89 = ssub.s32 48, 48
      %90 = vsyncadd [#allocation12], %s89
      %s92 = sshll.u32 [#allocation13], 4
      %s93 = int_to_ptr.vmem [resolvable:$true] %s92
      %95 = dma.hbm_to_vmem [thread:$0]  %s6, 48, %s93, [#allocation12]
    $region29: #{tpu_custom_call.1} parent=1 // pred_fallthru
      _
    // Predicated region
    $region30: #{tpu_custom_call.1} parent=1 // pred_check
      _
    $region31: #{tpu_custom_call.1} parent=1 // pred_check_branch
      %97 = sbr.rel (0) target = $region33
    $region32: #{tpu_custom_call.1} parent=1 // pred_region
      %s99 = ssub.s32 24576, 24576
      %100 = vsyncadd [#allocation15], %s99
      %s101 = sshll.u32 [#allocation14], 4
      %s102 = int_to_ptr.vmem [resolvable:$true] %s101
      %107 = dma.hbm_to_vmem [thread:$0]  %s7, 24576, %s102, [#allocation15], 512, 512, 32
    $region33: #{tpu_custom_call.1} parent=1 // pred_fallthru
      _
    // Predicated region
    $region34: #{tpu_custom_call.1} parent=1 // pred_check
      _
    $region35: #{tpu_custom_call.1} parent=1 // pred_check_branch
      %109 = sbr.rel (0) target = $region37
    $region36: #{tpu_custom_call.1} parent=1 // pred_region
      _
    $region37: #{tpu_custom_call.1} parent=1 // pred_fallthru
      _
    // Predicated region
    $region38: #{tpu_custom_call.1} parent=1 // pred_check
      _
    $region39: #{tpu_custom_call.1} parent=1 // pred_check_branch
      %111 = sbr.rel (0) target = $region41
    $region40: #{tpu_custom_call.1} parent=1 // pred_region
      %s113 = ssub.s32 24576, 24576
      %114 = vsyncadd [#allocation15], %s113
      %s115 = sshll.u32 [#allocation16], 4
      %s116 = int_to_ptr.vmem [resolvable:$true] %s115
      %121 = dma.hbm_to_vmem [thread:$0]  %s9, 24576, %s116, [#allocation15], 128, 128, 8
    $region41: #{tpu_custom_call.1} parent=1 // pred_fallthru
      _
    // Predicated region
    $region42: #{tpu_custom_call.1} parent=1 // pred_check
      _
    $region43: #{tpu_custom_call.1} parent=1 // pred_check_branch
      %123 = sbr.rel (0) target = $region45
    $region44: #{tpu_custom_call.1} parent=1 // pred_region
      _
    $region45: #{tpu_custom_call.1} parent=1 // pred_fallthru
      _
    // Predicated region
    $region46: #{tpu_custom_call.1} parent=1 // pred_check
      _
    $region47: #{tpu_custom_call.1} parent=1 // pred_check_branch
      %125 = sbr.rel (0) target = $region49
    $region48: #{tpu_custom_call.1} parent=1 // pred_region
      %126 = dma.done [#allocation3], 768
    $region49: #{tpu_custom_call.1} parent=1 // pred_fallthru
      _
    // Predicated region
    $region50: #{tpu_custom_call.1} parent=1 // pred_check
      _
    $region51: #{tpu_custom_call.1} parent=1 // pred_check_branch
      %128 = sbr.rel (0) target = $region53
    $region52: #{tpu_custom_call.1} parent=1 // pred_region
      %129 = dma.done [#allocation6], 48
    $region53: #{tpu_custom_call.1} parent=1 // pred_fallthru
      _
    // Predicated region
    $region54: #{tpu_custom_call.1} parent=1 // pred_check
      _
    $region55: #{tpu_custom_call.1} parent=1 // pred_check_branch
      %131 = sbr.rel (0) target = $region57
    $region56: #{tpu_custom_call.1} parent=1 // pred_region
      %132 = dma.done [#allocation6], 48
    $region57: #{tpu_custom_call.1} parent=1 // pred_fallthru
      _
    // Predicated region
    $region58: #{tpu_custom_call.1} parent=1 // pred_check
      _
    $region59: #{tpu_custom_call.1} parent=1 // pred_check_branch
      %134 = sbr.rel (0) target = $region61
    $region60: #{tpu_custom_call.1} parent=1 // pred_region
      %135 = dma.done [#allocation9], 18432
    $region61: #{tpu_custom_call.1} parent=1 // pred_fallthru
      _
    // Predicated region
    $region62: #{tpu_custom_call.1} parent=1 // pred_check
      _
    $region63: #{tpu_custom_call.1} parent=1 // pred_check_branch
      %137 = sbr.rel (0) target = $region65
    $region64: #{tpu_custom_call.1} parent=1 // pred_region
      %138 = dma.done [#allocation9], 48
    $region65: #{tpu_custom_call.1} parent=1 // pred_fallthru
      _
    // Predicated region
    $region66: #{tpu_custom_call.1} parent=1 // pred_check
      _
    $region67: #{tpu_custom_call.1} parent=1 // pred_check_branch
      %140 = sbr.rel (0) target = $region69
    $region68: #{tpu_custom_call.1} parent=1 // pred_region
      %141 = dma.done [#allocation12], 48
    $region69: #{tpu_custom_call.1} parent=1 // pred_fallthru
      _
    // Predicated region
    $region70: #{tpu_custom_call.1} parent=1 // pred_check
      _
    $region71: #{tpu_custom_call.1} parent=1 // pred_check_branch
      %143 = sbr.rel (0) target = $region73
    $region72: #{tpu_custom_call.1} parent=1 // pred_region
      %144 = dma.done [#allocation12], 48
    $region73: #{tpu_custom_call.1} parent=1 // pred_fallthru
      _
    // Predicated region
    $region74: #{tpu_custom_call.1} parent=1 // pred_check
      _
    $region75: #{tpu_custom_call.1} parent=1 // pred_check_branch
      %146 = sbr.rel (0) target = $region77
    $region76: #{tpu_custom_call.1} parent=1 // pred_region
      %147 = dma.done [#allocation15], 24576
    $region77: #{tpu_custom_call.1} parent=1 // pred_fallthru
      _
    // Predicated region
    $region78: #{tpu_custom_call.1} parent=1 // pred_check
      _
    $region79: #{tpu_custom_call.1} parent=1 // pred_check_branch
      %149 = sbr.rel (0) target = $region81
    $region80: #{tpu_custom_call.1} parent=1 // pred_region
      %150 = dma.done [#allocation15], 24576
    $region81: #{tpu_custom_call.1} parent=1 // pred_fallthru
      _
    %v151 = vld [vmem:[#allocation2] sm:$0xff]
    %v152 = vld [vmem:[#allocation2 + $0x8] sm:$0xff]
    %v153 = vld [vmem:[#allocation2 + $0x10] sm:$0xff]
    %v154 = vld [vmem:[#allocation2 + $0x18] sm:$0xff]
    %v155 = vld [vmem:[#allocation2 + $0x20] sm:$0xff]
    %v156 = vld [vmem:[#allocation2 + $0x28] sm:$0xff]
    %v157 = vld [vmem:[#allocation5] sm:$0x7]
    %v158 = vld [vmem:[#allocation7] sm:$0x7]
    %159 = vadd.xlane.f32.xlu0 %v151
    %v160 = vpop.xlane.xlu0 %159
    %161 = vadd.xlane.f32.xlu0 %v154
    %v162 = vpop.xlane.xlu0 %161
    %v163 = vrcp.pop 128.0
    %v164 = vmul.f32 %v160, %v163
    %v165 = vmul.f32 %v162, %v163
    %v166 = vsub.f32 %v151, %v164
    %v167 = vsub.f32 %v154, %v165
    %v168 = vmul.f32 %v166, %v166
    %v169 = vmul.f32 %v167, %v167
    %170 = vadd.xlane.f32.xlu0 %v168
    %v171 = vpop.xlane.xlu0 %170
    %172 = vadd.xlane.f32.xlu0 %v169
    %v173 = vpop.xlane.xlu0 %172
    %v174 = vmul.f32 %v171, %v163
    %v175 = vmul.f32 %v173, %v163
    %v176 = vadd.f32 %v174, 1e-06
    %v177 = vadd.f32 %v175, 1e-06
    %v178 = vrsqrt.pop %v176
    %v179 = vrsqrt.pop %v177
    %v180 = vmul.f32 %v166, %v178
    %v181 = vmul.f32 %v167, %v179
    %182 = vadd.xlane.f32.xlu0 %v152
    %v183 = vpop.xlane.xlu0 %182
    %184 = vadd.xlane.f32.xlu0 %v155
    %v185 = vpop.xlane.xlu0 %184
    %v186 = vmul.f32 %v183, %v163
    %v187 = vmul.f32 %v185, %v163
    %v188 = vsub.f32 %v152, %v186
    %v189 = vsub.f32 %v155, %v187
    %v190 = vmul.f32 %v188, %v188
    %v191 = vmul.f32 %v189, %v189
    %192 = vadd.xlane.f32.xlu0 %v190
    %v193 = vpop.xlane.xlu0 %192
    %194 = vadd.xlane.f32.xlu0 %v191
    %v195 = vpop.xlane.xlu0 %194
    %v196 = vmul.f32 %v193, %v163
    %v197 = vmul.f32 %v195, %v163
    %v198 = vadd.f32 %v196, 1e-06
    %v199 = vadd.f32 %v197, 1e-06
    %v200 = vrsqrt.pop %v198
    %v201 = vrsqrt.pop %v199
    %v202 = vmul.f32 %v188, %v200
    %v203 = vmul.f32 %v189, %v201
    %204 = vadd.xlane.f32.xlu0 %v153
    %v205 = vpop.xlane.xlu0 %204
    %206 = vadd.xlane.f32.xlu0 %v156
    %v207 = vpop.xlane.xlu0 %206
    %v208 = vmul.f32 %v205, %v163
    %v209 = vmul.f32 %v207, %v163
    %v210 = vsub.f32 %v153, %v208
    %v211 = vsub.f32 %v156, %v209
    %v212 = vmul.f32 %v210, %v210
    %v213 = vmul.f32 %v211, %v211
    %214 = vadd.xlane.f32.xlu0 %v212
    %v215 = vpop.xlane.xlu0 %214
    %216 = vadd.xlane.f32.xlu0 %v213
    %v217 = vpop.xlane.xlu0 %216
    %v218 = vmul.f32 %v215, %v163
    %v219 = vmul.f32 %v217, %v163
    %v220 = vadd.f32 %v218, 1e-06
    %v221 = vadd.f32 %v219, 1e-06
    %v222 = vrsqrt.pop %v220
    %v223 = vrsqrt.pop %v221
    %v224 = vmul.f32 %v210, %v222
    %v225 = vmul.f32 %v211, %v223
    %v227 = vlaneseq
    %v228 = vshrl.u32 %v227, 7
    %v229 = vsub.s32 0, %v228
    %v230 = vrot.slane %v157, %v229
    %v231 = vlaneseq
    %v232 = vshrl.u32 %v231, 7
    %v233 = vsub.s32 1, %v232
    %v234 = vrot.slane %v157, %v233
    %v235 = vlaneseq
    %v236 = vshrl.u32 %v235, 7
    %v237 = vsub.s32 2, %v236
    %v238 = vrot.slane %v157, %v237
    %v242 = vmul.f32 %v180, %v230
    %v243 = vmul.f32 %v202, %v234
    %v244 = vmul.f32 %v224, %v238
    %v245 = vmul.f32 %v181, %v230
    %v246 = vmul.f32 %v203, %v234
    %v247 = vmul.f32 %v225, %v238
    %v249 = vlaneseq
    %v250 = vshrl.u32 %v249, 7
    %v251 = vsub.s32 0, %v250
    %v252 = vrot.slane %v158, %v251
    %v253 = vlaneseq
    %v254 = vshrl.u32 %v253, 7
    %v255 = vsub.s32 1, %v254
    %v256 = vrot.slane %v158, %v255
    %v257 = vlaneseq
    %v258 = vshrl.u32 %v257, 7
    %v259 = vsub.s32 2, %v258
    %v260 = vrot.slane %v158, %v259
    %v264 = vadd.f32 %v242, %v252
    %v265 = vadd.f32 %v243, %v256
    %v266 = vadd.f32 %v244, %v260
    %v267 = vadd.f32 %v245, %v252
    %v268 = vadd.f32 %v246, %v256
    %v269 = vadd.f32 %v247, %v260
    %v270 = vld [vmem:[#allocation8] sm:$0xff]
    %v271 = vld [vmem:[#allocation8 + $0x8] sm:$0xff]
    %v272 = vld [vmem:[#allocation8 + $0x10] sm:$0xff]
    %v273 = vld [vmem:[#allocation8 + $0x18] sm:$0xff]
    %v274 = vld [vmem:[#allocation8 + $0x20] sm:$0xff]
    %v275 = vld [vmem:[#allocation8 + $0x28] sm:$0xff]
    %v276 = vld [vmem:[#allocation8 + $0x30] sm:$0xff]
    %v277 = vld [vmem:[#allocation8 + $0x38] sm:$0xff]
    %v278 = vld [vmem:[#allocation8 + $0x40] sm:$0xff]
    %v279 = vld [vmem:[#allocation8 + $0x48] sm:$0xff]
    %v280 = vld [vmem:[#allocation8 + $0x50] sm:$0xff]
    %v281 = vld [vmem:[#allocation8 + $0x58] sm:$0xff]
    %v282 = vld [vmem:[#allocation8 + $0x60] sm:$0xff]
    %v283 = vld [vmem:[#allocation8 + $0x68] sm:$0xff]
    %v284 = vld [vmem:[#allocation8 + $0x70] sm:$0xff]
    %v285 = vld [vmem:[#allocation8 + $0x78] sm:$0xff]
    %v286 = vld [vmem:[#allocation8 + $0x80] sm:$0xff]
    %v287 = vld [vmem:[#allocation8 + $0x88] sm:$0xff]
    %v288 = vld [vmem:[#allocation8 + $0x90] sm:$0xff]
    %v289 = vld [vmem:[#allocation8 + $0x98] sm:$0xff]
    %v290 = vld [vmem:[#allocation8 + $0xa0] sm:$0xff]
    %v291 = vld [vmem:[#allocation8 + $0xa8] sm:$0xff]
    %v292 = vld [vmem:[#allocation8 + $0xb0] sm:$0xff]
    %v293 = vld [vmem:[#allocation8 + $0xb8] sm:$0xff]
    %v294 = vld [vmem:[#allocation8 + $0xc0] sm:$0xff]
    %v295 = vld [vmem:[#allocation8 + $0xc8] sm:$0xff]
    %v296 = vld [vmem:[#allocation8 + $0xd0] sm:$0xff]
    %v297 = vld [vmem:[#allocation8 + $0xd8] sm:$0xff]
    %v298 = vld [vmem:[#allocation8 + $0xe0] sm:$0xff]
    %v299 = vld [vmem:[#allocation8 + $0xe8] sm:$0xff]
    %v300 = vld [vmem:[#allocation8 + $0xf0] sm:$0xff]
    %v301 = vld [vmem:[#allocation8 + $0xf8] sm:$0xff]
    %v302 = vld [vmem:[#allocation8 + $0x100] sm:$0xff]
    %v303 = vld [vmem:[#allocation8 + $0x108] sm:$0xff]
    %v304 = vld [vmem:[#allocation8 + $0x110] sm:$0xff]
    %v305 = vld [vmem:[#allocation8 + $0x118] sm:$0xff]
    %v306 = vld [vmem:[#allocation8 + $0x120] sm:$0xff]
    %v307 = vld [vmem:[#allocation8 + $0x128] sm:$0xff]
    %v308 = vld [vmem:[#allocation8 + $0x130] sm:$0xff]
    %v309 = vld [vmem:[#allocation8 + $0x138] sm:$0xff]
    %v310 = vld [vmem:[#allocation8 + $0x140] sm:$0xff]
    %v311 = vld [vmem:[#allocation8 + $0x148] sm:$0xff]
    %v312 = vld [vmem:[#allocation8 + $0x150] sm:$0xff]
    %v313 = vld [vmem:[#allocation8 + $0x158] sm:$0xff]
    %v314 = vld [vmem:[#allocation8 + $0x160] sm:$0xff]
    %v315 = vld [vmem:[#allocation8 + $0x168] sm:$0xff]
    %v316 = vld [vmem:[#allocation8 + $0x170] sm:$0xff]
    %v317 = vld [vmem:[#allocation8 + $0x178] sm:$0xff]
    %v318 = vld [vmem:[#allocation8 + $0x180] sm:$0xff]
    %v319 = vld [vmem:[#allocation8 + $0x188] sm:$0xff]
    %v320 = vld [vmem:[#allocation8 + $0x190] sm:$0xff]
    %v321 = vld [vmem:[#allocation8 + $0x198] sm:$0xff]
    %v322 = vld [vmem:[#allocation8 + $0x1a0] sm:$0xff]
    %v323 = vld [vmem:[#allocation8 + $0x1a8] sm:$0xff]
    %v324 = vld [vmem:[#allocation8 + $0x1b0] sm:$0xff]
    %v325 = vld [vmem:[#allocation8 + $0x1b8] sm:$0xff]
    %v326 = vld [vmem:[#allocation8 + $0x1c0] sm:$0xff]
    %v327 = vld [vmem:[#allocation8 + $0x1c8] sm:$0xff]
    %v328 = vld [vmem:[#allocation8 + $0x1d0] sm:$0xff]
    %v329 = vld [vmem:[#allocation8 + $0x1d8] sm:$0xff]
    %v330 = vld [vmem:[#allocation8 + $0x1e0] sm:$0xff]
    %v331 = vld [vmem:[#allocation8 + $0x1e8] sm:$0xff]
    %v332 = vld [vmem:[#allocation8 + $0x1f0] sm:$0xff]
    %v333 = vld [vmem:[#allocation8 + $0x1f8] sm:$0xff]
    %v334 = vld [vmem:[#allocation8 + $0x200] sm:$0xff]
    %v335 = vld [vmem:[#allocation8 + $0x208] sm:$0xff]
    %v336 = vld [vmem:[#allocation8 + $0x210] sm:$0xff]
    %v337 = vld [vmem:[#allocation8 + $0x218] sm:$0xff]
    %v338 = vld [vmem:[#allocation8 + $0x220] sm:$0xff]
    %v339 = vld [vmem:[#allocation8 + $0x228] sm:$0xff]
    %v340 = vld [vmem:[#allocation8 + $0x230] sm:$0xff]
    %v341 = vld [vmem:[#allocation8 + $0x238] sm:$0xff]
    %v342 = vld [vmem:[#allocation8 + $0x240] sm:$0xff]
    %v343 = vld [vmem:[#allocation8 + $0x248] sm:$0xff]
    %v344 = vld [vmem:[#allocation8 + $0x250] sm:$0xff]
    %v345 = vld [vmem:[#allocation8 + $0x258] sm:$0xff]
    %v346 = vld [vmem:[#allocation8 + $0x260] sm:$0xff]
    %v347 = vld [vmem:[#allocation8 + $0x268] sm:$0xff]
    %v348 = vld [vmem:[#allocation8 + $0x270] sm:$0xff]
    %v349 = vld [vmem:[#allocation8 + $0x278] sm:$0xff]
    %v350 = vld [vmem:[#allocation8 + $0x280] sm:$0xff]
    %v351 = vld [vmem:[#allocation8 + $0x288] sm:$0xff]
    %v352 = vld [vmem:[#allocation8 + $0x290] sm:$0xff]
    %v353 = vld [vmem:[#allocation8 + $0x298] sm:$0xff]
    %v354 = vld [vmem:[#allocation8 + $0x2a0] sm:$0xff]
    %v355 = vld [vmem:[#allocation8 + $0x2a8] sm:$0xff]
    %v356 = vld [vmem:[#allocation8 + $0x2b0] sm:$0xff]
    %v357 = vld [vmem:[#allocation8 + $0x2b8] sm:$0xff]
    %v358 = vld [vmem:[#allocation8 + $0x2c0] sm:$0xff]
    %v359 = vld [vmem:[#allocation8 + $0x2c8] sm:$0xff]
    %v360 = vld [vmem:[#allocation8 + $0x2d0] sm:$0xff]
    %v361 = vld [vmem:[#allocation8 + $0x2d8] sm:$0xff]
    %v362 = vld [vmem:[#allocation8 + $0x2e0] sm:$0xff]
    %v363 = vld [vmem:[#allocation8 + $0x2e8] sm:$0xff]
    %v364 = vld [vmem:[#allocation8 + $0x2f0] sm:$0xff]
    %v365 = vld [vmem:[#allocation8 + $0x2f8] sm:$0xff]
    %v366 = vld [vmem:[#allocation8 + $0x300] sm:$0xff]
    %v367 = vld [vmem:[#allocation8 + $0x308] sm:$0xff]
    %v368 = vld [vmem:[#allocation8 + $0x310] sm:$0xff]
    %v369 = vld [vmem:[#allocation8 + $0x318] sm:$0xff]
    %v370 = vld [vmem:[#allocation8 + $0x320] sm:$0xff]
    %v371 = vld [vmem:[#allocation8 + $0x328] sm:$0xff]
    %v372 = vld [vmem:[#allocation8 + $0x330] sm:$0xff]
    %v373 = vld [vmem:[#allocation8 + $0x338] sm:$0xff]
    %v374 = vld [vmem:[#allocation8 + $0x340] sm:$0xff]
    %v375 = vld [vmem:[#allocation8 + $0x348] sm:$0xff]
    %v376 = vld [vmem:[#allocation8 + $0x350] sm:$0xff]
    %v377 = vld [vmem:[#allocation8 + $0x358] sm:$0xff]
    %v378 = vld [vmem:[#allocation8 + $0x360] sm:$0xff]
    %v379 = vld [vmem:[#allocation8 + $0x368] sm:$0xff]
    %v380 = vld [vmem:[#allocation8 + $0x370] sm:$0xff]
    %v381 = vld [vmem:[#allocation8 + $0x378] sm:$0xff]
    %v382 = vld [vmem:[#allocation8 + $0x380] sm:$0xff]
    %v383 = vld [vmem:[#allocation8 + $0x388] sm:$0xff]
    %v384 = vld [vmem:[#allocation8 + $0x390] sm:$0xff]
    %v385 = vld [vmem:[#allocation8 + $0x398] sm:$0xff]
    %v386 = vld [vmem:[#allocation8 + $0x3a0] sm:$0xff]
    %v387 = vld [vmem:[#allocation8 + $0x3a8] sm:$0xff]
    %v388 = vld [vmem:[#allocation8 + $0x3b0] sm:$0xff]
    %v389 = vld [vmem:[#allocation8 + $0x3b8] sm:$0xff]
    %v390 = vld [vmem:[#allocation8 + $0x3c0] sm:$0xff]
    %v391 = vld [vmem:[#allocation8 + $0x3c8] sm:$0xff]
    %v392 = vld [vmem:[#allocation8 + $0x3d0] sm:$0xff]
    %v393 = vld [vmem:[#allocation8 + $0x3d8] sm:$0xff]
    %v394 = vld [vmem:[#allocation8 + $0x3e0] sm:$0xff]
    %v395 = vld [vmem:[#allocation8 + $0x3e8] sm:$0xff]
    %v396 = vld [vmem:[#allocation8 + $0x3f0] sm:$0xff]
    %v397 = vld [vmem:[#allocation8 + $0x3f8] sm:$0xff]
    %v398 = vld [vmem:[#allocation8 + $0x400] sm:$0xff]
    %v399 = vld [vmem:[#allocation8 + $0x408] sm:$0xff]
    %v400 = vld [vmem:[#allocation8 + $0x410] sm:$0xff]
    %v401 = vld [vmem:[#allocation8 + $0x418] sm:$0xff]
    %v402 = vld [vmem:[#allocation8 + $0x420] sm:$0xff]
    %v403 = vld [vmem:[#allocation8 + $0x428] sm:$0xff]
    %v404 = vld [vmem:[#allocation8 + $0x430] sm:$0xff]
    %v405 = vld [vmem:[#allocation8 + $0x438] sm:$0xff]
    %v406 = vld [vmem:[#allocation8 + $0x440] sm:$0xff]
    %v407 = vld [vmem:[#allocation8 + $0x448] sm:$0xff]
    %v408 = vld [vmem:[#allocation8 + $0x450] sm:$0xff]
    %v409 = vld [vmem:[#allocation8 + $0x458] sm:$0xff]
    %v410 = vld [vmem:[#allocation8 + $0x460] sm:$0xff]
    %v411 = vld [vmem:[#allocation8 + $0x468] sm:$0xff]
    %v412 = vld [vmem:[#allocation8 + $0x470] sm:$0xff]
    %v413 = vld [vmem:[#allocation8 + $0x478] sm:$0xff]
    %414 = vmatprep.subr.mxu0 %v316
    %415 = vmatpush1.msra.mxu0 %v315
    %416 = vmatprep.subr.mxu0 %v313
    %417 = vmatpush1.msra.mxu0 %v312
    %418 = vmatprep.subr.mxu0 %v310
    %419 = vmatpush1.msra.mxu0 %v309
    %420 = vmatprep.subr.mxu0 %v307
    %421 = vmatpush1.msra.mxu0 %v306
    %422 = vmatprep.subr.mxu0 %v304
    %423 = vmatpush1.msra.mxu0 %v303
    %424 = vmatprep.subr.mxu0 %v301
    %425 = vmatpush1.msra.mxu0 %v300
    %426 = vmatprep.subr.mxu0 %v298
    %427 = vmatpush1.msra.mxu0 %v297
    %428 = vmatprep.subr.mxu0 %v295
    %429 = vmatpush1.msra.mxu0 %v294
    %430 = vmatprep.subr.mxu0 %v292
    %431 = vmatpush1.msra.mxu0 %v291
    %432 = vmatprep.subr.mxu0 %v289
    %433 = vmatpush1.msra.mxu0 %v288
    %434 = vmatprep.subr.mxu0 %v286
    %435 = vmatpush1.msra.mxu0 %v285
    %436 = vmatprep.subr.mxu0 %v283
    %437 = vmatpush1.msra.mxu0 %v282
    %438 = vmatprep.subr.mxu0 %v280
    %439 = vmatpush1.msra.mxu0 %v279
    %440 = vmatprep.subr.mxu0 %v277
    %441 = vmatpush1.msra.mxu0 %v276
    %442 = vmatprep.subr.mxu0 %v274
    %443 = vmatpush1.msra.mxu0 %v273
    %444 = vmatprep.subr.mxu0 %v271
    %445 = vmatpush1.msra.mxu0 %v270
    %446 = vmatprep.subr.mxu0 %v364
    %447 = vmatpush2.msra.mxu0 %v363
    %448 = vmatprep.subr.mxu0 %v361
    %449 = vmatpush2.msra.mxu0 %v360
    %450 = vmatprep.subr.mxu0 %v358
    %451 = vmatpush2.msra.mxu0 %v357
    %452 = vmatprep.subr.mxu0 %v355
    %453 = vmatpush2.msra.mxu0 %v354
    %454 = vmatprep.subr.mxu0 %v352
    %455 = vmatpush2.msra.mxu0 %v351
    %456 = vmatprep.subr.mxu0 %v349
    %457 = vmatpush2.msra.mxu0 %v348
    %458 = vmatprep.subr.mxu0 %v346
    %459 = vmatpush2.msra.mxu0 %v345
    %460 = vmatprep.subr.mxu0 %v343
    %461 = vmatpush2.msra.mxu0 %v342
    %462 = vmatprep.subr.mxu0 %v340
    %463 = vmatpush2.msra.mxu0 %v339
    %464 = vmatprep.subr.mxu0 %v337
    %465 = vmatpush2.msra.mxu0 %v336
    %466 = vmatprep.subr.mxu0 %v334
    %467 = vmatpush2.msra.mxu0 %v333
    %468 = vmatprep.subr.mxu0 %v331
    %469 = vmatpush2.msra.mxu0 %v330
    %470 = vmatprep.subr.mxu0 %v328
    %471 = vmatpush2.msra.mxu0 %v327
    %472 = vmatprep.subr.mxu0 %v325
    %473 = vmatpush2.msra.mxu0 %v324
    %474 = vmatprep.subr.mxu0 %v322
    %475 = vmatpush2.msra.mxu0 %v321
    %476 = vmatprep.subr.mxu0 %v319
    %477 = vmatpush2.msra.mxu0 %v318
    %478 = vmatprep.mubr.f32.mxu0 %v265
    %479 = vmatmul.mubr.f32.gmra.mxu0 %v264
    %v480 = vpop.f32.mrf.mxu0
    %v481 = vadd.f32 0.0, %v480
    %v482 = vpop.f32.mrf.mxu0
    %v483 = vadd.f32 0.0, %v482
    %484 = vmatprep.mubr.f32.mxu0 %v268
    %485 = vmatmul.mubr.f32.gmra.mxu0 %v267
    %v486 = vpop.f32.mrf.mxu0
    %v487 = vadd.f32 0.0, %v486
    %v488 = vpop.f32.mrf.mxu0
    %v489 = vadd.f32 0.0, %v488
    %490 = vdwg.mxu0
    %491 = vmatprep.subr.mxu0 %v412
    %492 = vmatpush1.msra.mxu0 %v411
    %493 = vmatprep.subr.mxu0 %v409
    %494 = vmatpush1.msra.mxu0 %v408
    %495 = vmatprep.subr.mxu0 %v406
    %496 = vmatpush1.msra.mxu0 %v405
    %497 = vmatprep.subr.mxu0 %v403
    %498 = vmatpush1.msra.mxu0 %v402
    %499 = vmatprep.subr.mxu0 %v400
    %500 = vmatpush1.msra.mxu0 %v399
    %501 = vmatprep.subr.mxu0 %v397
    %502 = vmatpush1.msra.mxu0 %v396
    %503 = vmatprep.subr.mxu0 %v394
    %504 = vmatpush1.msra.mxu0 %v393
    %505 = vmatprep.subr.mxu0 %v391
    %506 = vmatpush1.msra.mxu0 %v390
    %507 = vmatprep.subr.mxu0 %v388
    %508 = vmatpush1.msra.mxu0 %v387
    %509 = vmatprep.subr.mxu0 %v385
    %510 = vmatpush1.msra.mxu0 %v384
    %511 = vmatprep.subr.mxu0 %v382
    %512 = vmatpush1.msra.mxu0 %v381
    %513 = vmatprep.subr.mxu0 %v379
    %514 = vmatpush1.msra.mxu0 %v378
    %515 = vmatprep.subr.mxu0 %v376
    %516 = vmatpush1.msra.mxu0 %v375
    %517 = vmatprep.subr.mxu0 %v373
    %518 = vmatpush1.msra.mxu0 %v372
    %519 = vmatprep.subr.mxu0 %v370
    %520 = vmatpush1.msra.mxu0 %v369
    %521 = vmatprep.subr.mxu0 %v367
    %522 = vmatpush1.msra.mxu0 %v366
    %523 = vmatprep.subr.mxu0 0.0
    %524 = vmatpush2.msra.mxu0 0.0
    %525 = vmatprep.subr.mxu0 0.0
    %526 = vmatpush2.msra.mxu0 0.0
    %527 = vmatprep.subr.mxu0 0.0
    %528 = vmatpush2.msra.mxu0 0.0
    %529 = vmatprep.subr.mxu0 0.0
    %530 = vmatpush2.msra.mxu0 0.0
    %531 = vmatprep.subr.mxu0 0.0
    %532 = vmatpush2.msra.mxu0 0.0
    %533 = vmatprep.subr.mxu0 0.0
    %534 = vmatpush2.msra.mxu0 0.0
    %535 = vmatprep.subr.mxu0 0.0
    %536 = vmatpush2.msra.mxu0 0.0
    %537 = vmatprep.subr.mxu0 0.0
    %538 = vmatpush2.msra.mxu0 0.0
    %539 = vmatprep.subr.mxu0 0.0
    %540 = vmatpush2.msra.mxu0 0.0
    %541 = vmatprep.subr.mxu0 0.0
    %542 = vmatpush2.msra.mxu0 0.0
    %543 = vmatprep.subr.mxu0 0.0
    %544 = vmatpush2.msra.mxu0 0.0
    %545 = vmatprep.subr.mxu0 0.0
    %546 = vmatpush2.msra.mxu0 0.0
    %547 = vmatprep.subr.mxu0 0.0
    %548 = vmatpush2.msra.mxu0 0.0
    %549 = vmatprep.subr.mxu0 0.0
    %550 = vmatpush2.msra.mxu0 0.0
    %551 = vmatprep.subr.mxu0 0.0
    %552 = vmatpush2.msra.mxu0 0.0
    %553 = vmatprep.subr.mxu0 0.0
    %554 = vmatpush2.msra.mxu0 0.0
    %555 = vmatprep.mubr.f32.mxu0 0.0
    %556 = vmatmul.mubr.f32.gmra.mxu0 %v266
    %v557 = vpop.f32.mrf.mxu0
    %v558 = vadd.f32 %v481, %v557
    %v559 = vpop.f32.mrf.mxu0
    %v560 = vadd.f32 %v483, %v559
    %561 = vmatprep.mubr.f32.mxu0 0.0
    %562 = vmatmul.mubr.f32.gmra.mxu0 %v269
    %v563 = vpop.f32.mrf.mxu0
    %v564 = vadd.f32 %v487, %v563
    %v565 = vpop.f32.mrf.mxu0
    %v566 = vadd.f32 %v489, %v565
    %567 = vdwg.mxu0
    %568 = vmatprep.subr.mxu0 0.0
    %569 = vmatpush1.msra.mxu0 %v317
    %570 = vmatprep.subr.mxu0 0.0
    %571 = vmatpush1.msra.mxu0 %v314
    %572 = vmatprep.subr.mxu0 0.0
    %573 = vmatpush1.msra.mxu0 %v311
    %574 = vmatprep.subr.mxu0 0.0
    %575 = vmatpush1.msra.mxu0 %v308
    %576 = vmatprep.subr.mxu0 0.0
    %577 = vmatpush1.msra.mxu0 %v305
    %578 = vmatprep.subr.mxu0 0.0
    %579 = vmatpush1.msra.mxu0 %v302
    %580 = vmatprep.subr.mxu0 0.0
    %581 = vmatpush1.msra.mxu0 %v299
    %582 = vmatprep.subr.mxu0 0.0
    %583 = vmatpush1.msra.mxu0 %v296
    %584 = vmatprep.subr.mxu0 0.0
    %585 = vmatpush1.msra.mxu0 %v293
    %586 = vmatprep.subr.mxu0 0.0
    %587 = vmatpush1.msra.mxu0 %v290
    %588 = vmatprep.subr.mxu0 0.0
    %589 = vmatpush1.msra.mxu0 %v287
    %590 = vmatprep.subr.mxu0 0.0
    %591 = vmatpush1.msra.mxu0 %v284
    %592 = vmatprep.subr.mxu0 0.0
    %593 = vmatpush1.msra.mxu0 %v281
    %594 = vmatprep.subr.mxu0 0.0
    %595 = vmatpush1.msra.mxu0 %v278
    %596 = vmatprep.subr.mxu0 0.0
    %597 = vmatpush1.msra.mxu0 %v275
    %598 = vmatprep.subr.mxu0 0.0
    %599 = vmatpush1.msra.mxu0 %v272
    %600 = vmatprep.subr.mxu0 0.0
    %601 = vmatpush2.msra.mxu0 %v365
    %602 = vmatprep.subr.mxu0 0.0
    %603 = vmatpush2.msra.mxu0 %v362
    %604 = vmatprep.subr.mxu0 0.0
    %605 = vmatpush2.msra.mxu0 %v359
    %606 = vmatprep.subr.mxu0 0.0
    %607 = vmatpush2.msra.mxu0 %v356
    %608 = vmatprep.subr.mxu0 0.0
    %609 = vmatpush2.msra.mxu0 %v353
    %610 = vmatprep.subr.mxu0 0.0
    %611 = vmatpush2.msra.mxu0 %v350
    %612 = vmatprep.subr.mxu0 0.0
    %613 = vmatpush2.msra.mxu0 %v347
    %614 = vmatprep.subr.mxu0 0.0
    %615 = vmatpush2.msra.mxu0 %v344
    %616 = vmatprep.subr.mxu0 0.0
    %617 = vmatpush2.msra.mxu0 %v341
    %618 = vmatprep.subr.mxu0 0.0
    %619 = vmatpush2.msra.mxu0 %v338
    %620 = vmatprep.subr.mxu0 0.0
    %621 = vmatpush2.msra.mxu0 %v335
    %622 = vmatprep.subr.mxu0 0.0
    %623 = vmatpush2.msra.mxu0 %v332
    %624 = vmatprep.subr.mxu0 0.0
    %625 = vmatpush2.msra.mxu0 %v329
    %626 = vmatprep.subr.mxu0 0.0
    %627 = vmatpush2.msra.mxu0 %v326
    %628 = vmatprep.subr.mxu0 0.0
    %629 = vmatpush2.msra.mxu0 %v323
    %630 = vmatprep.subr.mxu0 0.0
    %631 = vmatpush2.msra.mxu0 %v320
    %632 = vmatprep.mubr.f32.mxu0 %v265
    %633 = vmatmul.mubr.f32.gmra.mxu0 %v264
    %v634 = vpop.f32.mrf.mxu0
    %v635 = vadd.f32 0.0, %v634
    %v636 = vpop.f32.mrf.mxu0
    %637 = vmatprep.mubr.f32.mxu0 %v268
    %638 = vmatmul.mubr.f32.gmra.mxu0 %v267
    %v639 = vpop.f32.mrf.mxu0
    %v640 = vadd.f32 0.0, %v639
    %v641 = vpop.f32.mrf.mxu0
    %642 = vdwg.mxu0
    %643 = vmatprep.subr.mxu0 0.0
    %644 = vmatpush1.msra.mxu0 %v413
    %645 = vmatprep.subr.mxu0 0.0
    %646 = vmatpush1.msra.mxu0 %v410
    %647 = vmatprep.subr.mxu0 0.0
    %648 = vmatpush1.msra.mxu0 %v407
    %649 = vmatprep.subr.mxu0 0.0
    %650 = vmatpush1.msra.mxu0 %v404
    %651 = vmatprep.subr.mxu0 0.0
    %652 = vmatpush1.msra.mxu0 %v401
    %653 = vmatprep.subr.mxu0 0.0
    %654 = vmatpush1.msra.mxu0 %v398
    %655 = vmatprep.subr.mxu0 0.0
    %656 = vmatpush1.msra.mxu0 %v395
    %657 = vmatprep.subr.mxu0 0.0
    %658 = vmatpush1.msra.mxu0 %v392
    %659 = vmatprep.subr.mxu0 0.0
    %660 = vmatpush1.msra.mxu0 %v389
    %661 = vmatprep.subr.mxu0 0.0
    %662 = vmatpush1.msra.mxu0 %v386
    %663 = vmatprep.subr.mxu0 0.0
    %664 = vmatpush1.msra.mxu0 %v383
    %665 = vmatprep.subr.mxu0 0.0
    %666 = vmatpush1.msra.mxu0 %v380
    %667 = vmatprep.subr.mxu0 0.0
    %668 = vmatpush1.msra.mxu0 %v377
    %669 = vmatprep.subr.mxu0 0.0
    %670 = vmatpush1.msra.mxu0 %v374
    %671 = vmatprep.subr.mxu0 0.0
    %672 = vmatpush1.msra.mxu0 %v371
    %673 = vmatprep.subr.mxu0 0.0
    %674 = vmatpush1.msra.mxu0 %v368
    %675 = vmatprep.subr.mxu0 0.0
    %676 = vmatpush2.msra.mxu0 0.0
    %677 = vmatprep.subr.mxu0 0.0
    %678 = vmatpush2.msra.mxu0 0.0
    %679 = vmatprep.subr.mxu0 0.0
    %680 = vmatpush2.msra.mxu0 0.0
    %681 = vmatprep.subr.mxu0 0.0
    %682 = vmatpush2.msra.mxu0 0.0
    %683 = vmatprep.subr.mxu0 0.0
    %684 = vmatpush2.msra.mxu0 0.0
    %685 = vmatprep.subr.mxu0 0.0
    %686 = vmatpush2.msra.mxu0 0.0
    %687 = vmatprep.subr.mxu0 0.0
    %688 = vmatpush2.msra.mxu0 0.0
    %689 = vmatprep.subr.mxu0 0.0
    %690 = vmatpush2.msra.mxu0 0.0
    %691 = vmatprep.subr.mxu0 0.0
    %692 = vmatpush2.msra.mxu0 0.0
    %693 = vmatprep.subr.mxu0 0.0
    %694 = vmatpush2.msra.mxu0 0.0
    %695 = vmatprep.subr.mxu0 0.0
    %696 = vmatpush2.msra.mxu0 0.0
    %697 = vmatprep.subr.mxu0 0.0
    %698 = vmatpush2.msra.mxu0 0.0
    %699 = vmatprep.subr.mxu0 0.0
    %700 = vmatpush2.msra.mxu0 0.0
    %701 = vmatprep.subr.mxu0 0.0
    %702 = vmatpush2.msra.mxu0 0.0
    %703 = vmatprep.subr.mxu0 0.0
    %704 = vmatpush2.msra.mxu0 0.0
    %705 = vmatprep.subr.mxu0 0.0
    %706 = vmatpush2.msra.mxu0 0.0
    %707 = vmatprep.mubr.f32.mxu0 0.0
    %708 = vmatmul.mubr.f32.gmra.mxu0 %v266
    %v709 = vpop.f32.mrf.mxu0
    %v710 = vadd.f32 %v635, %v709
    %v711 = vpop.f32.mrf.mxu0
    %712 = vmatprep.mubr.f32.mxu0 0.0
    %713 = vmatmul.mubr.f32.gmra.mxu0 %v269
    %v714 = vpop.f32.mrf.mxu0
    %v715 = vadd.f32 %v640, %v714
    %v716 = vpop.f32.mrf.mxu0
    %717 = vdwg.mxu0
    %v718 = vadd.f32 %v151, %v558
    %v719 = vadd.f32 %v152, %v560
    %v720 = vadd.f32 %v153, %v710
    %v721 = vadd.f32 %v154, %v564
    %v722 = vadd.f32 %v155, %v566
    %v723 = vadd.f32 %v156, %v715
    %v724 = vld [vmem:[#allocation10] sm:$0x7]
    %v726 = vlaneseq
    %v727 = vshrl.u32 %v726, 7
    %v728 = vsub.s32 0, %v727
    %v729 = vrot.slane %v724, %v728
    %v730 = vlaneseq
    %v731 = vshrl.u32 %v730, 7
    %v732 = vsub.s32 1, %v731
    %v733 = vrot.slane %v724, %v732
    %v734 = vlaneseq
    %v735 = vshrl.u32 %v734, 7
    %v736 = vsub.s32 2, %v735
    %v737 = vrot.slane %v724, %v736
    %v741 = vadd.f32 %v718, %v729
    %v742 = vadd.f32 %v719, %v733
    %v743 = vadd.f32 %v720, %v737
    %v744 = vadd.f32 %v721, %v729
    %v745 = vadd.f32 %v722, %v733
    %v746 = vadd.f32 %v723, %v737
    %v747 = vld [vmem:[#allocation11] sm:$0x7]
    %v748 = vld [vmem:[#allocation13] sm:$0x7]
    %749 = vadd.xlane.f32.xlu0 %v741
    %v750 = vpop.xlane.xlu0 %749
    %751 = vadd.xlane.f32.xlu0 %v744
    %v752 = vpop.xlane.xlu0 %751
    %v753 = vmul.f32 %v750, %v163
    %v754 = vmul.f32 %v752, %v163
    %v755 = vsub.f32 %v741, %v753
    %v756 = vsub.f32 %v744, %v754
    %v757 = vmul.f32 %v755, %v755
    %v758 = vmul.f32 %v756, %v756
    %759 = vadd.xlane.f32.xlu0 %v757
    %v760 = vpop.xlane.xlu0 %759
    %761 = vadd.xlane.f32.xlu0 %v758
    %v762 = vpop.xlane.xlu0 %761
    %v763 = vmul.f32 %v760, %v163
    %v764 = vmul.f32 %v762, %v163
    %v765 = vadd.f32 %v763, 1e-06
    %v766 = vadd.f32 %v764, 1e-06
    %v767 = vrsqrt.pop %v765
    %v768 = vrsqrt.pop %v766
    %v769 = vmul.f32 %v755, %v767
    %v770 = vmul.f32 %v756, %v768
    %771 = vadd.xlane.f32.xlu0 %v742
    %v772 = vpop.xlane.xlu0 %771
    %773 = vadd.xlane.f32.xlu0 %v745
    %v774 = vpop.xlane.xlu0 %773
    %v775 = vmul.f32 %v772, %v163
    %v776 = vmul.f32 %v774, %v163
    %v777 = vsub.f32 %v742, %v775
    %v778 = vsub.f32 %v745, %v776
    %v779 = vmul.f32 %v777, %v777
    %v780 = vmul.f32 %v778, %v778
    %781 = vadd.xlane.f32.xlu0 %v779
    %v782 = vpop.xlane.xlu0 %781
    %783 = vadd.xlane.f32.xlu0 %v780
    %v784 = vpop.xlane.xlu0 %783
    %v785 = vmul.f32 %v782, %v163
    %v786 = vmul.f32 %v784, %v163
    %v787 = vadd.f32 %v785, 1e-06
    %v788 = vadd.f32 %v786, 1e-06
    %v789 = vrsqrt.pop %v787
    %v790 = vrsqrt.pop %v788
    %v791 = vmul.f32 %v777, %v789
    %v792 = vmul.f32 %v778, %v790
    %793 = vadd.xlane.f32.xlu0 %v743
    %v794 = vpop.xlane.xlu0 %793
    %795 = vadd.xlane.f32.xlu0 %v746
    %v796 = vpop.xlane.xlu0 %795
    %v797 = vmul.f32 %v794, %v163
    %v798 = vmul.f32 %v796, %v163
    %v799 = vsub.f32 %v743, %v797
    %v800 = vsub.f32 %v746, %v798
    %v801 = vmul.f32 %v799, %v799
    %v802 = vmul.f32 %v800, %v800
    %803 = vadd.xlane.f32.xlu0 %v801
    %v804 = vpop.xlane.xlu0 %803
    %805 = vadd.xlane.f32.xlu0 %v802
    %v806 = vpop.xlane.xlu0 %805
    %v807 = vmul.f32 %v804, %v163
    %v808 = vmul.f32 %v806, %v163
    %v809 = vadd.f32 %v807, 1e-06
    %v810 = vadd.f32 %v808, 1e-06
    %v811 = vrsqrt.pop %v809
    %v812 = vrsqrt.pop %v810
    %v813 = vmul.f32 %v799, %v811
    %v814 = vmul.f32 %v800, %v812
    %v816 = vlaneseq
    %v817 = vshrl.u32 %v816, 7
    %v818 = vsub.s32 0, %v817
    %v819 = vrot.slane %v747, %v818
    %v820 = vlaneseq
    %v821 = vshrl.u32 %v820, 7
    %v822 = vsub.s32 1, %v821
    %v823 = vrot.slane %v747, %v822
    %v824 = vlaneseq
    %v825 = vshrl.u32 %v824, 7
    %v826 = vsub.s32 2, %v825
    %v827 = vrot.slane %v747, %v826
    %v831 = vmul.f32 %v769, %v819
    %v832 = vmul.f32 %v791, %v823
    %v833 = vmul.f32 %v813, %v827
    %v834 = vmul.f32 %v770, %v819
    %v835 = vmul.f32 %v792, %v823
    %v836 = vmul.f32 %v814, %v827
    %v838 = vlaneseq
    %v839 = vshrl.u32 %v838, 7
    %v840 = vsub.s32 0, %v839
    %v841 = vrot.slane %v748, %v840
    %v842 = vlaneseq
    %v843 = vshrl.u32 %v842, 7
    %v844 = vsub.s32 1, %v843
    %v845 = vrot.slane %v748, %v844
    %v846 = vlaneseq
    %v847 = vshrl.u32 %v846, 7
    %v848 = vsub.s32 2, %v847
    %v849 = vrot.slane %v748, %v848
    %v853 = vadd.f32 %v831, %v841
    %v854 = vadd.f32 %v832, %v845
    %v855 = vadd.f32 %v833, %v849
    %v856 = vadd.f32 %v834, %v841
    %v857 = vadd.f32 %v835, %v845
    %v858 = vadd.f32 %v836, %v849
    %v859 = vld [vmem:[#allocation14] sm:$0xff]
    %v860 = vld [vmem:[#allocation14 + $0x8] sm:$0xff]
    %v861 = vld [vmem:[#allocation14 + $0x10] sm:$0xff]
    %v862 = vld [vmem:[#allocation14 + $0x18] sm:$0xff]
    %v863 = vld [vmem:[#allocation14 + $0x20] sm:$0xff]
    %v864 = vld [vmem:[#allocation14 + $0x28] sm:$0xff]
    %v865 = vld [vmem:[#allocation14 + $0x30] sm:$0xff]
    %v866 = vld [vmem:[#allocation14 + $0x38] sm:$0xff]
    %v867 = vld [vmem:[#allocation14 + $0x40] sm:$0xff]
    %v868 = vld [vmem:[#allocation14 + $0x48] sm:$0xff]
    %v869 = vld [vmem:[#allocation14 + $0x50] sm:$0xff]
    %v870 = vld [vmem:[#allocation14 + $0x58] sm:$0xff]
    %v871 = vld [vmem:[#allocation14 + $0x60] sm:$0xff]
    %v872 = vld [vmem:[#allocation14 + $0x68] sm:$0xff]
    %v873 = vld [vmem:[#allocation14 + $0x70] sm:$0xff]
    %v874 = vld [vmem:[#allocation14 + $0x78] sm:$0xff]
    %v875 = vld [vmem:[#allocation14 + $0x80] sm:$0xff]
    %v876 = vld [vmem:[#allocation14 + $0x88] sm:$0xff]
    %v877 = vld [vmem:[#allocation14 + $0x90] sm:$0xff]
    %v878 = vld [vmem:[#allocation14 + $0x98] sm:$0xff]
    %v879 = vld [vmem:[#allocation14 + $0xa0] sm:$0xff]
    %v880 = vld [vmem:[#allocation14 + $0xa8] sm:$0xff]
    %v881 = vld [vmem:[#allocation14 + $0xb0] sm:$0xff]
    %v882 = vld [vmem:[#allocation14 + $0xb8] sm:$0xff]
    %v883 = vld [vmem:[#allocation14 + $0xc0] sm:$0xff]
    %v884 = vld [vmem:[#allocation14 + $0xc8] sm:$0xff]
    %v885 = vld [vmem:[#allocation14 + $0xd0] sm:$0xff]
    %v886 = vld [vmem:[#allocation14 + $0xd8] sm:$0xff]
    %v887 = vld [vmem:[#allocation14 + $0xe0] sm:$0xff]
    %v888 = vld [vmem:[#allocation14 + $0xe8] sm:$0xff]
    %v889 = vld [vmem:[#allocation14 + $0xf0] sm:$0xff]
    %v890 = vld [vmem:[#allocation14 + $0xf8] sm:$0xff]
    %v891 = vld [vmem:[#allocation14 + $0x100] sm:$0xff]
    %v892 = vld [vmem:[#allocation14 + $0x108] sm:$0xff]
    %v893 = vld [vmem:[#allocation14 + $0x110] sm:$0xff]
    %v894 = vld [vmem:[#allocation14 + $0x118] sm:$0xff]
    %v895 = vld [vmem:[#allocation14 + $0x120] sm:$0xff]
    %v896 = vld [vmem:[#allocation14 + $0x128] sm:$0xff]
    %v897 = vld [vmem:[#allocation14 + $0x130] sm:$0xff]
    %v898 = vld [vmem:[#allocation14 + $0x138] sm:$0xff]
    %v899 = vld [vmem:[#allocation14 + $0x140] sm:$0xff]
    %v900 = vld [vmem:[#allocation14 + $0x148] sm:$0xff]
    %v901 = vld [vmem:[#allocation14 + $0x150] sm:$0xff]
    %v902 = vld [vmem:[#allocation14 + $0x158] sm:$0xff]
    %v903 = vld [vmem:[#allocation14 + $0x160] sm:$0xff]
    %v904 = vld [vmem:[#allocation14 + $0x168] sm:$0xff]
    %v905 = vld [vmem:[#allocation14 + $0x170] sm:$0xff]
    %v906 = vld [vmem:[#allocation14 + $0x178] sm:$0xff]
    %v907 = vld [vmem:[#allocation14 + $0x180] sm:$0xff]
    %v908 = vld [vmem:[#allocation14 + $0x188] sm:$0xff]
    %v909 = vld [vmem:[#allocation14 + $0x190] sm:$0xff]
    %v910 = vld [vmem:[#allocation14 + $0x198] sm:$0xff]
    %v911 = vld [vmem:[#allocation14 + $0x1a0] sm:$0xff]
    %v912 = vld [vmem:[#allocation14 + $0x1a8] sm:$0xff]
    %v913 = vld [vmem:[#allocation14 + $0x1b0] sm:$0xff]
    %v914 = vld [vmem:[#allocation14 + $0x1b8] sm:$0xff]
    %v915 = vld [vmem:[#allocation14 + $0x1c0] sm:$0xff]
    %v916 = vld [vmem:[#allocation14 + $0x1c8] sm:$0xff]
    %v917 = vld [vmem:[#allocation14 + $0x1d0] sm:$0xff]
    %v918 = vld [vmem:[#allocation14 + $0x1d8] sm:$0xff]
    %v919 = vld [vmem:[#allocation14 + $0x1e0] sm:$0xff]
    %v920 = vld [vmem:[#allocation14 + $0x1e8] sm:$0xff]
    %v921 = vld [vmem:[#allocation14 + $0x1f0] sm:$0xff]
    %v922 = vld [vmem:[#allocation14 + $0x1f8] sm:$0xff]
    %v923 = vld [vmem:[%s8] sm:$0xf]
    %v925 = vlaneseq
    %v926 = vshrl.u32 %v925, 7
    %v927 = vsub.s32 0, %v926
    %v928 = vrot.slane %v923, %v927
    %v929 = vlaneseq
    %v930 = vshrl.u32 %v929, 7
    %v931 = vsub.s32 1, %v930
    %v932 = vrot.slane %v923, %v931
    %v933 = vlaneseq
    %v934 = vshrl.u32 %v933, 7
    %v935 = vsub.s32 2, %v934
    %v936 = vrot.slane %v923, %v935
    %v937 = vlaneseq
    %v938 = vshrl.u32 %v937, 7
    %v939 = vsub.s32 3, %v938
    %v940 = vrot.slane %v923, %v939
    %945 = vmatprep.subr.mxu0 %v920
    %946 = vmatpush1.msra.mxu0 %v919
    %947 = vmatprep.subr.mxu0 %v916
    %948 = vmatpush1.msra.mxu0 %v915
    %949 = vmatprep.subr.mxu0 %v912
    %950 = vmatpush1.msra.mxu0 %v911
    %951 = vmatprep.subr.mxu0 %v908
    %952 = vmatpush1.msra.mxu0 %v907
    %953 = vmatprep.subr.mxu0 %v904
    %954 = vmatpush1.msra.mxu0 %v903
    %955 = vmatprep.subr.mxu0 %v900
    %956 = vmatpush1.msra.mxu0 %v899
    %957 = vmatprep.subr.mxu0 %v896
    %958 = vmatpush1.msra.mxu0 %v895
    %959 = vmatprep.subr.mxu0 %v892
    %960 = vmatpush1.msra.mxu0 %v891
    %961 = vmatprep.subr.mxu0 %v888
    %962 = vmatpush1.msra.mxu0 %v887
    %963 = vmatprep.subr.mxu0 %v884
    %964 = vmatpush1.msra.mxu0 %v883
    %965 = vmatprep.subr.mxu0 %v880
    %966 = vmatpush1.msra.mxu0 %v879
    %967 = vmatprep.subr.mxu0 %v876
    %968 = vmatpush1.msra.mxu0 %v875
    %969 = vmatprep.subr.mxu0 %v872
    %970 = vmatpush1.msra.mxu0 %v871
    %971 = vmatprep.subr.mxu0 %v868
    %972 = vmatpush1.msra.mxu0 %v867
    %973 = vmatprep.subr.mxu0 %v864
    %974 = vmatpush1.msra.mxu0 %v863
    %975 = vmatprep.subr.mxu0 %v860
    %976 = vmatpush1.msra.mxu0 %v859
    %977 = vmatprep.subr.mxu0 0.0
    %978 = vmatpush2.msra.mxu0 0.0
    %979 = vmatprep.subr.mxu0 0.0
    %980 = vmatpush2.msra.mxu0 0.0
    %981 = vmatprep.subr.mxu0 0.0
    %982 = vmatpush2.msra.mxu0 0.0
    %983 = vmatprep.subr.mxu0 0.0
    %984 = vmatpush2.msra.mxu0 0.0
    %985 = vmatprep.subr.mxu0 0.0
    %986 = vmatpush2.msra.mxu0 0.0
    %987 = vmatprep.subr.mxu0 0.0
    %988 = vmatpush2.msra.mxu0 0.0
    %989 = vmatprep.subr.mxu0 0.0
    %990 = vmatpush2.msra.mxu0 0.0
    %991 = vmatprep.subr.mxu0 0.0
    %992 = vmatpush2.msra.mxu0 0.0
    %993 = vmatprep.subr.mxu0 0.0
    %994 = vmatpush2.msra.mxu0 0.0
    %995 = vmatprep.subr.mxu0 0.0
    %996 = vmatpush2.msra.mxu0 0.0
    %997 = vmatprep.subr.mxu0 0.0
    %998 = vmatpush2.msra.mxu0 0.0
    %999 = vmatprep.subr.mxu0 0.0
    %1000 = vmatpush2.msra.mxu0 0.0
    %1001 = vmatprep.subr.mxu0 0.0
    %1002 = vmatpush2.msra.mxu0 0.0
    %1003 = vmatprep.subr.mxu0 0.0
    %1004 = vmatpush2.msra.mxu0 0.0
    %1005 = vmatprep.subr.mxu0 0.0
    %1006 = vmatpush2.msra.mxu0 0.0
    %1007 = vmatprep.subr.mxu0 0.0
    %1008 = vmatpush2.msra.mxu0 0.0
    %1009 = vmatprep.mubr.f32.mxu0 0.0
    %1010 = vmatmul.mubr.f32.gmra.mxu0 %v853
    %v1011 = vpop.f32.mrf.mxu0
    %v1012 = vadd.f32 %v928, %v1011
    %v1013 = vpop.f32.mrf.mxu0
    %v1014 = vadd.f32 %v932, %v1013
    %1015 = vmatprep.mubr.f32.mxu0 0.0
    %1016 = vmatmul.mubr.f32.gmra.mxu0 %v856
    %v1017 = vpop.f32.mrf.mxu0
    %v1018 = vadd.f32 %v928, %v1017
    %v1019 = vpop.f32.mrf.mxu0
    %v1020 = vadd.f32 %v932, %v1019
    %1021 = vdwg.mxu0
    %1022 = vmatprep.subr.mxu0 %v922
    %1023 = vmatpush1.msra.mxu0 %v921
    %1024 = vmatprep.subr.mxu0 %v918
    %1025 = vmatpush1.msra.mxu0 %v917
    %1026 = vmatprep.subr.mxu0 %v914
    %1027 = vmatpush1.msra.mxu0 %v913
    %1028 = vmatprep.subr.mxu0 %v910
    %1029 = vmatpush1.msra.mxu0 %v909
    %1030 = vmatprep.subr.mxu0 %v906
    %1031 = vmatpush1.msra.mxu0 %v905
    %1032 = vmatprep.subr.mxu0 %v902
    %1033 = vmatpush1.msra.mxu0 %v901
    %1034 = vmatprep.subr.mxu0 %v898
    %1035 = vmatpush1.msra.mxu0 %v897
    %1036 = vmatprep.subr.mxu0 %v894
    %1037 = vmatpush1.msra.mxu0 %v893
    %1038 = vmatprep.subr.mxu0 %v890
    %1039 = vmatpush1.msra.mxu0 %v889
    %1040 = vmatprep.subr.mxu0 %v886
    %1041 = vmatpush1.msra.mxu0 %v885
    %1042 = vmatprep.subr.mxu0 %v882
    %1043 = vmatpush1.msra.mxu0 %v881
    %1044 = vmatprep.subr.mxu0 %v878
    %1045 = vmatpush1.msra.mxu0 %v877
    %1046 = vmatprep.subr.mxu0 %v874
    %1047 = vmatpush1.msra.mxu0 %v873
    %1048 = vmatprep.subr.mxu0 %v870
    %1049 = vmatpush1.msra.mxu0 %v869
    %1050 = vmatprep.subr.mxu0 %v866
    %1051 = vmatpush1.msra.mxu0 %v865
    %1052 = vmatprep.subr.mxu0 %v862
    %1053 = vmatpush1.msra.mxu0 %v861
    %1054 = vmatprep.subr.mxu0 0.0
    %1055 = vmatpush2.msra.mxu0 0.0
    %1056 = vmatprep.subr.mxu0 0.0
    %1057 = vmatpush2.msra.mxu0 0.0
    %1058 = vmatprep.subr.mxu0 0.0
    %1059 = vmatpush2.msra.mxu0 0.0
    %1060 = vmatprep.subr.mxu0 0.0
    %1061 = vmatpush2.msra.mxu0 0.0
    %1062 = vmatprep.subr.mxu0 0.0
    %1063 = vmatpush2.msra.mxu0 0.0
    %1064 = vmatprep.subr.mxu0 0.0
    %1065 = vmatpush2.msra.mxu0 0.0
    %1066 = vmatprep.subr.mxu0 0.0
    %1067 = vmatpush2.msra.mxu0 0.0
    %1068 = vmatprep.subr.mxu0 0.0
    %1069 = vmatpush2.msra.mxu0 0.0
    %1070 = vmatprep.subr.mxu0 0.0
    %1071 = vmatpush2.msra.mxu0 0.0
    %1072 = vmatprep.subr.mxu0 0.0
    %1073 = vmatpush2.msra.mxu0 0.0
    %1074 = vmatprep.subr.mxu0 0.0
    %1075 = vmatpush2.msra.mxu0 0.0
    %1076 = vmatprep.subr.mxu0 0.0
    %1077 = vmatpush2.msra.mxu0 0.0
    %1078 = vmatprep.subr.mxu0 0.0
    %1079 = vmatpush2.msra.mxu0 0.0
    %1080 = vmatprep.subr.mxu0 0.0
    %1081 = vmatpush2.msra.mxu0 0.0
    %1082 = vmatprep.subr.mxu0 0.0
    %1083 = vmatpush2.msra.mxu0 0.0
    %1084 = vmatprep.subr.mxu0 0.0
    %1085 = vmatpush2.msra.mxu0 0.0
    %1086 = vmatprep.mubr.f32.mxu0 0.0
    %1087 = vmatmul.mubr.f32.gmra.mxu0 %v853
    %v1088 = vpop.f32.mrf.mxu0
    %v1089 = vadd.f32 %v936, %v1088
    %v1090 = vpop.f32.mrf.mxu0
    %v1091 = vadd.f32 %v940, %v1090
    %1092 = vmatprep.mubr.f32.mxu0 0.0
    %1093 = vmatmul.mubr.f32.gmra.mxu0 %v856
    %v1094 = vpop.f32.mrf.mxu0
    %v1095 = vadd.f32 %v936, %v1094
    %v1096 = vpop.f32.mrf.mxu0
    %v1097 = vadd.f32 %v940, %v1096
    %1098 = vdwg.mxu0
    %v1099 = vmul.f32 %v1012, 0.5
    %v1100 = vmul.f32 %v1014, 0.5
    %v1101 = vmul.f32 %v1089, 0.5
    %v1102 = vmul.f32 %v1091, 0.5
    %v1103 = vmul.f32 %v1018, 0.5
    %v1104 = vmul.f32 %v1020, 0.5
    %v1105 = vmul.f32 %v1095, 0.5
    %v1106 = vmul.f32 %v1097, 0.5
    %v1107 = vmul.f32 %v1012, 0.044715
    %v1108 = vmul.f32 %v1014, 0.044715
    %v1109 = vmul.f32 %v1089, 0.044715
    %v1110 = vmul.f32 %v1091, 0.044715
    %v1111 = vmul.f32 %v1018, 0.044715
    %v1112 = vmul.f32 %v1020, 0.044715
    %v1113 = vmul.f32 %v1095, 0.044715
    %v1114 = vmul.f32 %v1097, 0.044715
    %v1115 = vmul.f32 %v1107, %v1012
    %v1116 = vmul.f32 %v1108, %v1014
    %v1117 = vmul.f32 %v1109, %v1089
    %v1118 = vmul.f32 %v1110, %v1091
    %v1119 = vmul.f32 %v1111, %v1018
    %v1120 = vmul.f32 %v1112, %v1020
    %v1121 = vmul.f32 %v1113, %v1095
    %v1122 = vmul.f32 %v1114, %v1097
    %v1123 = vmul.f32 %v1115, %v1012
    %v1124 = vmul.f32 %v1116, %v1014
    %v1125 = vmul.f32 %v1117, %v1089
    %v1126 = vmul.f32 %v1118, %v1091
    %v1127 = vmul.f32 %v1119, %v1018
    %v1128 = vmul.f32 %v1120, %v1020
    %v1129 = vmul.f32 %v1121, %v1095
    %v1130 = vmul.f32 %v1122, %v1097
    %v1131 = vadd.f32 %v1012, %v1123
    %v1132 = vadd.f32 %v1014, %v1124
    %v1133 = vadd.f32 %v1089, %v1125
    %v1134 = vadd.f32 %v1091, %v1126
    %v1135 = vadd.f32 %v1018, %v1127
    %v1136 = vadd.f32 %v1020, %v1128
    %v1137 = vadd.f32 %v1095, %v1129
    %v1138 = vadd.f32 %v1097, %v1130
    %v1139 = vmul.f32 %v1131, 0.7978846
    %v1140 = vmul.f32 %v1132, 0.7978846
    %v1141 = vmul.f32 %v1133, 0.7978846
    %v1142 = vmul.f32 %v1134, 0.7978846
    %v1143 = vmul.f32 %v1135, 0.7978846
    %v1144 = vmul.f32 %v1136, 0.7978846
    %v1145 = vmul.f32 %v1137, 0.7978846
    %v1146 = vmul.f32 %v1138, 0.7978846
    %v1147 = vtanh.pop %v1139
    %v1148 = vtanh.pop %v1140
    %v1149 = vtanh.pop %v1141
    %v1150 = vtanh.pop %v1142
    %v1151 = vtanh.pop %v1143
    %v1152 = vtanh.pop %v1144
    %v1153 = vtanh.pop %v1145
    %v1154 = vtanh.pop %v1146
    %v1155 = vadd.f32 %v1147, 1.0
    %v1156 = vadd.f32 %v1148, 1.0
    %v1157 = vadd.f32 %v1149, 1.0
    %v1158 = vadd.f32 %v1150, 1.0
    %v1159 = vadd.f32 %v1151, 1.0
    %v1160 = vadd.f32 %v1152, 1.0
    %v1161 = vadd.f32 %v1153, 1.0
    %v1162 = vadd.f32 %v1154, 1.0
    %v1163 = vmul.f32 %v1099, %v1155
    %v1164 = vmul.f32 %v1100, %v1156
    %v1165 = vmul.f32 %v1101, %v1157
    %v1166 = vmul.f32 %v1102, %v1158
    %v1167 = vmul.f32 %v1103, %v1159
    %v1168 = vmul.f32 %v1104, %v1160
    %v1169 = vmul.f32 %v1105, %v1161
    %v1170 = vmul.f32 %v1106, %v1162
    %v1171 = vld [vmem:[#allocation16] sm:$0xff]
    %v1172 = vld [vmem:[#allocation16 + $0x8] sm:$0xff]
    %v1173 = vld [vmem:[#allocation16 + $0x10] sm:$0xff]
    %v1174 = vld [vmem:[#allocation16 + $0x18] sm:$0xff]
    %v1175 = vld [vmem:[#allocation16 + $0x20] sm:$0xff]
    %v1176 = vld [vmem:[#allocation16 + $0x28] sm:$0xff]
    %v1177 = vld [vmem:[#allocation16 + $0x30] sm:$0xff]
    %v1178 = vld [vmem:[#allocation16 + $0x38] sm:$0xff]
    %v1179 = vld [vmem:[#allocation16 + $0x40] sm:$0xff]
    %v1180 = vld [vmem:[#allocation16 + $0x48] sm:$0xff]
    %v1181 = vld [vmem:[#allocation16 + $0x50] sm:$0xff]
    %v1182 = vld [vmem:[#allocation16 + $0x58] sm:$0xff]
    %v1183 = vld [vmem:[#allocation16 + $0x60] sm:$0xff]
    %v1184 = vld [vmem:[#allocation16 + $0x68] sm:$0xff]
    %v1185 = vld [vmem:[#allocation16 + $0x70] sm:$0xff]
    %v1186 = vld [vmem:[#allocation16 + $0x78] sm:$0xff]
    %v1187 = vld [vmem:[#allocation16 + $0x80] sm:$0xff]
    %v1188 = vld [vmem:[#allocation16 + $0x88] sm:$0xff]
    %v1189 = vld [vmem:[#allocation16 + $0x90] sm:$0xff]
    %v1190 = vld [vmem:[#allocation16 + $0x98] sm:$0xff]
    %v1191 = vld [vmem:[#allocation16 + $0xa0] sm:$0xff]
    %v1192 = vld [vmem:[#allocation16 + $0xa8] sm:$0xff]
    %v1193 = vld [vmem:[#allocation16 + $0xb0] sm:$0xff]
    %v1194 = vld [vmem:[#allocation16 + $0xb8] sm:$0xff]
    %v1195 = vld [vmem:[#allocation16 + $0xc0] sm:$0xff]
    %v1196 = vld [vmem:[#allocation16 + $0xc8] sm:$0xff]
    %v1197 = vld [vmem:[#allocation16 + $0xd0] sm:$0xff]
    %v1198 = vld [vmem:[#allocation16 + $0xd8] sm:$0xff]
    %v1199 = vld [vmem:[#allocation16 + $0xe0] sm:$0xff]
    %v1200 = vld [vmem:[#allocation16 + $0xe8] sm:$0xff]
    %v1201 = vld [vmem:[#allocation16 + $0xf0] sm:$0xff]
    %v1202 = vld [vmem:[#allocation16 + $0xf8] sm:$0xff]
    %v1203 = vld [vmem:[#allocation16 + $0x100] sm:$0xff]
    %v1204 = vld [vmem:[#allocation16 + $0x108] sm:$0xff]
    %v1205 = vld [vmem:[#allocation16 + $0x110] sm:$0xff]
    %v1206 = vld [vmem:[#allocation16 + $0x118] sm:$0xff]
    %v1207 = vld [vmem:[#allocation16 + $0x120] sm:$0xff]
    %v1208 = vld [vmem:[#allocation16 + $0x128] sm:$0xff]
    %v1209 = vld [vmem:[#allocation16 + $0x130] sm:$0xff]
    %v1210 = vld [vmem:[#allocation16 + $0x138] sm:$0xff]
    %v1211 = vld [vmem:[#allocation16 + $0x140] sm:$0xff]
    %v1212 = vld [vmem:[#allocation16 + $0x148] sm:$0xff]
    %v1213 = vld [vmem:[#allocation16 + $0x150] sm:$0xff]
    %v1214 = vld [vmem:[#allocation16 + $0x158] sm:$0xff]
    %v1215 = vld [vmem:[#allocation16 + $0x160] sm:$0xff]
    %v1216 = vld [vmem:[#allocation16 + $0x168] sm:$0xff]
    %v1217 = vld [vmem:[#allocation16 + $0x170] sm:$0xff]
    %v1218 = vld [vmem:[#allocation16 + $0x178] sm:$0xff]
    %v1219 = vld [vmem:[#allocation16 + $0x180] sm:$0xff]
    %v1220 = vld [vmem:[#allocation16 + $0x188] sm:$0xff]
    %v1221 = vld [vmem:[#allocation16 + $0x190] sm:$0xff]
    %v1222 = vld [vmem:[#allocation16 + $0x198] sm:$0xff]
    %v1223 = vld [vmem:[#allocation16 + $0x1a0] sm:$0xff]
    %v1224 = vld [vmem:[#allocation16 + $0x1a8] sm:$0xff]
    %v1225 = vld [vmem:[#allocation16 + $0x1b0] sm:$0xff]
    %v1226 = vld [vmem:[#allocation16 + $0x1b8] sm:$0xff]
    %v1227 = vld [vmem:[#allocation16 + $0x1c0] sm:$0xff]
    %v1228 = vld [vmem:[#allocation16 + $0x1c8] sm:$0xff]
    %v1229 = vld [vmem:[#allocation16 + $0x1d0] sm:$0xff]
    %v1230 = vld [vmem:[#allocation16 + $0x1d8] sm:$0xff]
    %v1231 = vld [vmem:[#allocation16 + $0x1e0] sm:$0xff]
    %v1232 = vld [vmem:[#allocation16 + $0x1e8] sm:$0xff]
    %v1233 = vld [vmem:[#allocation16 + $0x1f0] sm:$0xff]
    %v1234 = vld [vmem:[#allocation16 + $0x1f8] sm:$0xff]
    %1235 = vmatprep.subr.mxu0 0.0
    %1236 = vmatpush1.msra.mxu0 %v1186
    %1237 = vmatprep.subr.mxu0 0.0
    %1238 = vmatpush1.msra.mxu0 %v1185
    %1239 = vmatprep.subr.mxu0 0.0
    %1240 = vmatpush1.msra.mxu0 %v1184
    %1241 = vmatprep.subr.mxu0 0.0
    %1242 = vmatpush1.msra.mxu0 %v1183
    %1243 = vmatprep.subr.mxu0 0.0
    %1244 = vmatpush1.msra.mxu0 %v1182
    %1245 = vmatprep.subr.mxu0 0.0
    %1246 = vmatpush1.msra.mxu0 %v1181
    %1247 = vmatprep.subr.mxu0 0.0
    %1248 = vmatpush1.msra.mxu0 %v1180
    %1249 = vmatprep.subr.mxu0 0.0
    %1250 = vmatpush1.msra.mxu0 %v1179
    %1251 = vmatprep.subr.mxu0 0.0
    %1252 = vmatpush1.msra.mxu0 %v1178
    %1253 = vmatprep.subr.mxu0 0.0
    %1254 = vmatpush1.msra.mxu0 %v1177
    %1255 = vmatprep.subr.mxu0 0.0
    %1256 = vmatpush1.msra.mxu0 %v1176
    %1257 = vmatprep.subr.mxu0 0.0
    %1258 = vmatpush1.msra.mxu0 %v1175
    %1259 = vmatprep.subr.mxu0 0.0
    %1260 = vmatpush1.msra.mxu0 %v1174
    %1261 = vmatprep.subr.mxu0 0.0
    %1262 = vmatpush1.msra.mxu0 %v1173
    %1263 = vmatprep.subr.mxu0 0.0
    %1264 = vmatpush1.msra.mxu0 %v1172
    %1265 = vmatprep.subr.mxu0 0.0
    %1266 = vmatpush1.msra.mxu0 %v1171
    %1267 = vmatprep.subr.mxu0 0.0
    %1268 = vmatpush2.msra.mxu0 %v1202
    %1269 = vmatprep.subr.mxu0 0.0
    %1270 = vmatpush2.msra.mxu0 %v1201
    %1271 = vmatprep.subr.mxu0 0.0
    %1272 = vmatpush2.msra.mxu0 %v1200
    %1273 = vmatprep.subr.mxu0 0.0
    %1274 = vmatpush2.msra.mxu0 %v1199
    %1275 = vmatprep.subr.mxu0 0.0
    %1276 = vmatpush2.msra.mxu0 %v1198
    %1277 = vmatprep.subr.mxu0 0.0
    %1278 = vmatpush2.msra.mxu0 %v1197
    %1279 = vmatprep.subr.mxu0 0.0
    %1280 = vmatpush2.msra.mxu0 %v1196
    %1281 = vmatprep.subr.mxu0 0.0
    %1282 = vmatpush2.msra.mxu0 %v1195
    %1283 = vmatprep.subr.mxu0 0.0
    %1284 = vmatpush2.msra.mxu0 %v1194
    %1285 = vmatprep.subr.mxu0 0.0
    %1286 = vmatpush2.msra.mxu0 %v1193
    %1287 = vmatprep.subr.mxu0 0.0
    %1288 = vmatpush2.msra.mxu0 %v1192
    %1289 = vmatprep.subr.mxu0 0.0
    %1290 = vmatpush2.msra.mxu0 %v1191
    %1291 = vmatprep.subr.mxu0 0.0
    %1292 = vmatpush2.msra.mxu0 %v1190
    %1293 = vmatprep.subr.mxu0 0.0
    %1294 = vmatpush2.msra.mxu0 %v1189
    %1295 = vmatprep.subr.mxu0 0.0
    %1296 = vmatpush2.msra.mxu0 %v1188
    %1297 = vmatprep.subr.mxu0 0.0
    %1298 = vmatpush2.msra.mxu0 %v1187
    %1299 = vmatprep.mubr.f32.mxu0 %v1164
    %1300 = vmatmul.mubr.f32.gmra.mxu0 %v1163
    %v1301 = vpop.f32.mrf.mxu0
    %v1302 = vadd.f32 0.0, %v1301
    %v1303 = vpop.f32.mrf.mxu0
    %1304 = vmatprep.mubr.f32.mxu0 %v1168
    %1305 = vmatmul.mubr.f32.gmra.mxu0 %v1167
    %v1306 = vpop.f32.mrf.mxu0
    %v1307 = vadd.f32 0.0, %v1306
    %v1308 = vpop.f32.mrf.mxu0
    %1309 = vdwg.mxu0
    %1310 = vmatprep.subr.mxu0 0.0
    %1311 = vmatpush1.msra.mxu0 %v1218
    %1312 = vmatprep.subr.mxu0 0.0
    %1313 = vmatpush1.msra.mxu0 %v1217
    %1314 = vmatprep.subr.mxu0 0.0
    %1315 = vmatpush1.msra.mxu0 %v1216
    %1316 = vmatprep.subr.mxu0 0.0
    %1317 = vmatpush1.msra.mxu0 %v1215
    %1318 = vmatprep.subr.mxu0 0.0
    %1319 = vmatpush1.msra.mxu0 %v1214
    %1320 = vmatprep.subr.mxu0 0.0
    %1321 = vmatpush1.msra.mxu0 %v1213
    %1322 = vmatprep.subr.mxu0 0.0
    %1323 = vmatpush1.msra.mxu0 %v1212
    %1324 = vmatprep.subr.mxu0 0.0
    %1325 = vmatpush1.msra.mxu0 %v1211
    %1326 = vmatprep.subr.mxu0 0.0
    %1327 = vmatpush1.msra.mxu0 %v1210
    %1328 = vmatprep.subr.mxu0 0.0
    %1329 = vmatpush1.msra.mxu0 %v1209
    %1330 = vmatprep.subr.mxu0 0.0
    %1331 = vmatpush1.msra.mxu0 %v1208
    %1332 = vmatprep.subr.mxu0 0.0
    %1333 = vmatpush1.msra.mxu0 %v1207
    %1334 = vmatprep.subr.mxu0 0.0
    %1335 = vmatpush1.msra.mxu0 %v1206
    %1336 = vmatprep.subr.mxu0 0.0
    %1337 = vmatpush1.msra.mxu0 %v1205
    %1338 = vmatprep.subr.mxu0 0.0
    %1339 = vmatpush1.msra.mxu0 %v1204
    %1340 = vmatprep.subr.mxu0 0.0
    %1341 = vmatpush1.msra.mxu0 %v1203
    %1342 = vmatprep.subr.mxu0 0.0
    %1343 = vmatpush2.msra.mxu0 %v1234
    %1344 = vmatprep.subr.mxu0 0.0
    %1345 = vmatpush2.msra.mxu0 %v1233
    %1346 = vmatprep.subr.mxu0 0.0
    %1347 = vmatpush2.msra.mxu0 %v1232
    %1348 = vmatprep.subr.mxu0 0.0
    %1349 = vmatpush2.msra.mxu0 %v1231
    %1350 = vmatprep.subr.mxu0 0.0
    %1351 = vmatpush2.msra.mxu0 %v1230
    %1352 = vmatprep.subr.mxu0 0.0
    %1353 = vmatpush2.msra.mxu0 %v1229
    %1354 = vmatprep.subr.mxu0 0.0
    %1355 = vmatpush2.msra.mxu0 %v1228
    %1356 = vmatprep.subr.mxu0 0.0
    %1357 = vmatpush2.msra.mxu0 %v1227
    %1358 = vmatprep.subr.mxu0 0.0
    %1359 = vmatpush2.msra.mxu0 %v1226
    %1360 = vmatprep.subr.mxu0 0.0
    %1361 = vmatpush2.msra.mxu0 %v1225
    %1362 = vmatprep.subr.mxu0 0.0
    %1363 = vmatpush2.msra.mxu0 %v1224
    %1364 = vmatprep.subr.mxu0 0.0
    %1365 = vmatpush2.msra.mxu0 %v1223
    %1366 = vmatprep.subr.mxu0 0.0
    %1367 = vmatpush2.msra.mxu0 %v1222
    %1368 = vmatprep.subr.mxu0 0.0
    %1369 = vmatpush2.msra.mxu0 %v1221
    %1370 = vmatprep.subr.mxu0 0.0
    %1371 = vmatpush2.msra.mxu0 %v1220
    %1372 = vmatprep.subr.mxu0 0.0
    %1373 = vmatpush2.msra.mxu0 %v1219
    %1374 = vmatprep.mubr.f32.mxu0 %v1166
    %1375 = vmatmul.mubr.f32.gmra.mxu0 %v1165
    %v1376 = vpop.f32.mrf.mxu0
    %v1377 = vadd.f32 %v1302, %v1376
    %v1378 = vpop.f32.mrf.mxu0
    %1379 = vmatprep.mubr.f32.mxu0 %v1170
    %1380 = vmatmul.mubr.f32.gmra.mxu0 %v1169
    %v1381 = vpop.f32.mrf.mxu0
    %v1382 = vadd.f32 %v1307, %v1381
    %v1383 = vpop.f32.mrf.mxu0
    %1384 = vdwg.mxu0
    %s1385 = scalar_lea.vmem [#allocation14], 512
    %v1386 = vld [vmem:[%s1385] sm:$0xff]
    %v1387 = vld [vmem:[%s1385 + $0x8] sm:$0xff]
    %v1388 = vld [vmem:[%s1385 + $0x10] sm:$0xff]
    %v1389 = vld [vmem:[%s1385 + $0x18] sm:$0xff]
    %v1390 = vld [vmem:[%s1385 + $0x20] sm:$0xff]
    %v1391 = vld [vmem:[%s1385 + $0x28] sm:$0xff]
    %v1392 = vld [vmem:[%s1385 + $0x30] sm:$0xff]
    %v1393 = vld [vmem:[%s1385 + $0x38] sm:$0xff]
    %v1394 = vld [vmem:[%s1385 + $0x40] sm:$0xff]
    %v1395 = vld [vmem:[%s1385 + $0x48] sm:$0xff]
    %v1396 = vld [vmem:[%s1385 + $0x50] sm:$0xff]
    %v1397 = vld [vmem:[%s1385 + $0x58] sm:$0xff]
    %v1398 = vld [vmem:[%s1385 + $0x60] sm:$0xff]
    %v1399 = vld [vmem:[%s1385 + $0x68] sm:$0xff]
    %v1400 = vld [vmem:[%s1385 + $0x70] sm:$0xff]
    %v1401 = vld [vmem:[%s1385 + $0x78] sm:$0xff]
    %v1402 = vld [vmem:[%s1385 + $0x80] sm:$0xff]
    %v1403 = vld [vmem:[%s1385 + $0x88] sm:$0xff]
    %v1404 = vld [vmem:[%s1385 + $0x90] sm:$0xff]
    %v1405 = vld [vmem:[%s1385 + $0x98] sm:$0xff]
    %v1406 = vld [vmem:[%s1385 + $0xa0] sm:$0xff]
    %v1407 = vld [vmem:[%s1385 + $0xa8] sm:$0xff]
    %v1408 = vld [vmem:[%s1385 + $0xb0] sm:$0xff]
    %v1409 = vld [vmem:[%s1385 + $0xb8] sm:$0xff]
    %v1410 = vld [vmem:[%s1385 + $0xc0] sm:$0xff]
    %v1411 = vld [vmem:[%s1385 + $0xc8] sm:$0xff]
    %v1412 = vld [vmem:[%s1385 + $0xd0] sm:$0xff]
    %v1413 = vld [vmem:[%s1385 + $0xd8] sm:$0xff]
    %v1414 = vld [vmem:[%s1385 + $0xe0] sm:$0xff]
    %v1415 = vld [vmem:[%s1385 + $0xe8] sm:$0xff]
    %v1416 = vld [vmem:[%s1385 + $0xf0] sm:$0xff]
    %v1417 = vld [vmem:[%s1385 + $0xf8] sm:$0xff]
    %v1418 = vld [vmem:[%s1385 + $0x100] sm:$0xff]
    %v1419 = vld [vmem:[%s1385 + $0x108] sm:$0xff]
    %v1420 = vld [vmem:[%s1385 + $0x110] sm:$0xff]
    %v1421 = vld [vmem:[%s1385 + $0x118] sm:$0xff]
    %v1422 = vld [vmem:[%s1385 + $0x120] sm:$0xff]
    %v1423 = vld [vmem:[%s1385 + $0x128] sm:$0xff]
    %v1424 = vld [vmem:[%s1385 + $0x130] sm:$0xff]
    %v1425 = vld [vmem:[%s1385 + $0x138] sm:$0xff]
    %v1426 = vld [vmem:[%s1385 + $0x140] sm:$0xff]
    %v1427 = vld [vmem:[%s1385 + $0x148] sm:$0xff]
    %v1428 = vld [vmem:[%s1385 + $0x150] sm:$0xff]
    %v1429 = vld [vmem:[%s1385 + $0x158] sm:$0xff]
    %v1430 = vld [vmem:[%s1385 + $0x160] sm:$0xff]
    %v1431 = vld [vmem:[%s1385 + $0x168] sm:$0xff]
    %v1432 = vld [vmem:[%s1385 + $0x170] sm:$0xff]
    %v1433 = vld [vmem:[%s1385 + $0x178] sm:$0xff]
    %v1434 = vld [vmem:[%s1385 + $0x180] sm:$0xff]
    %v1435 = vld [vmem:[%s1385 + $0x188] sm:$0xff]
    %v1436 = vld [vmem:[%s1385 + $0x190] sm:$0xff]
    %v1437 = vld [vmem:[%s1385 + $0x198] sm:$0xff]
    %v1438 = vld [vmem:[%s1385 + $0x1a0] sm:$0xff]
    %v1439 = vld [vmem:[%s1385 + $0x1a8] sm:$0xff]
    %v1440 = vld [vmem:[%s1385 + $0x1b0] sm:$0xff]
    %v1441 = vld [vmem:[%s1385 + $0x1b8] sm:$0xff]
    %v1442 = vld [vmem:[%s1385 + $0x1c0] sm:$0xff]
    %v1443 = vld [vmem:[%s1385 + $0x1c8] sm:$0xff]
    %v1444 = vld [vmem:[%s1385 + $0x1d0] sm:$0xff]
    %v1445 = vld [vmem:[%s1385 + $0x1d8] sm:$0xff]
    %v1446 = vld [vmem:[%s1385 + $0x1e0] sm:$0xff]
    %v1447 = vld [vmem:[%s1385 + $0x1e8] sm:$0xff]
    %v1448 = vld [vmem:[%s1385 + $0x1f0] sm:$0xff]
    %v1449 = vld [vmem:[%s1385 + $0x1f8] sm:$0xff]
    %s1450 = scalar_lea.vmem %s8, 4
    %v1451 = vld [vmem:[%s1450] sm:$0xf]
    %v1453 = vlaneseq
    %v1454 = vshrl.u32 %v1453, 7
    %v1455 = vsub.s32 0, %v1454
    %v1456 = vrot.slane %v1451, %v1455
    %v1457 = vlaneseq
    %v1458 = vshrl.u32 %v1457, 7
    %v1459 = vsub.s32 1, %v1458
    %v1460 = vrot.slane %v1451, %v1459
    %v1461 = vlaneseq
    %v1462 = vshrl.u32 %v1461, 7
    %v1463 = vsub.s32 2, %v1462
    %v1464 = vrot.slane %v1451, %v1463
    %v1465 = vlaneseq
    %v1466 = vshrl.u32 %v1465, 7
    %v1467 = vsub.s32 3, %v1466
    %v1468 = vrot.slane %v1451, %v1467
    %1473 = vmatprep.subr.mxu0 %v1447
    %1474 = vmatpush1.msra.mxu0 %v1446
    %1475 = vmatprep.subr.mxu0 %v1443
    %1476 = vmatpush1.msra.mxu0 %v1442
    %1477 = vmatprep.subr.mxu0 %v1439
    %1478 = vmatpush1.msra.mxu0 %v1438
    %1479 = vmatprep.subr.mxu0 %v1435
    %1480 = vmatpush1.msra.mxu0 %v1434
    %1481 = vmatprep.subr.mxu0 %v1431
    %1482 = vmatpush1.msra.mxu0 %v1430
    %1483 = vmatprep.subr.mxu0 %v1427
    %1484 = vmatpush1.msra.mxu0 %v1426
    %1485 = vmatprep.subr.mxu0 %v1423
    %1486 = vmatpush1.msra.mxu0 %v1422
    %1487 = vmatprep.subr.mxu0 %v1419
    %1488 = vmatpush1.msra.mxu0 %v1418
    %1489 = vmatprep.subr.mxu0 %v1415
    %1490 = vmatpush1.msra.mxu0 %v1414
    %1491 = vmatprep.subr.mxu0 %v1411
    %1492 = vmatpush1.msra.mxu0 %v1410
    %1493 = vmatprep.subr.mxu0 %v1407
    %1494 = vmatpush1.msra.mxu0 %v1406
    %1495 = vmatprep.subr.mxu0 %v1403
    %1496 = vmatpush1.msra.mxu0 %v1402
    %1497 = vmatprep.subr.mxu0 %v1399
    %1498 = vmatpush1.msra.mxu0 %v1398
    %1499 = vmatprep.subr.mxu0 %v1395
    %1500 = vmatpush1.msra.mxu0 %v1394
    %1501 = vmatprep.subr.mxu0 %v1391
    %1502 = vmatpush1.msra.mxu0 %v1390
    %1503 = vmatprep.subr.mxu0 %v1387
    %1504 = vmatpush1.msra.mxu0 %v1386
    %1505 = vmatprep.subr.mxu0 0.0
    %1506 = vmatpush2.msra.mxu0 0.0
    %1507 = vmatprep.subr.mxu0 0.0
    %1508 = vmatpush2.msra.mxu0 0.0
    %1509 = vmatprep.subr.mxu0 0.0
    %1510 = vmatpush2.msra.mxu0 0.0
    %1511 = vmatprep.subr.mxu0 0.0
    %1512 = vmatpush2.msra.mxu0 0.0
    %1513 = vmatprep.subr.mxu0 0.0
    %1514 = vmatpush2.msra.mxu0 0.0
    %1515 = vmatprep.subr.mxu0 0.0
    %1516 = vmatpush2.msra.mxu0 0.0
    %1517 = vmatprep.subr.mxu0 0.0
    %1518 = vmatpush2.msra.mxu0 0.0
    %1519 = vmatprep.subr.mxu0 0.0
    %1520 = vmatpush2.msra.mxu0 0.0
    %1521 = vmatprep.subr.mxu0 0.0
    %1522 = vmatpush2.msra.mxu0 0.0
    %1523 = vmatprep.subr.mxu0 0.0
    %1524 = vmatpush2.msra.mxu0 0.0
    %1525 = vmatprep.subr.mxu0 0.0
    %1526 = vmatpush2.msra.mxu0 0.0
    %1527 = vmatprep.subr.mxu0 0.0
    %1528 = vmatpush2.msra.mxu0 0.0
    %1529 = vmatprep.subr.mxu0 0.0
    %1530 = vmatpush2.msra.mxu0 0.0
    %1531 = vmatprep.subr.mxu0 0.0
    %1532 = vmatpush2.msra.mxu0 0.0
    %1533 = vmatprep.subr.mxu0 0.0
    %1534 = vmatpush2.msra.mxu0 0.0
    %1535 = vmatprep.subr.mxu0 0.0
    %1536 = vmatpush2.msra.mxu0 0.0
    %1537 = vmatprep.mubr.f32.mxu0 0.0
    %1538 = vmatmul.mubr.f32.gmra.mxu0 %v854
    %v1539 = vpop.f32.mrf.mxu0
    %v1540 = vadd.f32 %v1456, %v1539
    %v1541 = vpop.f32.mrf.mxu0
    %v1542 = vadd.f32 %v1460, %v1541
    %1543 = vmatprep.mubr.f32.mxu0 0.0
    %1544 = vmatmul.mubr.f32.gmra.mxu0 %v857
    %v1545 = vpop.f32.mrf.mxu0
    %v1546 = vadd.f32 %v1456, %v1545
    %v1547 = vpop.f32.mrf.mxu0
    %v1548 = vadd.f32 %v1460, %v1547
    %1549 = vdwg.mxu0
    %1550 = vmatprep.subr.mxu0 %v1449
    %1551 = vmatpush1.msra.mxu0 %v1448
    %1552 = vmatprep.subr.mxu0 %v1445
    %1553 = vmatpush1.msra.mxu0 %v1444
    %1554 = vmatprep.subr.mxu0 %v1441
    %1555 = vmatpush1.msra.mxu0 %v1440
    %1556 = vmatprep.subr.mxu0 %v1437
    %1557 = vmatpush1.msra.mxu0 %v1436
    %1558 = vmatprep.subr.mxu0 %v1433
    %1559 = vmatpush1.msra.mxu0 %v1432
    %1560 = vmatprep.subr.mxu0 %v1429
    %1561 = vmatpush1.msra.mxu0 %v1428
    %1562 = vmatprep.subr.mxu0 %v1425
    %1563 = vmatpush1.msra.mxu0 %v1424
    %1564 = vmatprep.subr.mxu0 %v1421
    %1565 = vmatpush1.msra.mxu0 %v1420
    %1566 = vmatprep.subr.mxu0 %v1417
    %1567 = vmatpush1.msra.mxu0 %v1416
    %1568 = vmatprep.subr.mxu0 %v1413
    %1569 = vmatpush1.msra.mxu0 %v1412
    %1570 = vmatprep.subr.mxu0 %v1409
    %1571 = vmatpush1.msra.mxu0 %v1408
    %1572 = vmatprep.subr.mxu0 %v1405
    %1573 = vmatpush1.msra.mxu0 %v1404
    %1574 = vmatprep.subr.mxu0 %v1401
    %1575 = vmatpush1.msra.mxu0 %v1400
    %1576 = vmatprep.subr.mxu0 %v1397
    %1577 = vmatpush1.msra.mxu0 %v1396
    %1578 = vmatprep.subr.mxu0 %v1393
    %1579 = vmatpush1.msra.mxu0 %v1392
    %1580 = vmatprep.subr.mxu0 %v1389
    %1581 = vmatpush1.msra.mxu0 %v1388
    %1582 = vmatprep.subr.mxu0 0.0
    %1583 = vmatpush2.msra.mxu0 0.0
    %1584 = vmatprep.subr.mxu0 0.0
    %1585 = vmatpush2.msra.mxu0 0.0
    %1586 = vmatprep.subr.mxu0 0.0
    %1587 = vmatpush2.msra.mxu0 0.0
    %1588 = vmatprep.subr.mxu0 0.0
    %1589 = vmatpush2.msra.mxu0 0.0
    %1590 = vmatprep.subr.mxu0 0.0
    %1591 = vmatpush2.msra.mxu0 0.0
    %1592 = vmatprep.subr.mxu0 0.0
    %1593 = vmatpush2.msra.mxu0 0.0
    %1594 = vmatprep.subr.mxu0 0.0
    %1595 = vmatpush2.msra.mxu0 0.0
    %1596 = vmatprep.subr.mxu0 0.0
    %1597 = vmatpush2.msra.mxu0 0.0
    %1598 = vmatprep.subr.mxu0 0.0
    %1599 = vmatpush2.msra.mxu0 0.0
    %1600 = vmatprep.subr.mxu0 0.0
    %1601 = vmatpush2.msra.mxu0 0.0
    %1602 = vmatprep.subr.mxu0 0.0
    %1603 = vmatpush2.msra.mxu0 0.0
    %1604 = vmatprep.subr.mxu0 0.0
    %1605 = vmatpush2.msra.mxu0 0.0
    %1606 = vmatprep.subr.mxu0 0.0
    %1607 = vmatpush2.msra.mxu0 0.0
    %1608 = vmatprep.subr.mxu0 0.0
    %1609 = vmatpush2.msra.mxu0 0.0
    %1610 = vmatprep.subr.mxu0 0.0
    %1611 = vmatpush2.msra.mxu0 0.0
    %1612 = vmatprep.subr.mxu0 0.0
    %1613 = vmatpush2.msra.mxu0 0.0
    %1614 = vmatprep.mubr.f32.mxu0 0.0
    %1615 = vmatmul.mubr.f32.gmra.mxu0 %v854
    %v1616 = vpop.f32.mrf.mxu0
    %v1617 = vadd.f32 %v1464, %v1616
    %v1618 = vpop.f32.mrf.mxu0
    %v1619 = vadd.f32 %v1468, %v1618
    %1620 = vmatprep.mubr.f32.mxu0 0.0
    %1621 = vmatmul.mubr.f32.gmra.mxu0 %v857
    %v1622 = vpop.f32.mrf.mxu0
    %v1623 = vadd.f32 %v1464, %v1622
    %v1624 = vpop.f32.mrf.mxu0
    %v1625 = vadd.f32 %v1468, %v1624
    %1626 = vdwg.mxu0
    %v1627 = vmul.f32 %v1540, 0.5
    %v1628 = vmul.f32 %v1542, 0.5
    %v1629 = vmul.f32 %v1617, 0.5
    %v1630 = vmul.f32 %v1619, 0.5
    %v1631 = vmul.f32 %v1546, 0.5
    %v1632 = vmul.f32 %v1548, 0.5
    %v1633 = vmul.f32 %v1623, 0.5
    %v1634 = vmul.f32 %v1625, 0.5
    %v1635 = vmul.f32 %v1540, 0.044715
    %v1636 = vmul.f32 %v1542, 0.044715
    %v1637 = vmul.f32 %v1617, 0.044715
    %v1638 = vmul.f32 %v1619, 0.044715
    %v1639 = vmul.f32 %v1546, 0.044715
    %v1640 = vmul.f32 %v1548, 0.044715
    %v1641 = vmul.f32 %v1623, 0.044715
    %v1642 = vmul.f32 %v1625, 0.044715
    %v1643 = vmul.f32 %v1635, %v1540
    %v1644 = vmul.f32 %v1636, %v1542
    %v1645 = vmul.f32 %v1637, %v1617
    %v1646 = vmul.f32 %v1638, %v1619
    %v1647 = vmul.f32 %v1639, %v1546
    %v1648 = vmul.f32 %v1640, %v1548
    %v1649 = vmul.f32 %v1641, %v1623
    %v1650 = vmul.f32 %v1642, %v1625
    %v1651 = vmul.f32 %v1643, %v1540
    %v1652 = vmul.f32 %v1644, %v1542
    %v1653 = vmul.f32 %v1645, %v1617
    %v1654 = vmul.f32 %v1646, %v1619
    %v1655 = vmul.f32 %v1647, %v1546
    %v1656 = vmul.f32 %v1648, %v1548
    %v1657 = vmul.f32 %v1649, %v1623
    %v1658 = vmul.f32 %v1650, %v1625
    %v1659 = vadd.f32 %v1540, %v1651
    %v1660 = vadd.f32 %v1542, %v1652
    %v1661 = vadd.f32 %v1617, %v1653
    %v1662 = vadd.f32 %v1619, %v1654
    %v1663 = vadd.f32 %v1546, %v1655
    %v1664 = vadd.f32 %v1548, %v1656
    %v1665 = vadd.f32 %v1623, %v1657
    %v1666 = vadd.f32 %v1625, %v1658
    %v1667 = vmul.f32 %v1659, 0.7978846
    %v1668 = vmul.f32 %v1660, 0.7978846
    %v1669 = vmul.f32 %v1661, 0.7978846
    %v1670 = vmul.f32 %v1662, 0.7978846
    %v1671 = vmul.f32 %v1663, 0.7978846
    %v1672 = vmul.f32 %v1664, 0.7978846
    %v1673 = vmul.f32 %v1665, 0.7978846
    %v1674 = vmul.f32 %v1666, 0.7978846
    %v1675 = vtanh.pop %v1667
    %v1676 = vtanh.pop %v1668
    %v1677 = vtanh.pop %v1669
    %v1678 = vtanh.pop %v1670
    %v1679 = vtanh.pop %v1671
    %v1680 = vtanh.pop %v1672
    %v1681 = vtanh.pop %v1673
    %v1682 = vtanh.pop %v1674
    %v1683 = vadd.f32 %v1675, 1.0
    %v1684 = vadd.f32 %v1676, 1.0
    %v1685 = vadd.f32 %v1677, 1.0
    %v1686 = vadd.f32 %v1678, 1.0
    %v1687 = vadd.f32 %v1679, 1.0
    %v1688 = vadd.f32 %v1680, 1.0
    %v1689 = vadd.f32 %v1681, 1.0
    %v1690 = vadd.f32 %v1682, 1.0
    %v1691 = vmul.f32 %v1627, %v1683
    %v1692 = vmul.f32 %v1628, %v1684
    %v1693 = vmul.f32 %v1629, %v1685
    %v1694 = vmul.f32 %v1630, %v1686
    %v1695 = vmul.f32 %v1631, %v1687
    %v1696 = vmul.f32 %v1632, %v1688
    %v1697 = vmul.f32 %v1633, %v1689
    %v1698 = vmul.f32 %v1634, %v1690
    %s1699 = scalar_lea.vmem [#allocation16], 512
    %v1700 = vld [vmem:[%s1699] sm:$0xff]
    %v1701 = vld [vmem:[%s1699 + $0x8] sm:$0xff]
    %v1702 = vld [vmem:[%s1699 + $0x10] sm:$0xff]
    %v1703 = vld [vmem:[%s1699 + $0x18] sm:$0xff]
    %v1704 = vld [vmem:[%s1699 + $0x20] sm:$0xff]
    %v1705 = vld [vmem:[%s1699 + $0x28] sm:$0xff]
    %v1706 = vld [vmem:[%s1699 + $0x30] sm:$0xff]
    %v1707 = vld [vmem:[%s1699 + $0x38] sm:$0xff]
    %v1708 = vld [vmem:[%s1699 + $0x40] sm:$0xff]
    %v1709 = vld [vmem:[%s1699 + $0x48] sm:$0xff]
    %v1710 = vld [vmem:[%s1699 + $0x50] sm:$0xff]
    %v1711 = vld [vmem:[%s1699 + $0x58] sm:$0xff]
    %v1712 = vld [vmem:[%s1699 + $0x60] sm:$0xff]
    %v1713 = vld [vmem:[%s1699 + $0x68] sm:$0xff]
    %v1714 = vld [vmem:[%s1699 + $0x70] sm:$0xff]
    %v1715 = vld [vmem:[%s1699 + $0x78] sm:$0xff]
    %v1716 = vld [vmem:[%s1699 + $0x80] sm:$0xff]
    %v1717 = vld [vmem:[%s1699 + $0x88] sm:$0xff]
    %v1718 = vld [vmem:[%s1699 + $0x90] sm:$0xff]
    %v1719 = vld [vmem:[%s1699 + $0x98] sm:$0xff]
    %v1720 = vld [vmem:[%s1699 + $0xa0] sm:$0xff]
    %v1721 = vld [vmem:[%s1699 + $0xa8] sm:$0xff]
    %v1722 = vld [vmem:[%s1699 + $0xb0] sm:$0xff]
    %v1723 = vld [vmem:[%s1699 + $0xb8] sm:$0xff]
    %v1724 = vld [vmem:[%s1699 + $0xc0] sm:$0xff]
    %v1725 = vld [vmem:[%s1699 + $0xc8] sm:$0xff]
    %v1726 = vld [vmem:[%s1699 + $0xd0] sm:$0xff]
    %v1727 = vld [vmem:[%s1699 + $0xd8] sm:$0xff]
    %v1728 = vld [vmem:[%s1699 + $0xe0] sm:$0xff]
    %v1729 = vld [vmem:[%s1699 + $0xe8] sm:$0xff]
    %v1730 = vld [vmem:[%s1699 + $0xf0] sm:$0xff]
    %v1731 = vld [vmem:[%s1699 + $0xf8] sm:$0xff]
    %v1732 = vld [vmem:[%s1699 + $0x100] sm:$0xff]
    %v1733 = vld [vmem:[%s1699 + $0x108] sm:$0xff]
    %v1734 = vld [vmem:[%s1699 + $0x110] sm:$0xff]
    %v1735 = vld [vmem:[%s1699 + $0x118] sm:$0xff]
    %v1736 = vld [vmem:[%s1699 + $0x120] sm:$0xff]
    %v1737 = vld [vmem:[%s1699 + $0x128] sm:$0xff]
    %v1738 = vld [vmem:[%s1699 + $0x130] sm:$0xff]
    %v1739 = vld [vmem:[%s1699 + $0x138] sm:$0xff]
    %v1740 = vld [vmem:[%s1699 + $0x140] sm:$0xff]
    %v1741 = vld [vmem:[%s1699 + $0x148] sm:$0xff]
    %v1742 = vld [vmem:[%s1699 + $0x150] sm:$0xff]
    %v1743 = vld [vmem:[%s1699 + $0x158] sm:$0xff]
    %v1744 = vld [vmem:[%s1699 + $0x160] sm:$0xff]
    %v1745 = vld [vmem:[%s1699 + $0x168] sm:$0xff]
    %v1746 = vld [vmem:[%s1699 + $0x170] sm:$0xff]
    %v1747 = vld [vmem:[%s1699 + $0x178] sm:$0xff]
    %v1748 = vld [vmem:[%s1699 + $0x180] sm:$0xff]
    %v1749 = vld [vmem:[%s1699 + $0x188] sm:$0xff]
    %v1750 = vld [vmem:[%s1699 + $0x190] sm:$0xff]
    %v1751 = vld [vmem:[%s1699 + $0x198] sm:$0xff]
    %v1752 = vld [vmem:[%s1699 + $0x1a0] sm:$0xff]
    %v1753 = vld [vmem:[%s1699 + $0x1a8] sm:$0xff]
    %v1754 = vld [vmem:[%s1699 + $0x1b0] sm:$0xff]
    %v1755 = vld [vmem:[%s1699 + $0x1b8] sm:$0xff]
    %v1756 = vld [vmem:[%s1699 + $0x1c0] sm:$0xff]
    %v1757 = vld [vmem:[%s1699 + $0x1c8] sm:$0xff]
    %v1758 = vld [vmem:[%s1699 + $0x1d0] sm:$0xff]
    %v1759 = vld [vmem:[%s1699 + $0x1d8] sm:$0xff]
    %v1760 = vld [vmem:[%s1699 + $0x1e0] sm:$0xff]
    %v1761 = vld [vmem:[%s1699 + $0x1e8] sm:$0xff]
    %v1762 = vld [vmem:[%s1699 + $0x1f0] sm:$0xff]
    %v1763 = vld [vmem:[%s1699 + $0x1f8] sm:$0xff]
    %1764 = vmatprep.subr.mxu0 0.0
    %1765 = vmatpush1.msra.mxu0 %v1715
    %1766 = vmatprep.subr.mxu0 0.0
    %1767 = vmatpush1.msra.mxu0 %v1714
    %1768 = vmatprep.subr.mxu0 0.0
    %1769 = vmatpush1.msra.mxu0 %v1713
    %1770 = vmatprep.subr.mxu0 0.0
    %1771 = vmatpush1.msra.mxu0 %v1712
    %1772 = vmatprep.subr.mxu0 0.0
    %1773 = vmatpush1.msra.mxu0 %v1711
    %1774 = vmatprep.subr.mxu0 0.0
    %1775 = vmatpush1.msra.mxu0 %v1710
    %1776 = vmatprep.subr.mxu0 0.0
    %1777 = vmatpush1.msra.mxu0 %v1709
    %1778 = vmatprep.subr.mxu0 0.0
    %1779 = vmatpush1.msra.mxu0 %v1708
    %1780 = vmatprep.subr.mxu0 0.0
    %1781 = vmatpush1.msra.mxu0 %v1707
    %1782 = vmatprep.subr.mxu0 0.0
    %1783 = vmatpush1.msra.mxu0 %v1706
    %1784 = vmatprep.subr.mxu0 0.0
    %1785 = vmatpush1.msra.mxu0 %v1705
    %1786 = vmatprep.subr.mxu0 0.0
    %1787 = vmatpush1.msra.mxu0 %v1704
    %1788 = vmatprep.subr.mxu0 0.0
    %1789 = vmatpush1.msra.mxu0 %v1703
    %1790 = vmatprep.subr.mxu0 0.0
    %1791 = vmatpush1.msra.mxu0 %v1702
    %1792 = vmatprep.subr.mxu0 0.0
    %1793 = vmatpush1.msra.mxu0 %v1701
    %1794 = vmatprep.subr.mxu0 0.0
    %1795 = vmatpush1.msra.mxu0 %v1700
    %1796 = vmatprep.subr.mxu0 0.0
    %1797 = vmatpush2.msra.mxu0 %v1731
    %1798 = vmatprep.subr.mxu0 0.0
    %1799 = vmatpush2.msra.mxu0 %v1730
    %1800 = vmatprep.subr.mxu0 0.0
    %1801 = vmatpush2.msra.mxu0 %v1729
    %1802 = vmatprep.subr.mxu0 0.0
    %1803 = vmatpush2.msra.mxu0 %v1728
    %1804 = vmatprep.subr.mxu0 0.0
    %1805 = vmatpush2.msra.mxu0 %v1727
    %1806 = vmatprep.subr.mxu0 0.0
    %1807 = vmatpush2.msra.mxu0 %v1726
    %1808 = vmatprep.subr.mxu0 0.0
    %1809 = vmatpush2.msra.mxu0 %v1725
    %1810 = vmatprep.subr.mxu0 0.0
    %1811 = vmatpush2.msra.mxu0 %v1724
    %1812 = vmatprep.subr.mxu0 0.0
    %1813 = vmatpush2.msra.mxu0 %v1723
    %1814 = vmatprep.subr.mxu0 0.0
    %1815 = vmatpush2.msra.mxu0 %v1722
    %1816 = vmatprep.subr.mxu0 0.0
    %1817 = vmatpush2.msra.mxu0 %v1721
    %1818 = vmatprep.subr.mxu0 0.0
    %1819 = vmatpush2.msra.mxu0 %v1720
    %1820 = vmatprep.subr.mxu0 0.0
    %1821 = vmatpush2.msra.mxu0 %v1719
    %1822 = vmatprep.subr.mxu0 0.0
    %1823 = vmatpush2.msra.mxu0 %v1718
    %1824 = vmatprep.subr.mxu0 0.0
    %1825 = vmatpush2.msra.mxu0 %v1717
    %1826 = vmatprep.subr.mxu0 0.0
    %1827 = vmatpush2.msra.mxu0 %v1716
    %1828 = vmatprep.mubr.f32.mxu0 %v1692
    %1829 = vmatmul.mubr.f32.gmra.mxu0 %v1691
    %v1830 = vpop.f32.mrf.mxu0
    %v1831 = vadd.f32 0.0, %v1830
    %v1832 = vpop.f32.mrf.mxu0
    %1833 = vmatprep.mubr.f32.mxu0 %v1696
    %1834 = vmatmul.mubr.f32.gmra.mxu0 %v1695
    %v1835 = vpop.f32.mrf.mxu0
    %v1836 = vadd.f32 0.0, %v1835
    %v1837 = vpop.f32.mrf.mxu0
    %1838 = vdwg.mxu0
    %1839 = vmatprep.subr.mxu0 0.0
    %1840 = vmatpush1.msra.mxu0 %v1747
    %1841 = vmatprep.subr.mxu0 0.0
    %1842 = vmatpush1.msra.mxu0 %v1746
    %1843 = vmatprep.subr.mxu0 0.0
    %1844 = vmatpush1.msra.mxu0 %v1745
    %1845 = vmatprep.subr.mxu0 0.0
    %1846 = vmatpush1.msra.mxu0 %v1744
    %1847 = vmatprep.subr.mxu0 0.0
    %1848 = vmatpush1.msra.mxu0 %v1743
    %1849 = vmatprep.subr.mxu0 0.0
    %1850 = vmatpush1.msra.mxu0 %v1742
    %1851 = vmatprep.subr.mxu0 0.0
    %1852 = vmatpush1.msra.mxu0 %v1741
    %1853 = vmatprep.subr.mxu0 0.0
    %1854 = vmatpush1.msra.mxu0 %v1740
    %1855 = vmatprep.subr.mxu0 0.0
    %1856 = vmatpush1.msra.mxu0 %v1739
    %1857 = vmatprep.subr.mxu0 0.0
    %1858 = vmatpush1.msra.mxu0 %v1738
    %1859 = vmatprep.subr.mxu0 0.0
    %1860 = vmatpush1.msra.mxu0 %v1737
    %1861 = vmatprep.subr.mxu0 0.0
    %1862 = vmatpush1.msra.mxu0 %v1736
    %1863 = vmatprep.subr.mxu0 0.0
    %1864 = vmatpush1.msra.mxu0 %v1735
    %1865 = vmatprep.subr.mxu0 0.0
    %1866 = vmatpush1.msra.mxu0 %v1734
    %1867 = vmatprep.subr.mxu0 0.0
    %1868 = vmatpush1.msra.mxu0 %v1733
    %1869 = vmatprep.subr.mxu0 0.0
    %1870 = vmatpush1.msra.mxu0 %v1732
    %1871 = vmatprep.subr.mxu0 0.0
    %1872 = vmatpush2.msra.mxu0 %v1763
    %1873 = vmatprep.subr.mxu0 0.0
    %1874 = vmatpush2.msra.mxu0 %v1762
    %1875 = vmatprep.subr.mxu0 0.0
    %1876 = vmatpush2.msra.mxu0 %v1761
    %1877 = vmatprep.subr.mxu0 0.0
    %1878 = vmatpush2.msra.mxu0 %v1760
    %1879 = vmatprep.subr.mxu0 0.0
    %1880 = vmatpush2.msra.mxu0 %v1759
    %1881 = vmatprep.subr.mxu0 0.0
    %1882 = vmatpush2.msra.mxu0 %v1758
    %1883 = vmatprep.subr.mxu0 0.0
    %1884 = vmatpush2.msra.mxu0 %v1757
    %1885 = vmatprep.subr.mxu0 0.0
    %1886 = vmatpush2.msra.mxu0 %v1756
    %1887 = vmatprep.subr.mxu0 0.0
    %1888 = vmatpush2.msra.mxu0 %v1755
    %1889 = vmatprep.subr.mxu0 0.0
    %1890 = vmatpush2.msra.mxu0 %v1754
    %1891 = vmatprep.subr.mxu0 0.0
    %1892 = vmatpush2.msra.mxu0 %v1753
    %1893 = vmatprep.subr.mxu0 0.0
    %1894 = vmatpush2.msra.mxu0 %v1752
    %1895 = vmatprep.subr.mxu0 0.0
    %1896 = vmatpush2.msra.mxu0 %v1751
    %1897 = vmatprep.subr.mxu0 0.0
    %1898 = vmatpush2.msra.mxu0 %v1750
    %1899 = vmatprep.subr.mxu0 0.0
    %1900 = vmatpush2.msra.mxu0 %v1749
    %1901 = vmatprep.subr.mxu0 0.0
    %1902 = vmatpush2.msra.mxu0 %v1748
    %1903 = vmatprep.mubr.f32.mxu0 %v1694
    %1904 = vmatmul.mubr.f32.gmra.mxu0 %v1693
    %v1905 = vpop.f32.mrf.mxu0
    %v1906 = vadd.f32 %v1831, %v1905
    %v1907 = vpop.f32.mrf.mxu0
    %1908 = vmatprep.mubr.f32.mxu0 %v1698
    %1909 = vmatmul.mubr.f32.gmra.mxu0 %v1697
    %v1910 = vpop.f32.mrf.mxu0
    %v1911 = vadd.f32 %v1836, %v1910
    %v1912 = vpop.f32.mrf.mxu0
    %1913 = vdwg.mxu0
    %s1914 = scalar_lea.vmem [#allocation14], 1024
    %v1915 = vld [vmem:[%s1914] sm:$0xff]
    %v1916 = vld [vmem:[%s1914 + $0x8] sm:$0xff]
    %v1917 = vld [vmem:[%s1914 + $0x10] sm:$0xff]
    %v1918 = vld [vmem:[%s1914 + $0x18] sm:$0xff]
    %v1919 = vld [vmem:[%s1914 + $0x20] sm:$0xff]
    %v1920 = vld [vmem:[%s1914 + $0x28] sm:$0xff]
    %v1921 = vld [vmem:[%s1914 + $0x30] sm:$0xff]
    %v1922 = vld [vmem:[%s1914 + $0x38] sm:$0xff]
    %v1923 = vld [vmem:[%s1914 + $0x40] sm:$0xff]
    %v1924 = vld [vmem:[%s1914 + $0x48] sm:$0xff]
    %v1925 = vld [vmem:[%s1914 + $0x50] sm:$0xff]
    %v1926 = vld [vmem:[%s1914 + $0x58] sm:$0xff]
    %v1927 = vld [vmem:[%s1914 + $0x60] sm:$0xff]
    %v1928 = vld [vmem:[%s1914 + $0x68] sm:$0xff]
    %v1929 = vld [vmem:[%s1914 + $0x70] sm:$0xff]
    %v1930 = vld [vmem:[%s1914 + $0x78] sm:$0xff]
    %v1931 = vld [vmem:[%s1914 + $0x80] sm:$0xff]
    %v1932 = vld [vmem:[%s1914 + $0x88] sm:$0xff]
    %v1933 = vld [vmem:[%s1914 + $0x90] sm:$0xff]
    %v1934 = vld [vmem:[%s1914 + $0x98] sm:$0xff]
    %v1935 = vld [vmem:[%s1914 + $0xa0] sm:$0xff]
    %v1936 = vld [vmem:[%s1914 + $0xa8] sm:$0xff]
    %v1937 = vld [vmem:[%s1914 + $0xb0] sm:$0xff]
    %v1938 = vld [vmem:[%s1914 + $0xb8] sm:$0xff]
    %v1939 = vld [vmem:[%s1914 + $0xc0] sm:$0xff]
    %v1940 = vld [vmem:[%s1914 + $0xc8] sm:$0xff]
    %v1941 = vld [vmem:[%s1914 + $0xd0] sm:$0xff]
    %v1942 = vld [vmem:[%s1914 + $0xd8] sm:$0xff]
    %v1943 = vld [vmem:[%s1914 + $0xe0] sm:$0xff]
    %v1944 = vld [vmem:[%s1914 + $0xe8] sm:$0xff]
    %v1945 = vld [vmem:[%s1914 + $0xf0] sm:$0xff]
    %v1946 = vld [vmem:[%s1914 + $0xf8] sm:$0xff]
    %v1947 = vld [vmem:[%s1914 + $0x100] sm:$0xff]
    %v1948 = vld [vmem:[%s1914 + $0x108] sm:$0xff]
    %v1949 = vld [vmem:[%s1914 + $0x110] sm:$0xff]
    %v1950 = vld [vmem:[%s1914 + $0x118] sm:$0xff]
    %v1951 = vld [vmem:[%s1914 + $0x120] sm:$0xff]
    %v1952 = vld [vmem:[%s1914 + $0x128] sm:$0xff]
    %v1953 = vld [vmem:[%s1914 + $0x130] sm:$0xff]
    %v1954 = vld [vmem:[%s1914 + $0x138] sm:$0xff]
    %v1955 = vld [vmem:[%s1914 + $0x140] sm:$0xff]
    %v1956 = vld [vmem:[%s1914 + $0x148] sm:$0xff]
    %v1957 = vld [vmem:[%s1914 + $0x150] sm:$0xff]
    %v1958 = vld [vmem:[%s1914 + $0x158] sm:$0xff]
    %v1959 = vld [vmem:[%s1914 + $0x160] sm:$0xff]
    %v1960 = vld [vmem:[%s1914 + $0x168] sm:$0xff]
    %v1961 = vld [vmem:[%s1914 + $0x170] sm:$0xff]
    %v1962 = vld [vmem:[%s1914 + $0x178] sm:$0xff]
    %v1963 = vld [vmem:[%s1914 + $0x180] sm:$0xff]
    %v1964 = vld [vmem:[%s1914 + $0x188] sm:$0xff]
    %v1965 = vld [vmem:[%s1914 + $0x190] sm:$0xff]
    %v1966 = vld [vmem:[%s1914 + $0x198] sm:$0xff]
    %v1967 = vld [vmem:[%s1914 + $0x1a0] sm:$0xff]
    %v1968 = vld [vmem:[%s1914 + $0x1a8] sm:$0xff]
    %v1969 = vld [vmem:[%s1914 + $0x1b0] sm:$0xff]
    %v1970 = vld [vmem:[%s1914 + $0x1b8] sm:$0xff]
    %v1971 = vld [vmem:[%s1914 + $0x1c0] sm:$0xff]
    %v1972 = vld [vmem:[%s1914 + $0x1c8] sm:$0xff]
    %v1973 = vld [vmem:[%s1914 + $0x1d0] sm:$0xff]
    %v1974 = vld [vmem:[%s1914 + $0x1d8] sm:$0xff]
    %v1975 = vld [vmem:[%s1914 + $0x1e0] sm:$0xff]
    %v1976 = vld [vmem:[%s1914 + $0x1e8] sm:$0xff]
    %v1977 = vld [vmem:[%s1914 + $0x1f0] sm:$0xff]
    %v1978 = vld [vmem:[%s1914 + $0x1f8] sm:$0xff]
    %s1979 = scalar_lea.vmem %s8, 8
    %v1980 = vld [vmem:[%s1979] sm:$0xf]
    %v1982 = vlaneseq
    %v1983 = vshrl.u32 %v1982, 7
    %v1984 = vsub.s32 0, %v1983
    %v1985 = vrot.slane %v1980, %v1984
    %v1986 = vlaneseq
    %v1987 = vshrl.u32 %v1986, 7
    %v1988 = vsub.s32 1, %v1987
    %v1989 = vrot.slane %v1980, %v1988
    %v1990 = vlaneseq
    %v1991 = vshrl.u32 %v1990, 7
    %v1992 = vsub.s32 2, %v1991
    %v1993 = vrot.slane %v1980, %v1992
    %v1994 = vlaneseq
    %v1995 = vshrl.u32 %v1994, 7
    %v1996 = vsub.s32 3, %v1995
    %v1997 = vrot.slane %v1980, %v1996
    %2002 = vmatprep.subr.mxu0 %v1976
    %2003 = vmatpush1.msra.mxu0 %v1975
    %2004 = vmatprep.subr.mxu0 %v1972
    %2005 = vmatpush1.msra.mxu0 %v1971
    %2006 = vmatprep.subr.mxu0 %v1968
    %2007 = vmatpush1.msra.mxu0 %v1967
    %2008 = vmatprep.subr.mxu0 %v1964
    %2009 = vmatpush1.msra.mxu0 %v1963
    %2010 = vmatprep.subr.mxu0 %v1960
    %2011 = vmatpush1.msra.mxu0 %v1959
    %2012 = vmatprep.subr.mxu0 %v1956
    %2013 = vmatpush1.msra.mxu0 %v1955
    %2014 = vmatprep.subr.mxu0 %v1952
    %2015 = vmatpush1.msra.mxu0 %v1951
    %2016 = vmatprep.subr.mxu0 %v1948
    %2017 = vmatpush1.msra.mxu0 %v1947
    %2018 = vmatprep.subr.mxu0 %v1944
    %2019 = vmatpush1.msra.mxu0 %v1943
    %2020 = vmatprep.subr.mxu0 %v1940
    %2021 = vmatpush1.msra.mxu0 %v1939
    %2022 = vmatprep.subr.mxu0 %v1936
    %2023 = vmatpush1.msra.mxu0 %v1935
    %2024 = vmatprep.subr.mxu0 %v1932
    %2025 = vmatpush1.msra.mxu0 %v1931
    %2026 = vmatprep.subr.mxu0 %v1928
    %2027 = vmatpush1.msra.mxu0 %v1927
    %2028 = vmatprep.subr.mxu0 %v1924
    %2029 = vmatpush1.msra.mxu0 %v1923
    %2030 = vmatprep.subr.mxu0 %v1920
    %2031 = vmatpush1.msra.mxu0 %v1919
    %2032 = vmatprep.subr.mxu0 %v1916
    %2033 = vmatpush1.msra.mxu0 %v1915
    %2034 = vmatprep.subr.mxu0 0.0
    %2035 = vmatpush2.msra.mxu0 0.0
    %2036 = vmatprep.subr.mxu0 0.0
    %2037 = vmatpush2.msra.mxu0 0.0
    %2038 = vmatprep.subr.mxu0 0.0
    %2039 = vmatpush2.msra.mxu0 0.0
    %2040 = vmatprep.subr.mxu0 0.0
    %2041 = vmatpush2.msra.mxu0 0.0
    %2042 = vmatprep.subr.mxu0 0.0
    %2043 = vmatpush2.msra.mxu0 0.0
    %2044 = vmatprep.subr.mxu0 0.0
    %2045 = vmatpush2.msra.mxu0 0.0
    %2046 = vmatprep.subr.mxu0 0.0
    %2047 = vmatpush2.msra.mxu0 0.0
    %2048 = vmatprep.subr.mxu0 0.0
    %2049 = vmatpush2.msra.mxu0 0.0
    %2050 = vmatprep.subr.mxu0 0.0
    %2051 = vmatpush2.msra.mxu0 0.0
    %2052 = vmatprep.subr.mxu0 0.0
    %2053 = vmatpush2.msra.mxu0 0.0
    %2054 = vmatprep.subr.mxu0 0.0
    %2055 = vmatpush2.msra.mxu0 0.0
    %2056 = vmatprep.subr.mxu0 0.0
    %2057 = vmatpush2.msra.mxu0 0.0
    %2058 = vmatprep.subr.mxu0 0.0
    %2059 = vmatpush2.msra.mxu0 0.0
    %2060 = vmatprep.subr.mxu0 0.0
    %2061 = vmatpush2.msra.mxu0 0.0
    %2062 = vmatprep.subr.mxu0 0.0
    %2063 = vmatpush2.msra.mxu0 0.0
    %2064 = vmatprep.subr.mxu0 0.0
    %2065 = vmatpush2.msra.mxu0 0.0
    %2066 = vmatprep.mubr.f32.mxu0 0.0
    %2067 = vmatmul.mubr.f32.gmra.mxu0 %v855
    %v2068 = vpop.f32.mrf.mxu0
    %v2069 = vadd.f32 %v1985, %v2068
    %v2070 = vpop.f32.mrf.mxu0
    %v2071 = vadd.f32 %v1989, %v2070
    %2072 = vmatprep.mubr.f32.mxu0 0.0
    %2073 = vmatmul.mubr.f32.gmra.mxu0 %v858
    %v2074 = vpop.f32.mrf.mxu0
    %v2075 = vadd.f32 %v1985, %v2074
    %v2076 = vpop.f32.mrf.mxu0
    %v2077 = vadd.f32 %v1989, %v2076
    %2078 = vdwg.mxu0
    %2079 = vmatprep.subr.mxu0 %v1978
    %2080 = vmatpush1.msra.mxu0 %v1977
    %2081 = vmatprep.subr.mxu0 %v1974
    %2082 = vmatpush1.msra.mxu0 %v1973
    %2083 = vmatprep.subr.mxu0 %v1970
    %2084 = vmatpush1.msra.mxu0 %v1969
    %2085 = vmatprep.subr.mxu0 %v1966
    %2086 = vmatpush1.msra.mxu0 %v1965
    %2087 = vmatprep.subr.mxu0 %v1962
    %2088 = vmatpush1.msra.mxu0 %v1961
    %2089 = vmatprep.subr.mxu0 %v1958
    %2090 = vmatpush1.msra.mxu0 %v1957
    %2091 = vmatprep.subr.mxu0 %v1954
    %2092 = vmatpush1.msra.mxu0 %v1953
    %2093 = vmatprep.subr.mxu0 %v1950
    %2094 = vmatpush1.msra.mxu0 %v1949
    %2095 = vmatprep.subr.mxu0 %v1946
    %2096 = vmatpush1.msra.mxu0 %v1945
    %2097 = vmatprep.subr.mxu0 %v1942
    %2098 = vmatpush1.msra.mxu0 %v1941
    %2099 = vmatprep.subr.mxu0 %v1938
    %2100 = vmatpush1.msra.mxu0 %v1937
    %2101 = vmatprep.subr.mxu0 %v1934
    %2102 = vmatpush1.msra.mxu0 %v1933
    %2103 = vmatprep.subr.mxu0 %v1930
    %2104 = vmatpush1.msra.mxu0 %v1929
    %2105 = vmatprep.subr.mxu0 %v1926
    %2106 = vmatpush1.msra.mxu0 %v1925
    %2107 = vmatprep.subr.mxu0 %v1922
    %2108 = vmatpush1.msra.mxu0 %v1921
    %2109 = vmatprep.subr.mxu0 %v1918
    %2110 = vmatpush1.msra.mxu0 %v1917
    %2111 = vmatprep.subr.mxu0 0.0
    %2112 = vmatpush2.msra.mxu0 0.0
    %2113 = vmatprep.subr.mxu0 0.0
    %2114 = vmatpush2.msra.mxu0 0.0
    %2115 = vmatprep.subr.mxu0 0.0
    %2116 = vmatpush2.msra.mxu0 0.0
    %2117 = vmatprep.subr.mxu0 0.0
    %2118 = vmatpush2.msra.mxu0 0.0
    %2119 = vmatprep.subr.mxu0 0.0
    %2120 = vmatpush2.msra.mxu0 0.0
    %2121 = vmatprep.subr.mxu0 0.0
    %2122 = vmatpush2.msra.mxu0 0.0
    %2123 = vmatprep.subr.mxu0 0.0
    %2124 = vmatpush2.msra.mxu0 0.0
    %2125 = vmatprep.subr.mxu0 0.0
    %2126 = vmatpush2.msra.mxu0 0.0
    %2127 = vmatprep.subr.mxu0 0.0
    %2128 = vmatpush2.msra.mxu0 0.0
    %2129 = vmatprep.subr.mxu0 0.0
    %2130 = vmatpush2.msra.mxu0 0.0
    %2131 = vmatprep.subr.mxu0 0.0
    %2132 = vmatpush2.msra.mxu0 0.0
    %2133 = vmatprep.subr.mxu0 0.0
    %2134 = vmatpush2.msra.mxu0 0.0
    %2135 = vmatprep.subr.mxu0 0.0
    %2136 = vmatpush2.msra.mxu0 0.0
    %2137 = vmatprep.subr.mxu0 0.0
    %2138 = vmatpush2.msra.mxu0 0.0
    %2139 = vmatprep.subr.mxu0 0.0
    %2140 = vmatpush2.msra.mxu0 0.0
    %2141 = vmatprep.subr.mxu0 0.0
    %2142 = vmatpush2.msra.mxu0 0.0
    %2143 = vmatprep.mubr.f32.mxu0 0.0
    %2144 = vmatmul.mubr.f32.gmra.mxu0 %v855
    %v2145 = vpop.f32.mrf.mxu0
    %v2146 = vadd.f32 %v1993, %v2145
    %v2147 = vpop.f32.mrf.mxu0
    %v2148 = vadd.f32 %v1997, %v2147
    %2149 = vmatprep.mubr.f32.mxu0 0.0
    %2150 = vmatmul.mubr.f32.gmra.mxu0 %v858
    %v2151 = vpop.f32.mrf.mxu0
    %v2152 = vadd.f32 %v1993, %v2151
    %v2153 = vpop.f32.mrf.mxu0
    %v2154 = vadd.f32 %v1997, %v2153
    %2155 = vdwg.mxu0
    %v2156 = vmul.f32 %v2069, 0.5
    %v2157 = vmul.f32 %v2071, 0.5
    %v2158 = vmul.f32 %v2146, 0.5
    %v2159 = vmul.f32 %v2148, 0.5
    %v2160 = vmul.f32 %v2075, 0.5
    %v2161 = vmul.f32 %v2077, 0.5
    %v2162 = vmul.f32 %v2152, 0.5
    %v2163 = vmul.f32 %v2154, 0.5
    %v2164 = vmul.f32 %v2069, 0.044715
    %v2165 = vmul.f32 %v2071, 0.044715
    %v2166 = vmul.f32 %v2146, 0.044715
    %v2167 = vmul.f32 %v2148, 0.044715
    %v2168 = vmul.f32 %v2075, 0.044715
    %v2169 = vmul.f32 %v2077, 0.044715
    %v2170 = vmul.f32 %v2152, 0.044715
    %v2171 = vmul.f32 %v2154, 0.044715
    %v2172 = vmul.f32 %v2164, %v2069
    %v2173 = vmul.f32 %v2165, %v2071
    %v2174 = vmul.f32 %v2166, %v2146
    %v2175 = vmul.f32 %v2167, %v2148
    %v2176 = vmul.f32 %v2168, %v2075
    %v2177 = vmul.f32 %v2169, %v2077
    %v2178 = vmul.f32 %v2170, %v2152
    %v2179 = vmul.f32 %v2171, %v2154
    %v2180 = vmul.f32 %v2172, %v2069
    %v2181 = vmul.f32 %v2173, %v2071
    %v2182 = vmul.f32 %v2174, %v2146
    %v2183 = vmul.f32 %v2175, %v2148
    %v2184 = vmul.f32 %v2176, %v2075
    %v2185 = vmul.f32 %v2177, %v2077
    %v2186 = vmul.f32 %v2178, %v2152
    %v2187 = vmul.f32 %v2179, %v2154
    %v2188 = vadd.f32 %v2069, %v2180
    %v2189 = vadd.f32 %v2071, %v2181
    %v2190 = vadd.f32 %v2146, %v2182
    %v2191 = vadd.f32 %v2148, %v2183
    %v2192 = vadd.f32 %v2075, %v2184
    %v2193 = vadd.f32 %v2077, %v2185
    %v2194 = vadd.f32 %v2152, %v2186
    %v2195 = vadd.f32 %v2154, %v2187
    %v2196 = vmul.f32 %v2188, 0.7978846
    %v2197 = vmul.f32 %v2189, 0.7978846
    %v2198 = vmul.f32 %v2190, 0.7978846
    %v2199 = vmul.f32 %v2191, 0.7978846
    %v2200 = vmul.f32 %v2192, 0.7978846
    %v2201 = vmul.f32 %v2193, 0.7978846
    %v2202 = vmul.f32 %v2194, 0.7978846
    %v2203 = vmul.f32 %v2195, 0.7978846
    %v2204 = vtanh.pop %v2196
    %v2205 = vtanh.pop %v2197
    %v2206 = vtanh.pop %v2198
    %v2207 = vtanh.pop %v2199
    %v2208 = vtanh.pop %v2200
    %v2209 = vtanh.pop %v2201
    %v2210 = vtanh.pop %v2202
    %v2211 = vtanh.pop %v2203
    %v2212 = vadd.f32 %v2204, 1.0
    %v2213 = vadd.f32 %v2205, 1.0
    %v2214 = vadd.f32 %v2206, 1.0
    %v2215 = vadd.f32 %v2207, 1.0
    %v2216 = vadd.f32 %v2208, 1.0
    %v2217 = vadd.f32 %v2209, 1.0
    %v2218 = vadd.f32 %v2210, 1.0
    %v2219 = vadd.f32 %v2211, 1.0
    %v2220 = vmul.f32 %v2156, %v2212
    %v2221 = vmul.f32 %v2157, %v2213
    %v2222 = vmul.f32 %v2158, %v2214
    %v2223 = vmul.f32 %v2159, %v2215
    %v2224 = vmul.f32 %v2160, %v2216
    %v2225 = vmul.f32 %v2161, %v2217
    %v2226 = vmul.f32 %v2162, %v2218
    %v2227 = vmul.f32 %v2163, %v2219
    %s2228 = scalar_lea.vmem [#allocation16], 1024
    %v2229 = vld [vmem:[%s2228] sm:$0xff]
    %v2230 = vld [vmem:[%s2228 + $0x8] sm:$0xff]
    %v2231 = vld [vmem:[%s2228 + $0x10] sm:$0xff]
    %v2232 = vld [vmem:[%s2228 + $0x18] sm:$0xff]
    %v2233 = vld [vmem:[%s2228 + $0x20] sm:$0xff]
    %v2234 = vld [vmem:[%s2228 + $0x28] sm:$0xff]
    %v2235 = vld [vmem:[%s2228 + $0x30] sm:$0xff]
    %v2236 = vld [vmem:[%s2228 + $0x38] sm:$0xff]
    %v2237 = vld [vmem:[%s2228 + $0x40] sm:$0xff]
    %v2238 = vld [vmem:[%s2228 + $0x48] sm:$0xff]
    %v2239 = vld [vmem:[%s2228 + $0x50] sm:$0xff]
    %v2240 = vld [vmem:[%s2228 + $0x58] sm:$0xff]
    %v2241 = vld [vmem:[%s2228 + $0x60] sm:$0xff]
    %v2242 = vld [vmem:[%s2228 + $0x68] sm:$0xff]
    %v2243 = vld [vmem:[%s2228 + $0x70] sm:$0xff]
    %v2244 = vld [vmem:[%s2228 + $0x78] sm:$0xff]
    %v2245 = vld [vmem:[%s2228 + $0x80] sm:$0xff]
    %v2246 = vld [vmem:[%s2228 + $0x88] sm:$0xff]
    %v2247 = vld [vmem:[%s2228 + $0x90] sm:$0xff]
    %v2248 = vld [vmem:[%s2228 + $0x98] sm:$0xff]
    %v2249 = vld [vmem:[%s2228 + $0xa0] sm:$0xff]
    %v2250 = vld [vmem:[%s2228 + $0xa8] sm:$0xff]
    %v2251 = vld [vmem:[%s2228 + $0xb0] sm:$0xff]
    %v2252 = vld [vmem:[%s2228 + $0xb8] sm:$0xff]
    %v2253 = vld [vmem:[%s2228 + $0xc0] sm:$0xff]
    %v2254 = vld [vmem:[%s2228 + $0xc8] sm:$0xff]
    %v2255 = vld [vmem:[%s2228 + $0xd0] sm:$0xff]
    %v2256 = vld [vmem:[%s2228 + $0xd8] sm:$0xff]
    %v2257 = vld [vmem:[%s2228 + $0xe0] sm:$0xff]
    %v2258 = vld [vmem:[%s2228 + $0xe8] sm:$0xff]
    %v2259 = vld [vmem:[%s2228 + $0xf0] sm:$0xff]
    %v2260 = vld [vmem:[%s2228 + $0xf8] sm:$0xff]
    %v2261 = vld [vmem:[%s2228 + $0x100] sm:$0xff]
    %v2262 = vld [vmem:[%s2228 + $0x108] sm:$0xff]
    %v2263 = vld [vmem:[%s2228 + $0x110] sm:$0xff]
    %v2264 = vld [vmem:[%s2228 + $0x118] sm:$0xff]
    %v2265 = vld [vmem:[%s2228 + $0x120] sm:$0xff]
    %v2266 = vld [vmem:[%s2228 + $0x128] sm:$0xff]
    %v2267 = vld [vmem:[%s2228 + $0x130] sm:$0xff]
    %v2268 = vld [vmem:[%s2228 + $0x138] sm:$0xff]
    %v2269 = vld [vmem:[%s2228 + $0x140] sm:$0xff]
    %v2270 = vld [vmem:[%s2228 + $0x148] sm:$0xff]
    %v2271 = vld [vmem:[%s2228 + $0x150] sm:$0xff]
    %v2272 = vld [vmem:[%s2228 + $0x158] sm:$0xff]
    %v2273 = vld [vmem:[%s2228 + $0x160] sm:$0xff]
    %v2274 = vld [vmem:[%s2228 + $0x168] sm:$0xff]
    %v2275 = vld [vmem:[%s2228 + $0x170] sm:$0xff]
    %v2276 = vld [vmem:[%s2228 + $0x178] sm:$0xff]
    %v2277 = vld [vmem:[%s2228 + $0x180] sm:$0xff]
    %v2278 = vld [vmem:[%s2228 + $0x188] sm:$0xff]
    %v2279 = vld [vmem:[%s2228 + $0x190] sm:$0xff]
    %v2280 = vld [vmem:[%s2228 + $0x198] sm:$0xff]
    %v2281 = vld [vmem:[%s2228 + $0x1a0] sm:$0xff]
    %v2282 = vld [vmem:[%s2228 + $0x1a8] sm:$0xff]
    %v2283 = vld [vmem:[%s2228 + $0x1b0] sm:$0xff]
    %v2284 = vld [vmem:[%s2228 + $0x1b8] sm:$0xff]
    %v2285 = vld [vmem:[%s2228 + $0x1c0] sm:$0xff]
    %v2286 = vld [vmem:[%s2228 + $0x1c8] sm:$0xff]
    %v2287 = vld [vmem:[%s2228 + $0x1d0] sm:$0xff]
    %v2288 = vld [vmem:[%s2228 + $0x1d8] sm:$0xff]
    %v2289 = vld [vmem:[%s2228 + $0x1e0] sm:$0xff]
    %v2290 = vld [vmem:[%s2228 + $0x1e8] sm:$0xff]
    %v2291 = vld [vmem:[%s2228 + $0x1f0] sm:$0xff]
    %v2292 = vld [vmem:[%s2228 + $0x1f8] sm:$0xff]
    %2293 = vmatprep.subr.mxu0 0.0
    %2294 = vmatpush1.msra.mxu0 %v2244
    %2295 = vmatprep.subr.mxu0 0.0
    %2296 = vmatpush1.msra.mxu0 %v2243
    %2297 = vmatprep.subr.mxu0 0.0
    %2298 = vmatpush1.msra.mxu0 %v2242
    %2299 = vmatprep.subr.mxu0 0.0
    %2300 = vmatpush1.msra.mxu0 %v2241
    %2301 = vmatprep.subr.mxu0 0.0
    %2302 = vmatpush1.msra.mxu0 %v2240
    %2303 = vmatprep.subr.mxu0 0.0
    %2304 = vmatpush1.msra.mxu0 %v2239
    %2305 = vmatprep.subr.mxu0 0.0
    %2306 = vmatpush1.msra.mxu0 %v2238
    %2307 = vmatprep.subr.mxu0 0.0
    %2308 = vmatpush1.msra.mxu0 %v2237
    %2309 = vmatprep.subr.mxu0 0.0
    %2310 = vmatpush1.msra.mxu0 %v2236
    %2311 = vmatprep.subr.mxu0 0.0
    %2312 = vmatpush1.msra.mxu0 %v2235
    %2313 = vmatprep.subr.mxu0 0.0
    %2314 = vmatpush1.msra.mxu0 %v2234
    %2315 = vmatprep.subr.mxu0 0.0
    %2316 = vmatpush1.msra.mxu0 %v2233
    %2317 = vmatprep.subr.mxu0 0.0
    %2318 = vmatpush1.msra.mxu0 %v2232
    %2319 = vmatprep.subr.mxu0 0.0
    %2320 = vmatpush1.msra.mxu0 %v2231
    %2321 = vmatprep.subr.mxu0 0.0
    %2322 = vmatpush1.msra.mxu0 %v2230
    %2323 = vmatprep.subr.mxu0 0.0
    %2324 = vmatpush1.msra.mxu0 %v2229
    %2325 = vmatprep.subr.mxu0 0.0
    %2326 = vmatpush2.msra.mxu0 %v2260
    %2327 = vmatprep.subr.mxu0 0.0
    %2328 = vmatpush2.msra.mxu0 %v2259
    %2329 = vmatprep.subr.mxu0 0.0
    %2330 = vmatpush2.msra.mxu0 %v2258
    %2331 = vmatprep.subr.mxu0 0.0
    %2332 = vmatpush2.msra.mxu0 %v2257
    %2333 = vmatprep.subr.mxu0 0.0
    %2334 = vmatpush2.msra.mxu0 %v2256
    %2335 = vmatprep.subr.mxu0 0.0
    %2336 = vmatpush2.msra.mxu0 %v2255
    %2337 = vmatprep.subr.mxu0 0.0
    %2338 = vmatpush2.msra.mxu0 %v2254
    %2339 = vmatprep.subr.mxu0 0.0
    %2340 = vmatpush2.msra.mxu0 %v2253
    %2341 = vmatprep.subr.mxu0 0.0
    %2342 = vmatpush2.msra.mxu0 %v2252
    %2343 = vmatprep.subr.mxu0 0.0
    %2344 = vmatpush2.msra.mxu0 %v2251
    %2345 = vmatprep.subr.mxu0 0.0
    %2346 = vmatpush2.msra.mxu0 %v2250
    %2347 = vmatprep.subr.mxu0 0.0
    %2348 = vmatpush2.msra.mxu0 %v2249
    %2349 = vmatprep.subr.mxu0 0.0
    %2350 = vmatpush2.msra.mxu0 %v2248
    %2351 = vmatprep.subr.mxu0 0.0
    %2352 = vmatpush2.msra.mxu0 %v2247
    %2353 = vmatprep.subr.mxu0 0.0
    %2354 = vmatpush2.msra.mxu0 %v2246
    %2355 = vmatprep.subr.mxu0 0.0
    %2356 = vmatpush2.msra.mxu0 %v2245
    %2357 = vmatprep.mubr.f32.mxu0 %v2221
    %2358 = vmatmul.mubr.f32.gmra.mxu0 %v2220
    %v2359 = vpop.f32.mrf.mxu0
    %v2360 = vadd.f32 0.0, %v2359
    %v2361 = vpop.f32.mrf.mxu0
    %2362 = vmatprep.mubr.f32.mxu0 %v2225
    %2363 = vmatmul.mubr.f32.gmra.mxu0 %v2224
    %v2364 = vpop.f32.mrf.mxu0
    %v2365 = vadd.f32 0.0, %v2364
    %v2366 = vpop.f32.mrf.mxu0
    %2367 = vdwg.mxu0
    %2368 = vmatprep.subr.mxu0 0.0
    %2369 = vmatpush1.msra.mxu0 %v2276
    %2370 = vmatprep.subr.mxu0 0.0
    %2371 = vmatpush1.msra.mxu0 %v2275
    %2372 = vmatprep.subr.mxu0 0.0
    %2373 = vmatpush1.msra.mxu0 %v2274
    %2374 = vmatprep.subr.mxu0 0.0
    %2375 = vmatpush1.msra.mxu0 %v2273
    %2376 = vmatprep.subr.mxu0 0.0
    %2377 = vmatpush1.msra.mxu0 %v2272
    %2378 = vmatprep.subr.mxu0 0.0
    %2379 = vmatpush1.msra.mxu0 %v2271
    %2380 = vmatprep.subr.mxu0 0.0
    %2381 = vmatpush1.msra.mxu0 %v2270
    %2382 = vmatprep.subr.mxu0 0.0
    %2383 = vmatpush1.msra.mxu0 %v2269
    %2384 = vmatprep.subr.mxu0 0.0
    %2385 = vmatpush1.msra.mxu0 %v2268
    %2386 = vmatprep.subr.mxu0 0.0
    %2387 = vmatpush1.msra.mxu0 %v2267
    %2388 = vmatprep.subr.mxu0 0.0
    %2389 = vmatpush1.msra.mxu0 %v2266
    %2390 = vmatprep.subr.mxu0 0.0
    %2391 = vmatpush1.msra.mxu0 %v2265
    %2392 = vmatprep.subr.mxu0 0.0
    %2393 = vmatpush1.msra.mxu0 %v2264
    %2394 = vmatprep.subr.mxu0 0.0
    %2395 = vmatpush1.msra.mxu0 %v2263
    %2396 = vmatprep.subr.mxu0 0.0
    %2397 = vmatpush1.msra.mxu0 %v2262
    %2398 = vmatprep.subr.mxu0 0.0
    %2399 = vmatpush1.msra.mxu0 %v2261
    %2400 = vmatprep.subr.mxu0 0.0
    %2401 = vmatpush2.msra.mxu0 %v2292
    %2402 = vmatprep.subr.mxu0 0.0
    %2403 = vmatpush2.msra.mxu0 %v2291
    %2404 = vmatprep.subr.mxu0 0.0
    %2405 = vmatpush2.msra.mxu0 %v2290
    %2406 = vmatprep.subr.mxu0 0.0
    %2407 = vmatpush2.msra.mxu0 %v2289
    %2408 = vmatprep.subr.mxu0 0.0
    %2409 = vmatpush2.msra.mxu0 %v2288
    %2410 = vmatprep.subr.mxu0 0.0
    %2411 = vmatpush2.msra.mxu0 %v2287
    %2412 = vmatprep.subr.mxu0 0.0
    %2413 = vmatpush2.msra.mxu0 %v2286
    %2414 = vmatprep.subr.mxu0 0.0
    %2415 = vmatpush2.msra.mxu0 %v2285
    %2416 = vmatprep.subr.mxu0 0.0
    %2417 = vmatpush2.msra.mxu0 %v2284
    %2418 = vmatprep.subr.mxu0 0.0
    %2419 = vmatpush2.msra.mxu0 %v2283
    %2420 = vmatprep.subr.mxu0 0.0
    %2421 = vmatpush2.msra.mxu0 %v2282
    %2422 = vmatprep.subr.mxu0 0.0
    %2423 = vmatpush2.msra.mxu0 %v2281
    %2424 = vmatprep.subr.mxu0 0.0
    %2425 = vmatpush2.msra.mxu0 %v2280
    %2426 = vmatprep.subr.mxu0 0.0
    %2427 = vmatpush2.msra.mxu0 %v2279
    %2428 = vmatprep.subr.mxu0 0.0
    %2429 = vmatpush2.msra.mxu0 %v2278
    %2430 = vmatprep.subr.mxu0 0.0
    %2431 = vmatpush2.msra.mxu0 %v2277
    %2432 = vmatprep.mubr.f32.mxu0 %v2223
    %2433 = vmatmul.mubr.f32.gmra.mxu0 %v2222
    %v2434 = vpop.f32.mrf.mxu0
    %v2435 = vadd.f32 %v2360, %v2434
    %v2436 = vpop.f32.mrf.mxu0
    %2437 = vmatprep.mubr.f32.mxu0 %v2227
    %2438 = vmatmul.mubr.f32.gmra.mxu0 %v2226
    %v2439 = vpop.f32.mrf.mxu0
    %v2440 = vadd.f32 %v2365, %v2439
    %v2441 = vpop.f32.mrf.mxu0
    %2442 = vdwg.mxu0
    %v2443 = vadd.f32 %v741, %v1377
    %v2444 = vadd.f32 %v742, %v1906
    %v2445 = vadd.f32 %v743, %v2435
    %v2446 = vadd.f32 %v744, %v1382
    %v2447 = vadd.f32 %v745, %v1911
    %v2448 = vadd.f32 %v746, %v2440
    %v2449 = vld [vmem:[%s10] sm:$0x7]
    %v2451 = vlaneseq
    %v2452 = vshrl.u32 %v2451, 7
    %v2453 = vsub.s32 0, %v2452
    %v2454 = vrot.slane %v2449, %v2453
    %v2455 = vlaneseq
    %v2456 = vshrl.u32 %v2455, 7
    %v2457 = vsub.s32 1, %v2456
    %v2458 = vrot.slane %v2449, %v2457
    %v2459 = vlaneseq
    %v2460 = vshrl.u32 %v2459, 7
    %v2461 = vsub.s32 2, %v2460
    %v2462 = vrot.slane %v2449, %v2461
    %v2466 = vadd.f32 %v2443, %v2454
    %v2467 = vadd.f32 %v2444, %v2458
    %v2468 = vadd.f32 %v2445, %v2462
    %v2469 = vadd.f32 %v2446, %v2454
    %v2470 = vadd.f32 %v2447, %v2458
    %v2471 = vadd.f32 %v2448, %v2462
    %2472 = vst [vmem:[#allocation17] sm:$0xff] %v2466
    %2473 = vst [vmem:[#allocation17 + $0x8] sm:$0xff] %v2467
    %2474 = vst [vmem:[#allocation17 + $0x10] sm:$0xff] %v2468
    %2475 = vst [vmem:[#allocation17 + $0x18] sm:$0xff] %v2469
    %2476 = vst [vmem:[#allocation17 + $0x20] sm:$0xff] %v2470
    %2477 = vst [vmem:[#allocation17 + $0x28] sm:$0xff] %v2471
    // Predicated region
    $region82: #{tpu_custom_call.1} parent=1 // pred_check
      _
    $region83: #{tpu_custom_call.1} parent=1 // pred_check_branch
      %2479 = sbr.rel (0) target = $region85
    $region84: #{tpu_custom_call.1} parent=1 // pred_region
      %s2481 = ssub.s32 768, 768
      %2482 = vsyncadd [#allocation4], %s2481
      %s2483 = sshll.u32 [#allocation17], 4
      %s2484 = int_to_ptr.vmem [resolvable:$true] %s2483
      %2489 = dma.vmem_to_hbm [thread:$0]  %s2484, 768, %s11, [#allocation4], 384, 384, 24
    $region85: #{tpu_custom_call.1} parent=1 // pred_fallthru
      _
    // Predicated region
    $region86: #{tpu_custom_call.1} parent=1 // pred_check
      _
    $region87: #{tpu_custom_call.1} parent=1 // pred_check_branch
      %2491 = sbr.rel (0) target = $region89
    $region88: #{tpu_custom_call.1} parent=1 // pred_region
      %2492 = dma.done [#allocation4], 768
    $region89: #{tpu_custom_call.1} parent=1 // pred_fallthru
      _
    %2493 = vsyncpa [#allocation3], 1
    %2494 = vsyncpa [#allocation6], 1
    %2495 = vsyncpa [#allocation9], 1
    %2496 = vsyncpa [#allocation12], 1
    %2497 = vsyncpa [#allocation15], 1
    %2498 = vsyncpa [#allocation4], 1

</llo_original>
